<compile_context>
chip_gen: v7x
topology: tpu7x:2x2x1
jax: 0.10.0
libtpu: 0.0.40
codegen_flags: <defaults>
</compile_context>

<pallas_src>
import functools

import jax
import jax.numpy as jnp
from jax import lax
from jax.experimental import pallas as pl
from jax.experimental.pallas import tpu as pltpu

BN_EPS = 1e-5          # nn.BatchNorm2d default
LEAKY_SLOPE = 0.2


def _vmem_budget_bytes():
    """Generation-aware VMEM budget: ~48 MiB on v7x (64 MiB/TC), ~96 MiB on
    v5e/v6e (128 MiB).  Conservative default if the query is unavailable."""
    try:
        cap = int(pltpu.get_tpu_info().vmem_capacity_bytes)
    except Exception:
        cap = 64 * 1024 * 1024
    return max(32 * 1024 * 1024, min((cap * 3) // 4, 96 * 1024 * 1024))


_VMEM_BUDGET = _vmem_budget_bytes()


# ---------------------------------------------------------------------------
# Pallas kernel: Conv2d(k=4, s=2, p=0, bias=False) on a space-to-depth sample.
# One grid step == one batch sample; the im2col patch is assembled per output
# row directly in VMEM/vregs (lane concat of 4 shifted views) and fed to the
# MXU -- no patch matrix in HBM.
# ---------------------------------------------------------------------------
def _conv_s2d_kernel(hs_ref, w_ref, y_ref, sum_ref, ssq_ref, *, oh_n, ow_n):
    """
    hs_ref : (1, Hs, Ws, C4)    bf16; C4 = 4*Cin; hs[n,r,s,(p*2+q)*Cin+c]
                                 = x[n, 2r+p, 2s+q, c]  (p, q in {0,1})
    w_ref  : (4*C4, C_out)      bf16; rows ordered (a, b, p, q, c) with
                                 kernel taps i = 2a+p, j = 2b+q
    y_ref  : (1, OH, OW, C_out) bf16 raw conv output (no BN / activation);
                                 lane dim C_out is 128/256 -> dense stores
    sum_ref/ssq_ref: (1, 1, C_out) f32 per-sample channel partials for the
                                 training-mode BatchNorm statistics
    """
    c_out = y_ref.shape[-1]
    w = w_ref[...]                                   # resident (4*C4, C_out)

    def row_body(oh, carry):
        s_acc, q_acc = carry
        # Two adjacent space-to-depth rows cover all 4 kernel taps in H.
        slab = hs_ref[0, pl.ds(oh, 2)]               # (2, Ws, C4) bf16
        # In-VMEM im2col for one output row: four shifted (OW, C4) views,
        # lane-concatenated into the (OW, 4*C4) patch row (order (a, b)).
        patch = jnp.concatenate(
            [slab[0, 0:ow_n, :], slab[0, 1:ow_n + 1, :],
             slab[1, 0:ow_n, :], slab[1, 1:ow_n + 1, :]],
            axis=-1)
        yrow = jnp.dot(patch, w, preferred_element_type=jnp.float32)
        y_ref[0, pl.ds(oh, 1)] = yrow.astype(y_ref.dtype)[None]
        # f32 stats from the accumulator (pre bf16 rounding).
        s_acc = s_acc + jnp.sum(yrow, axis=0, keepdims=True)
        q_acc = q_acc + jnp.sum(yrow * yrow, axis=0, keepdims=True)
        return s_acc, q_acc

    init = (jnp.zeros((1, c_out), jnp.float32),
            jnp.zeros((1, c_out), jnp.float32))
    s, q = lax.fori_loop(0, oh_n, row_body, init)
    sum_ref[0] = s
    ssq_ref[0] = q


# ---------------------------------------------------------------------------
# JAX-side glue (all of it fuses into single memory-bound XLA passes).
# ---------------------------------------------------------------------------
def _space_to_depth(a):
    """(N, H, W, C) -> (N, H//2, W//2, 4*C); hs[n,r,s,(p*2+q)*C+c] = a[n,2r+p,2s+q,c]."""
    n, h, w, c = a.shape
    hs, ws = h // 2, w // 2
    a = a[:, :2 * hs, :2 * ws, :]               # crop to even (lossless for k4/s2)
    a = a.reshape(n, hs, 2, ws, 2, c)
    a = a.transpose(0, 1, 3, 2, 4, 5)
    return a.reshape(n, hs, ws, 4 * c)


def _pack_weight_s2d(w, c_in_pad):
    """PyTorch (C_out, C_in, 4, 4) -> (16*C_in_pad, C_out) bf16 with row order
    (a, b, p, q, c), matching the kernel's patch concat (i = 2a+p, j = 2b+q)."""
    c_out, c_in, kh, kw = w.shape
    assert kh == 4 and kw == 4
    if c_in_pad > c_in:
        w = jnp.pad(w, ((0, 0), (0, c_in_pad - c_in), (0, 0), (0, 0)))
    w6 = w.reshape(c_out, c_in_pad, 2, 2, 2, 2)          # (co, c, a, p, b, q)
    w6 = jnp.transpose(w6, (2, 4, 3, 5, 1, 0))           # (a, b, p, q, c, co)
    return w6.reshape(16 * c_in_pad, c_out).astype(jnp.bfloat16)


def _conv_pallas(a, w, c_in_pad):
    """a: (N, H, W, c_in_pad) bf16, already affine+activated.
    Returns (y bf16 (N, OH, OW, C_out), per-sample sum/ssq f32 (N, 1, C_out))."""
    n = a.shape[0]
    c_out = w.shape[0]
    hs = _space_to_depth(a)
    _, hs_n, ws_n, c4 = hs.shape
    oh_n, ow_n = hs_n - 1, ws_n - 1
    k = 4 * c4
    wmat = _pack_weight_s2d(w, c_in_pad)

    kern = functools.partial(_conv_s2d_kernel, oh_n=oh_n, ow_n=ow_n)
    y, psum, pssq = pl.pallas_call(
        kern,
        out_shape=(
            jax.ShapeDtypeStruct((n, oh_n, ow_n, c_out), jnp.bfloat16),
            jax.ShapeDtypeStruct((n, 1, c_out), jnp.float32),
            jax.ShapeDtypeStruct((n, 1, c_out), jnp.float32),
        ),
        grid_spec=pltpu.PrefetchScalarGridSpec(
            num_scalar_prefetch=0,
            grid=(n,),
            in_specs=[
                # One full space-to-depth sample per grid step.
                pl.BlockSpec((1, hs_n, ws_n, c4), lambda i: (i, 0, 0, 0)),
                # Grid-invariant weight: constant index_map keeps it resident.
                pl.BlockSpec((k, c_out), lambda i: (0, 0)),
            ],
            out_specs=(
                pl.BlockSpec((1, oh_n, ow_n, c_out), lambda i: (i, 0, 0, 0)),
                pl.BlockSpec((1, 1, c_out), lambda i: (i, 0, 0)),
                pl.BlockSpec((1, 1, c_out), lambda i: (i, 0, 0)),
            ),
        ),
        compiler_params=pltpu.CompilerParams(
            # Per-sample blocks are disjoint -> safe to shard across v7x cores.
            dimension_semantics=("parallel",),
            vmem_limit_bytes=_VMEM_BUDGET,
        ),
    )(hs, wmat)
    return y, psum, pssq


def _conv_xla(a, w, c_in_pad):
    """Fallback conv (lane-sparse first block / tiny tail blocks): XLA conv,
    bf16 operands, f32 accumulation -- same numerics as the Pallas path."""
    c_in = w.shape[1]
    if c_in_pad > c_in:
        w = jnp.pad(w, ((0, 0), (0, c_in_pad - c_in), (0, 0), (0, 0)))
    w_hwio = jnp.transpose(w, (2, 3, 1, 0)).astype(jnp.bfloat16)
    return lax.conv_general_dilated(
        a, w_hwio, window_strides=(2, 2), padding="VALID",
        dimension_numbers=("NHWC", "HWIO", "NHWC"),
        preferred_element_type=jnp.float32)                 # f32 (N, OH, OW, C_out)


def _conv_bn_block(h, prev_scale, prev_shift, w, gamma, beta):
    """conv_block(Conv k4/s2 no-bias -> BatchNorm2d(train) -> LeakyReLU 0.2).

    `h` is the RAW conv output of the previous block (bf16 NHWC).  The previous
    block's BN affine + LeakyReLU are applied here element-wise so XLA fuses
    them into the memory-bound space-to-depth repack (review item #2).
    Returns (this block's raw conv output bf16, this block's BN scale, shift)."""
    if prev_scale is not None:
        a = h.astype(jnp.float32) * prev_scale + prev_shift
        a = jnp.where(a >= 0.0, a, LEAKY_SLOPE * a)
        a = a.astype(jnp.bfloat16)
    else:
        a = h.astype(jnp.bfloat16)

    c_in = w.shape[1]
    c_in_pad = -(-c_in // 4) * 4                 # 3 -> 4 for the first block
    if c_in_pad != a.shape[-1]:
        a = jnp.pad(a, ((0, 0), (0, 0), (0, 0), (0, c_in_pad - a.shape[-1])))

    n, hh, ww, _ = a.shape
    c_out = w.shape[0]
    oh_n, ow_n = (hh - 4) // 2 + 1, (ww - 4) // 2 + 1
    c4 = 4 * c_in_pad

    # Rough per-call VMEM working set (double-buffered hs / y sample blocks +
    # resident weight + in-kernel temporaries), checked against the
    # generation-aware budget.
    vmem_est = (2 * (hh // 2) * (ww // 2) * c4 * 2
                + 2 * oh_n * ow_n * c_out * 2
                + 2 * 4 * c4 * c_out * 2
                + 8 * ow_n * 4 * c4 * 2)
    use_pallas = (c4 >= 128                      # lane-dense patch channels
                  and oh_n * ow_n >= 128         # enough rows to be worth a launch
                  and vmem_est <= _VMEM_BUDGET)

    if use_pallas:
        y, psum, pssq = _conv_pallas(a, w, c_in_pad)
        csum = jnp.sum(psum[:, 0, :], axis=0)
        cssq = jnp.sum(pssq[:, 0, :], axis=0)
    else:
        yf = _conv_xla(a, w, c_in_pad)           # f32
        csum = jnp.sum(yf, axis=(0, 1, 2))
        cssq = jnp.sum(yf * yf, axis=(0, 1, 2))
        y = yf.astype(jnp.bfloat16)

    # Training-mode BatchNorm2d batch statistics (biased variance), f32.
    m = n * oh_n * ow_n
    mean = csum / m
    var = jnp.maximum(cssq / m - mean * mean, 0.0)
    scale = gamma / jnp.sqrt(var + BN_EPS)
    shift = beta - mean * scale
    return y, scale, shift


# ---------------------------------------------------------------------------
# Critic
# ---------------------------------------------------------------------------
_CHANNELS = [3, 64, 128, 256, 256, 256]          # conv_block chain; final conv -> 1


def init_params(key):
    keys = jax.random.split(key, len(_CHANNELS))
    blocks = []
    for idx, (cin, cout) in enumerate(zip(_CHANNELS[:-1], _CHANNELS[1:])):
        fan_in = cin * 4 * 4
        w = jax.random.normal(keys[idx], (cout, cin, 4, 4), jnp.float32)
        blocks.append((w * (2.0 / fan_in) ** 0.5,
                       jnp.ones((cout,), jnp.float32),
                       jnp.zeros((cout,), jnp.float32)))
    fan_in = _CHANNELS[-1] * 4 * 4
    final_w = jax.random.normal(keys[-1], (1, _CHANNELS[-1], 4, 4), jnp.float32)
    final_w = final_w * (2.0 / fan_in) ** 0.5
    return {"blocks": blocks, "final_w": final_w,
            "final_b": jnp.zeros((1,), jnp.float32)}


def critic_forward(x, params):
    # Single boundary layout conversion: NCHW -> NHWC, bf16 activations.
    h = jnp.transpose(x, (0, 2, 3, 1)).astype(jnp.bfloat16)

    scale = shift = None
    for w, gamma, beta in params["blocks"]:
        h, scale, shift = _conv_bn_block(h, scale, shift, w, gamma, beta)

    # Last block's BN affine + LeakyReLU (tensor is tiny by now) and the final
    # Conv2d(256, 1, k=4, s=2, bias=True): an (N,4,4,256) -> (N,1,1,1) mat-vec.
    a = h.astype(jnp.float32) * scale + shift
    a = jnp.where(a >= 0.0, a, LEAKY_SLOPE * a)
    w_hwio = jnp.transpose(params["final_w"], (2, 3, 1, 0))
    out = lax.conv_general_dilated(
        a, w_hwio, window_strides=(2, 2), padding="VALID",
        dimension_numbers=("NHWC", "HWIO", "NHWC")) + params["final_b"]
    return jnp.transpose(out, (0, 3, 1, 2)).astype(jnp.float32)


if __name__ == "__main__":
    key = jax.random.PRNGKey(0)
    kx, kp = jax.random.split(key)

    # Smallest spatial size admitted by six k=4/s=2/p=0 convs:
    # 190 -> 94 -> 46 -> 22 -> 10 -> 4 -> 1
    x = jax.random.normal(kx, (2, 3, 190, 190), jnp.float32)
    params = init_params(kp)

    fwd = jax.jit(lambda inp: critic_forward(inp, params))
    out = jax.block_until_ready(fwd(x))

    assert out.shape == (2, 1, 1, 1), out.shape
    assert out.dtype == jnp.float32
    assert bool(jnp.all(jnp.isfinite(out)))
    print("KERNEL_OK")
</pallas_src>

<mosaic_0001>
module attributes {stable_mosaic.version = 11 : i64} {
  func.func @_conv_s2d_kernel(%arg0: i32, %arg1: memref<1x47x47x256xbf16, #tpu.memory_space<vmem>>, %arg2: memref<1024x128xbf16, #tpu.memory_space<vmem>>, %arg3: memref<1x46x46x128xbf16, #tpu.memory_space<vmem>>, %arg4: memref<1x1x128xf32, #tpu.memory_space<vmem>>, %arg5: memref<1x1x128xf32, #tpu.memory_space<vmem>>) attributes {dimension_semantics = [#tpu.dimension_semantics<parallel>], iteration_bounds = array<i64: 2>, scalar_prefetch = 0 : i64, scratch_operands = 0 : i64, tpu.core_type = #tpu.core_type<tc>, window_params = [{transform_indices = @transform_0, window_bounds = array<i64: 1, 47, 47, 256>}, {pipeline_mode = #tpu.pipeline_mode<synchronous>, transform_indices = @transform_1, window_bounds = array<i64: 1024, 128>}, {transform_indices = @transform_2, window_bounds = array<i64: 1, 46, 46, 128>}, {transform_indices = @transform_3, window_bounds = array<i64: 1, 1, 128>}, {transform_indices = @transform_4, window_bounds = array<i64: 1, 1, 128>}]} {
    %c0 = arith.constant 0 : index
    %c0_0 = arith.constant 0 : index
    %0 = vector.load %arg2[%c0, %c0_0] : memref<1024x128xbf16, #tpu.memory_space<vmem>>, vector<1024x128xbf16>
    %cst = arith.constant 0.000000e+00 : f32
    %1 = vector.broadcast %cst : f32 to vector<1x128xf32>
    %cst_1 = arith.constant 0.000000e+00 : f32
    %2 = vector.broadcast %cst_1 : f32 to vector<1x128xf32>
    %c0_i32 = arith.constant 0 : i32
    %c46_i32 = arith.constant 46 : i32
    %3 = arith.addi %c0_i32, %c46_i32 : i32
    %c1_i32 = arith.constant 1 : i32
    %4:2 = scf.for %arg6 = %c0_i32 to %3 step %c1_i32 iter_args(%arg7 = %1, %arg8 = %2) -> (vector<1x128xf32>, vector<1x128xf32>)  : i32 {
      %c0_9 = arith.constant 0 : index
      %11 = arith.index_cast %arg6 : i32 to index
      %c0_10 = arith.constant 0 : index
      %c0_11 = arith.constant 0 : index
      %12 = vector.load %arg1[%c0_9, %11, %c0_10, %c0_11] : memref<1x47x47x256xbf16, #tpu.memory_space<vmem>>, vector<1x2x47x256xbf16>
      %13 = vector.shape_cast %12 : vector<1x2x47x256xbf16> to vector<2x47x256xbf16>
      %14 = vector.extract_strided_slice %13 {offsets = [0, 0, 0], sizes = [1, 46, 256], strides = [1, 1, 1]} : vector<2x47x256xbf16> to vector<1x46x256xbf16>
      %15 = vector.shape_cast %14 : vector<1x46x256xbf16> to vector<46x256xbf16>
      %16 = vector.extract_strided_slice %13 {offsets = [0, 1, 0], sizes = [1, 46, 256], strides = [1, 1, 1]} : vector<2x47x256xbf16> to vector<1x46x256xbf16>
      %17 = vector.shape_cast %16 : vector<1x46x256xbf16> to vector<46x256xbf16>
      %18 = vector.extract_strided_slice %13 {offsets = [1, 0, 0], sizes = [1, 46, 256], strides = [1, 1, 1]} : vector<2x47x256xbf16> to vector<1x46x256xbf16>
      %19 = vector.shape_cast %18 : vector<1x46x256xbf16> to vector<46x256xbf16>
      %20 = vector.extract_strided_slice %13 {offsets = [1, 1, 0], sizes = [1, 46, 256], strides = [1, 1, 1]} : vector<2x47x256xbf16> to vector<1x46x256xbf16>
      %21 = vector.shape_cast %20 : vector<1x46x256xbf16> to vector<46x256xbf16>
      %22 = tpu.concatenate %15, %17, %19, %21 in 1 : vector<46x256xbf16>, vector<46x256xbf16>, vector<46x256xbf16>, vector<46x256xbf16> -> vector<46x1024xbf16>
      %cst_12 = arith.constant dense<0.000000e+00> : vector<46x128xf32>
      %23 = tpu.matmul %22, %0, %cst_12 {dimension_numbers = #tpu.dot_dimension_numbers<[1], [0], [0], [1], [0, 0, 1, 1], [], []>} : vector<46x1024xbf16>, vector<1024x128xbf16>, vector<46x128xf32> -> vector<46x128xf32>
      %24 = arith.truncf %23 : vector<46x128xf32> to vector<46x128xbf16>
      %25 = vector.shape_cast %24 : vector<46x128xbf16> to vector<1x46x128xbf16>
      %c0_13 = arith.constant 0 : index
      %26 = arith.index_cast %arg6 : i32 to index
      %c0_14 = arith.constant 0 : index
      %c0_15 = arith.constant 0 : index
      %27 = vector.load %arg3[%c0_13, %26, %c0_14, %c0_15] : memref<1x46x46x128xbf16, #tpu.memory_space<vmem>>, vector<1x1x46x128xbf16>
      %28 = vector.shape_cast %27 : vector<1x1x46x128xbf16> to vector<1x46x128xbf16>
      %29 = vector.shape_cast %25 : vector<1x46x128xbf16> to vector<1x1x46x128xbf16>
      tpu.vector_store %arg3[%c0_13, %26, %c0_14, %c0_15], %29 {strides = array<i32>} : memref<1x46x46x128xbf16, #tpu.memory_space<vmem>>, vector<1x1x46x128xbf16>,
      %cst_16 = arith.constant dense<0.000000e+00> : vector<128xf32>
      %30 = vector.multi_reduction <add>, %23, %cst_16 [0] : vector<46x128xf32> to vector<128xf32>
      %31 = vector.shape_cast %30 : vector<128xf32> to vector<1x128xf32>
      %32 = arith.addf %arg7, %31 : vector<1x128xf32>
      %33 = arith.mulf %23, %23 : vector<46x128xf32>
      %cst_17 = arith.constant dense<0.000000e+00> : vector<128xf32>
      %34 = vector.multi_reduction <add>, %33, %cst_17 [0] : vector<46x128xf32> to vector<128xf32>
      %35 = vector.shape_cast %34 : vector<128xf32> to vector<1x128xf32>
      %36 = arith.addf %arg8, %35 : vector<1x128xf32>
      scf.yield %32, %36 : vector<1x128xf32>, vector<1x128xf32>
    }
    %c46_i32_2 = arith.constant 46 : i32
    %c0_3 = arith.constant 0 : index
    %c0_4 = arith.constant 0 : index
    %c0_5 = arith.constant 0 : index
    %5 = vector.load %arg4[%c0_3, %c0_4, %c0_5] : memref<1x1x128xf32, #tpu.memory_space<vmem>>, vector<1x1x128xf32>
    %6 = vector.shape_cast %5 : vector<1x1x128xf32> to vector<1x128xf32>
    %7 = vector.shape_cast %4#0 : vector<1x128xf32> to vector<1x1x128xf32>
    tpu.vector_store %arg4[%c0_3, %c0_4, %c0_5], %7 {strides = array<i32>} : memref<1x1x128xf32, #tpu.memory_space<vmem>>, vector<1x1x128xf32>,
    %c0_6 = arith.constant 0 : index
    %c0_7 = arith.constant 0 : index
    %c0_8 = arith.constant 0 : index
    %8 = vector.load %arg5[%c0_6, %c0_7, %c0_8] : memref<1x1x128xf32, #tpu.memory_space<vmem>>, vector<1x1x128xf32>
    %9 = vector.shape_cast %8 : vector<1x1x128xf32> to vector<1x128xf32>
    %10 = vector.shape_cast %4#1 : vector<1x128xf32> to vector<1x1x128xf32>
    tpu.vector_store %arg5[%c0_6, %c0_7, %c0_8], %10 {strides = array<i32>} : memref<1x1x128xf32, #tpu.memory_space<vmem>>, vector<1x1x128xf32>,
    return
  }
  func.func @transform_0(%arg0: i32) -> (i32, i32, i32, i32) {
    %c0_i32 = arith.constant 0 : i32
    %c0_i32_0 = arith.constant 0 : i32
    %c0_i32_1 = arith.constant 0 : i32
    %c0_i32_2 = arith.constant 0 : i32
    return %arg0, %c0_i32, %c0_i32_0, %c0_i32_1 : i32, i32, i32, i32
  }
  func.func @transform_1(%arg0: i32) -> (i32, i32) {
    %c0_i32 = arith.constant 0 : i32
    %c0_i32_0 = arith.constant 0 : i32
    %c0_i32_1 = arith.constant 0 : i32
    return %c0_i32, %c0_i32_0 : i32, i32
  }
  func.func @transform_2(%arg0: i32) -> (i32, i32, i32, i32) {
    %c0_i32 = arith.constant 0 : i32
    %c0_i32_0 = arith.constant 0 : i32
    %c0_i32_1 = arith.constant 0 : i32
    %c0_i32_2 = arith.constant 0 : i32
    return %arg0, %c0_i32, %c0_i32_0, %c0_i32_1 : i32, i32, i32, i32
  }
  func.func @transform_3(%arg0: i32) -> (i32, i32, i32) {
    %c0_i32 = arith.constant 0 : i32
    %c0_i32_0 = arith.constant 0 : i32
    %c0_i32_1 = arith.constant 0 : i32
    return %arg0, %c0_i32, %c0_i32_0 : i32, i32, i32
  }
  func.func @transform_4(%arg0: i32) -> (i32, i32, i32) {
    %c0_i32 = arith.constant 0 : i32
    %c0_i32_0 = arith.constant 0 : i32
    %c0_i32_1 = arith.constant 0 : i32
    return %arg0, %c0_i32, %c0_i32_0 : i32, i32, i32
  }
}

module attributes {stable_mosaic.version = 11 : i64} {
  func.func @_conv_s2d_kernel(%arg0: i32, %arg1: memref<1x23x23x512xbf16, #tpu.memory_space<vmem>>, %arg2: memref<2048x256xbf16, #tpu.memory_space<vmem>>, %arg3: memref<1x22x22x256xbf16, #tpu.memory_space<vmem>>, %arg4: memref<1x1x256xf32, #tpu.memory_space<vmem>>, %arg5: memref<1x1x256xf32, #tpu.memory_space<vmem>>) attributes {dimension_semantics = [#tpu.dimension_semantics<parallel>], iteration_bounds = array<i64: 2>, scalar_prefetch = 0 : i64, scratch_operands = 0 : i64, tpu.core_type = #tpu.core_type<tc>, window_params = [{transform_indices = @transform_0, window_bounds = array<i64: 1, 23, 23, 512>}, {pipeline_mode = #tpu.pipeline_mode<synchronous>, transform_indices = @transform_1, window_bounds = array<i64: 2048, 256>}, {transform_indices = @transform_2, window_bounds = array<i64: 1, 22, 22, 256>}, {transform_indices = @transform_3, window_bounds = array<i64: 1, 1, 256>}, {transform_indices = @transform_4, window_bounds = array<i64: 1, 1, 256>}]} {
    %c0 = arith.constant 0 : index
    %c0_0 = arith.constant 0 : index
    %0 = vector.load %arg2[%c0, %c0_0] : memref<2048x256xbf16, #tpu.memory_space<vmem>>, vector<2048x256xbf16>
    %cst = arith.constant 0.000000e+00 : f32
    %1 = vector.broadcast %cst : f32 to vector<1x256xf32>
    %cst_1 = arith.constant 0.000000e+00 : f32
    %2 = vector.broadcast %cst_1 : f32 to vector<1x256xf32>
    %c0_i32 = arith.constant 0 : i32
    %c22_i32 = arith.constant 22 : i32
    %3 = arith.addi %c0_i32, %c22_i32 : i32
    %c1_i32 = arith.constant 1 : i32
    %4:2 = scf.for %arg6 = %c0_i32 to %3 step %c1_i32 iter_args(%arg7 = %1, %arg8 = %2) -> (vector<1x256xf32>, vector<1x256xf32>)  : i32 {
      %c0_9 = arith.constant 0 : index
      %11 = arith.index_cast %arg6 : i32 to index
      %c0_10 = arith.constant 0 : index
      %c0_11 = arith.constant 0 : index
      %12 = vector.load %arg1[%c0_9, %11, %c0_10, %c0_11] : memref<1x23x23x512xbf16, #tpu.memory_space<vmem>>, vector<1x2x23x512xbf16>
      %13 = vector.shape_cast %12 : vector<1x2x23x512xbf16> to vector<2x23x512xbf16>
      %14 = vector.extract_strided_slice %13 {offsets = [0, 0, 0], sizes = [1, 22, 512], strides = [1, 1, 1]} : vector<2x23x512xbf16> to vector<1x22x512xbf16>
      %15 = vector.shape_cast %14 : vector<1x22x512xbf16> to vector<22x512xbf16>
      %16 = vector.extract_strided_slice %13 {offsets = [0, 1, 0], sizes = [1, 22, 512], strides = [1, 1, 1]} : vector<2x23x512xbf16> to vector<1x22x512xbf16>
      %17 = vector.shape_cast %16 : vector<1x22x512xbf16> to vector<22x512xbf16>
      %18 = vector.extract_strided_slice %13 {offsets = [1, 0, 0], sizes = [1, 22, 512], strides = [1, 1, 1]} : vector<2x23x512xbf16> to vector<1x22x512xbf16>
      %19 = vector.shape_cast %18 : vector<1x22x512xbf16> to vector<22x512xbf16>
      %20 = vector.extract_strided_slice %13 {offsets = [1, 1, 0], sizes = [1, 22, 512], strides = [1, 1, 1]} : vector<2x23x512xbf16> to vector<1x22x512xbf16>
      %21 = vector.shape_cast %20 : vector<1x22x512xbf16> to vector<22x512xbf16>
      %22 = tpu.concatenate %15, %17, %19, %21 in 1 : vector<22x512xbf16>, vector<22x512xbf16>, vector<22x512xbf16>, vector<22x512xbf16> -> vector<22x2048xbf16>
      %cst_12 = arith.constant dense<0.000000e+00> : vector<22x256xf32>
      %23 = tpu.matmul %22, %0, %cst_12 {dimension_numbers = #tpu.dot_dimension_numbers<[1], [0], [0], [1], [0, 0, 1, 1], [], []>} : vector<22x2048xbf16>, vector<2048x256xbf16>, vector<22x256xf32> -> vector<22x256xf32>
      %24 = arith.truncf %23 : vector<22x256xf32> to vector<22x256xbf16>
      %25 = vector.shape_cast %24 : vector<22x256xbf16> to vector<1x22x256xbf16>
      %c0_13 = arith.constant 0 : index
      %26 = arith.index_cast %arg6 : i32 to index
      %c0_14 = arith.constant 0 : index
      %c0_15 = arith.constant 0 : index
      %27 = vector.load %arg3[%c0_13, %26, %c0_14, %c0_15] : memref<1x22x22x256xbf16, #tpu.memory_space<vmem>>, vector<1x1x22x256xbf16>
      %28 = vector.shape_cast %27 : vector<1x1x22x256xbf16> to vector<1x22x256xbf16>
      %29 = vector.shape_cast %25 : vector<1x22x256xbf16> to vector<1x1x22x256xbf16>
      tpu.vector_store %arg3[%c0_13, %26, %c0_14, %c0_15], %29 {strides = array<i32>} : memref<1x22x22x256xbf16, #tpu.memory_space<vmem>>, vector<1x1x22x256xbf16>,
      %cst_16 = arith.constant dense<0.000000e+00> : vector<256xf32>
      %30 = vector.multi_reduction <add>, %23, %cst_16 [0] : vector<22x256xf32> to vector<256xf32>
      %31 = vector.shape_cast %30 : vector<256xf32> to vector<1x256xf32>
      %32 = arith.addf %arg7, %31 : vector<1x256xf32>
      %33 = arith.mulf %23, %23 : vector<22x256xf32>
      %cst_17 = arith.constant dense<0.000000e+00> : vector<256xf32>
      %34 = vector.multi_reduction <add>, %33, %cst_17 [0] : vector<22x256xf32> to vector<256xf32>
      %35 = vector.shape_cast %34 : vector<256xf32> to vector<1x256xf32>
      %36 = arith.addf %arg8, %35 : vector<1x256xf32>
      scf.yield %32, %36 : vector<1x256xf32>, vector<1x256xf32>
    }
    %c22_i32_2 = arith.constant 22 : i32
    %c0_3 = arith.constant 0 : index
    %c0_4 = arith.constant 0 : index
    %c0_5 = arith.constant 0 : index
    %5 = vector.load %arg4[%c0_3, %c0_4, %c0_5] : memref<1x1x256xf32, #tpu.memory_space<vmem>>, vector<1x1x256xf32>
    %6 = vector.shape_cast %5 : vector<1x1x256xf32> to vector<1x256xf32>
    %7 = vector.shape_cast %4#0 : vector<1x256xf32> to vector<1x1x256xf32>
    tpu.vector_store %arg4[%c0_3, %c0_4, %c0_5], %7 {strides = array<i32>} : memref<1x1x256xf32, #tpu.memory_space<vmem>>, vector<1x1x256xf32>,
    %c0_6 = arith.constant 0 : index
    %c0_7 = arith.constant 0 : index
    %c0_8 = arith.constant 0 : index
    %8 = vector.load %arg5[%c0_6, %c0_7, %c0_8] : memref<1x1x256xf32, #tpu.memory_space<vmem>>, vector<1x1x256xf32>
    %9 = vector.shape_cast %8 : vector<1x1x256xf32> to vector<1x256xf32>
    %10 = vector.shape_cast %4#1 : vector<1x256xf32> to vector<1x1x256xf32>
    tpu.vector_store %arg5[%c0_6, %c0_7, %c0_8], %10 {strides = array<i32>} : memref<1x1x256xf32, #tpu.memory_space<vmem>>, vector<1x1x256xf32>,
    return
  }
  func.func @transform_0(%arg0: i32) -> (i32, i32, i32, i32) {
    %c0_i32 = arith.constant 0 : i32
    %c0_i32_0 = arith.constant 0 : i32
    %c0_i32_1 = arith.constant 0 : i32
    %c0_i32_2 = arith.constant 0 : i32
    return %arg0, %c0_i32, %c0_i32_0, %c0_i32_1 : i32, i32, i32, i32
  }
  func.func @transform_1(%arg0: i32) -> (i32, i32) {
    %c0_i32 = arith.constant 0 : i32
    %c0_i32_0 = arith.constant 0 : i32
    %c0_i32_1 = arith.constant 0 : i32
    return %c0_i32, %c0_i32_0 : i32, i32
  }
  func.func @transform_2(%arg0: i32) -> (i32, i32, i32, i32) {
    %c0_i32 = arith.constant 0 : i32
    %c0_i32_0 = arith.constant 0 : i32
    %c0_i32_1 = arith.constant 0 : i32
    %c0_i32_2 = arith.constant 0 : i32
    return %arg0, %c0_i32, %c0_i32_0, %c0_i32_1 : i32, i32, i32, i32
  }
  func.func @transform_3(%arg0: i32) -> (i32, i32, i32) {
    %c0_i32 = arith.constant 0 : i32
    %c0_i32_0 = arith.constant 0 : i32
    %c0_i32_1 = arith.constant 0 : i32
    return %arg0, %c0_i32, %c0_i32_0 : i32, i32, i32
  }
  func.func @transform_4(%arg0: i32) -> (i32, i32, i32) {
    %c0_i32 = arith.constant 0 : i32
    %c0_i32_0 = arith.constant 0 : i32
    %c0_i32_1 = arith.constant 0 : i32
    return %arg0, %c0_i32, %c0_i32_0 : i32, i32, i32
  }
}

</mosaic_0001>

<llo_original>
// kernel: _lambda_.2
$region0: #{_lambda_.2}
  #allocation0 [shape = 'u32[]', space=smem, size = 0x4, offset = 0x4, fixed_abs, tag = 'smem constant byte address 0x4 - core index']
  #allocation1 [shape = 'u32[144,128]{1,0:T(1,128)}', space=vmem, size = 0x12000, scoped, tag = 'internal scratch']
  %s0 = inlined_call_operand.vmem [shape: bf16[2,47,47,256], index: 0, kind: input, shape index: {}]
  %s1 = inlined_call_operand.vmem [shape: bf16[1024,128], index: 1, kind: input, shape index: {}]
  %s2 = inlined_call_operand.vmem [shape: bf16[2,46,46,128], index: 2, kind: output, shape index: {0}]
  %s3 = inlined_call_operand.vmem [shape: f32[2,1,128], index: 3, kind: output, shape index: {1}]
  %s4 = inlined_call_operand.vmem [shape: f32[2,1,128], index: 4, kind: output, shape index: {2}]
  %5 = xla_tuple %s2, %s3, %s4
  %s6 = sld [smem:[#allocation0]]
  $region64: #{_lambda_.2} parent=0
    _
  %s8 = ssub.s32 1, %s6
  %s9 = scalar_select 0, %s8, %s6
  loop: start=0, step=1, limit=4
  $region2: #{_lambda_.2} parent=0 // loop_pre_header
    _
  $region3: #{_lambda_.2} parent=0 // loop_header
    %s11 = sphi 0, %s15
    %p12 = scmp.ge.s32.totalorder %s11, 4
    %s21 = sphi 0, %s23
    %s24 = sphi 0, %s21
    %s25 = sphi 0, %s24
    %s41 = sphi 0, %s25
    %s45 = sphi 0, %s45
    %s47 = sphi 0, %s45
    %s48 = sphi 0, %s47
    %s62 = sphi 0, %s48
    %s68 = sphi 0, %s70
    %s71 = sphi 0, %s68
    %s72 = sphi 0, %s71
    %s88 = sphi 0, %s72
    %s94 = sphi 0, %s96
    %s97 = sphi 0, %s94
    %s98 = sphi 0, %s97
    %s114 = sphi 0, %s98
    %s120 = sphi 0, %s122
    %s123 = sphi 0, %s120
    %s124 = sphi 0, %s123
    %s140 = sphi 0, %s124
  $region4: #{_lambda_.2} parent=0 // loop_header_branch
    %14 = sbr.rel (%p12) target = $region8
  $region5: #{_lambda_.2} parent=0 // loop_body
    %s16 = ssub.s32 %s11, 1
    %s17 = ssub.s32 %s11, 2
    %s18 = sadd.s32 %s11, 1
    %s19 = ssub.s32 %s11, %s18
    %p20 = scmp.eq.s32.totalorder %s19, 0
    %s22 = sadd.s32 %s21, 1
    %s23 = scalar_select %p20, %s21, %s22
    %p26 = pneg %p20
    %p27 = scmp.eq.s32.totalorder %s11, 1
    %p28 = por %p26, %p27
    %p29 = scmp.ne.s32.totalorder %s21, %s24
    %p30 = scmp.eq.s32.totalorder %s11, 0
    %p31 = por %p29, %p30
    %p32 = scmp.ne.s32.totalorder %s21, %s24
    %p33 = scmp.eq.s32.totalorder %s16, 1
    %p34 = por %p32, %p33
    %p35 = scmp.ne.s32.totalorder %s24, %s25
    %p36 = scmp.eq.s32.totalorder %s16, 0
    %p37 = por %p35, %p36
    %p38 = scmp.ne.s32.totalorder %s24, %s25
    %p39 = scmp.eq.s32.totalorder %s17, 1
    %p40 = por %p38, %p39
    %p42 = scmp.ne.s32.totalorder %s25, %s41
    %p43 = scmp.eq.s32.totalorder %s17, 0
    %p44 = por %p42, %p43
    %s46 = sadd.s32 %s45, 1
    %p49 = scmp.eq.s32.totalorder %s11, 1
    %p50 = scmp.ne.s32.totalorder %s45, %s47
    %p51 = scmp.eq.s32.totalorder %s11, 0
    %p52 = por %p50, %p51
    %p53 = scmp.ne.s32.totalorder %s45, %s47
    %p54 = scmp.eq.s32.totalorder %s16, 1
    %p55 = por %p53, %p54
    %p56 = scmp.ne.s32.totalorder %s47, %s48
    %p57 = scmp.eq.s32.totalorder %s16, 0
    %p58 = por %p56, %p57
    %p59 = scmp.ne.s32.totalorder %s47, %s48
    %p60 = scmp.eq.s32.totalorder %s17, 1
    %p61 = por %p59, %p60
    %p63 = scmp.ne.s32.totalorder %s48, %s62
    %p64 = scmp.eq.s32.totalorder %s17, 0
    %p65 = por %p63, %p64
    %s66 = ssub.s32 %s11, %s18
    %p67 = scmp.eq.s32.totalorder %s66, 0
    %s69 = sadd.s32 %s68, 1
    %s70 = scalar_select %p67, %s68, %s69
    %p73 = pneg %p67
    %p74 = scmp.eq.s32.totalorder %s11, 1
    %p75 = por %p73, %p74
    %p76 = scmp.ne.s32.totalorder %s68, %s71
    %p77 = scmp.eq.s32.totalorder %s11, 0
    %p78 = por %p76, %p77
    %p79 = scmp.ne.s32.totalorder %s68, %s71
    %p80 = scmp.eq.s32.totalorder %s16, 1
    %p81 = por %p79, %p80
    %p82 = scmp.ne.s32.totalorder %s71, %s72
    %p83 = scmp.eq.s32.totalorder %s16, 0
    %p84 = por %p82, %p83
    %p85 = scmp.ne.s32.totalorder %s71, %s72
    %p86 = scmp.eq.s32.totalorder %s17, 1
    %p87 = por %p85, %p86
    %p89 = scmp.ne.s32.totalorder %s72, %s88
    %p90 = scmp.eq.s32.totalorder %s17, 0
    %p91 = por %p89, %p90
    %s92 = ssub.s32 %s11, %s18
    %p93 = scmp.eq.s32.totalorder %s92, 0
    %s95 = sadd.s32 %s94, 1
    %s96 = scalar_select %p93, %s94, %s95
    %p99 = pneg %p93
    %p100 = scmp.eq.s32.totalorder %s11, 1
    %p101 = por %p99, %p100
    %p102 = scmp.ne.s32.totalorder %s94, %s97
    %p103 = scmp.eq.s32.totalorder %s11, 0
    %p104 = por %p102, %p103
    %p105 = scmp.ne.s32.totalorder %s94, %s97
    %p106 = scmp.eq.s32.totalorder %s16, 1
    %p107 = por %p105, %p106
    %p108 = scmp.ne.s32.totalorder %s97, %s98
    %p109 = scmp.eq.s32.totalorder %s16, 0
    %p110 = por %p108, %p109
    %p111 = scmp.ne.s32.totalorder %s97, %s98
    %p112 = scmp.eq.s32.totalorder %s17, 1
    %p113 = por %p111, %p112
    %p115 = scmp.ne.s32.totalorder %s98, %s114
    %p116 = scmp.eq.s32.totalorder %s17, 0
    %p117 = por %p115, %p116
    %s118 = ssub.s32 %s11, %s18
    %p119 = scmp.eq.s32.totalorder %s118, 0
    %s121 = sadd.s32 %s120, 1
    %s122 = scalar_select %p119, %s120, %s121
    %p125 = pneg %p119
    %p126 = scmp.eq.s32.totalorder %s11, 1
    %p127 = por %p125, %p126
    %p128 = scmp.ne.s32.totalorder %s120, %s123
    %p129 = scmp.eq.s32.totalorder %s11, 0
    %p130 = por %p128, %p129
    %p131 = scmp.ne.s32.totalorder %s120, %s123
    %p132 = scmp.eq.s32.totalorder %s16, 1
    %p133 = por %p131, %p132
    %p134 = scmp.ne.s32.totalorder %s123, %s124
    %p135 = scmp.eq.s32.totalorder %s16, 0
    %p136 = por %p134, %p135
    %p137 = scmp.ne.s32.totalorder %s123, %s124
    %p138 = scmp.eq.s32.totalorder %s17, 1
    %p139 = por %p137, %p138
    %p141 = scmp.ne.s32.totalorder %s124, %s140
    %p142 = scmp.eq.s32.totalorder %s17, 0
    %p143 = por %p141, %p142
    %p144 = scmp.le.s32.totalorder 1, %s11
    %p145 = scmp.lt.s32.totalorder %s11, 3
    %p146 = pnand %p144, %p145
    %p147 = pneg %p146
    // Predicated region
    $region9: #{_lambda_.2} parent=5 // pred_check
      _
    $region10: #{_lambda_.2} parent=5 // pred_check_branch
      %149 = sbr.rel (%p146) target = $region12
    $region11: #{_lambda_.2} parent=5 // pred_region
      %s150 = ssub.s32 %s11, 1
      // Predicated region
      $region13: #{_lambda_.2} parent=11 // pred_check
        %p151 = pneg %p58
      $region14: #{_lambda_.2} parent=11 // pred_check_branch
        %153 = sbr.rel (%p151) target = $region16
      $region15: #{_lambda_.2} parent=11 // pred_region
        _
      $region16: #{_lambda_.2} parent=11 // pred_fallthru
        _
    $region12: #{_lambda_.2} parent=5 // pred_fallthru
      _
    %p154 = scmp.lt.s32.totalorder %s11, 2
    // Predicated region
    $region17: #{_lambda_.2} parent=5 // pred_check
      %p155 = pneg %p154
    $region18: #{_lambda_.2} parent=5 // pred_check_branch
      %157 = sbr.rel (%p155) target = $region20
    $region19: #{_lambda_.2} parent=5 // pred_region
      // Predicated region
      $region21: #{_lambda_.2} parent=19 // pred_check
        %p158 = pneg %p31
      $region22: #{_lambda_.2} parent=19 // pred_check_branch
        %160 = sbr.rel (%p158) target = $region24
      $region23: #{_lambda_.2} parent=19 // pred_region
        %p161 = scmp.lt.s32.totalorder %s11, 1
        %s162 = scalar_select %p161, %s11, 1
        %s163 = smul.addr %s162, 564
        %s164 = smul.addr %s163, 4
        %s165 = scalar_lea.vmem %s0, %s164
      $region24: #{_lambda_.2} parent=19 // pred_fallthru
        _
    $region20: #{_lambda_.2} parent=5 // pred_fallthru
      _
    %p166 = scmp.le.s32.totalorder 1, %s11
    %p167 = scmp.lt.s32.totalorder %s11, 3
    %p168 = pnand %p166, %p167
    %p169 = pneg %p168
    // Predicated region
    $region25: #{_lambda_.2} parent=5 // pred_check
      _
    $region26: #{_lambda_.2} parent=5 // pred_check_branch
      %171 = sbr.rel (%p168) target = $region28
    $region27: #{_lambda_.2} parent=5 // pred_region
      %s172 = ssub.s32 %s11, 1
      %p173 = scmp.lt.s32.totalorder %s16, 1
      %s174 = scalar_select %p173, %s16, 1
      %s175 = smul.addr %s174, 564
      %s176 = smul.addr %s175, 4
      %s177 = scalar_lea.vmem %s0, %s176
      %p178 = pneg %p37
      %p179 = pneg %p34
      %p180 = pneg %p58
      %p181 = pneg %p55
      %p182 = pneg %p84
      %p183 = pneg %p81
      %p184 = scmp.lt.s32.totalorder %s16, 1
      %s185 = scalar_select %p184, %s16, 1
      %s186 = smul.addr %s185, 276
      %s187 = smul.addr %s186, 4
      %s188 = scalar_lea.vmem %s2, %s187
      %p189 = pneg %p110
      %p190 = pneg %p107
      %p191 = scmp.lt.s32.totalorder %s16, 1
      %s192 = scalar_select %p191, %s16, 1
      %s193 = scalar_lea.vmem %s3, %s192
      %p194 = pneg %p136
      %p195 = pneg %p133
      %p196 = scmp.lt.s32.totalorder %s16, 1
      %s197 = scalar_select %p196, %s16, 1
      %s198 = scalar_lea.vmem %s4, %s197
      %p199 = scmp.lt.s32.totalorder %s16, 1
      %s200 = scalar_select %p199, %s16, 1
      %s201 = smul.addr %s200, 564
      %s202 = smul.addr %s201, 4
      %s203 = scalar_lea.vmem %s0, %s202
      %p204 = scmp.lt.s32.totalorder %s16, 1
      %s205 = scalar_select %p204, %s16, 1
      %s206 = smul.addr %s205, 276
      %s207 = smul.addr %s206, 4
      %s208 = scalar_lea.vmem %s2, %s207
      %p209 = scmp.lt.s32.totalorder %s16, 1
      %s210 = scalar_select %p209, %s16, 1
      %s211 = scalar_lea.vmem %s3, %s210
      %p212 = scmp.lt.s32.totalorder %s16, 1
      %s213 = scalar_select %p212, %s16, 1
      %s214 = scalar_lea.vmem %s4, %s213
      %v216 = vld [vmem:[%s1] sm:$0xf]
      %v217 = vld [vmem:[%s1 + $0x4] sm:$0xf]
      %v218 = vld [vmem:[%s1 + $0x8] sm:$0xf]
      %v219 = vld [vmem:[%s1 + $0xc] sm:$0xf]
      %v220 = vld [vmem:[%s1 + $0x10] sm:$0xf]
      %v221 = vld [vmem:[%s1 + $0x14] sm:$0xf]
      %v222 = vld [vmem:[%s1 + $0x18] sm:$0xf]
      %v223 = vld [vmem:[%s1 + $0x1c] sm:$0xf]
      %v224 = vld [vmem:[%s1 + $0x20] sm:$0xf]
      %v225 = vld [vmem:[%s1 + $0x24] sm:$0xf]
      %v226 = vld [vmem:[%s1 + $0x28] sm:$0xf]
      %v227 = vld [vmem:[%s1 + $0x2c] sm:$0xf]
      %v228 = vld [vmem:[%s1 + $0x30] sm:$0xf]
      %v229 = vld [vmem:[%s1 + $0x34] sm:$0xf]
      %v230 = vld [vmem:[%s1 + $0x38] sm:$0xf]
      %v231 = vld [vmem:[%s1 + $0x3c] sm:$0xf]
      %v232 = vld [vmem:[%s1 + $0x40] sm:$0xf]
      %v233 = vld [vmem:[%s1 + $0x44] sm:$0xf]
      %v234 = vld [vmem:[%s1 + $0x48] sm:$0xf]
      %v235 = vld [vmem:[%s1 + $0x4c] sm:$0xf]
      %v236 = vld [vmem:[%s1 + $0x50] sm:$0xf]
      %v237 = vld [vmem:[%s1 + $0x54] sm:$0xf]
      %v238 = vld [vmem:[%s1 + $0x58] sm:$0xf]
      %v239 = vld [vmem:[%s1 + $0x5c] sm:$0xf]
      %v240 = vld [vmem:[%s1 + $0x60] sm:$0xf]
      %v241 = vld [vmem:[%s1 + $0x64] sm:$0xf]
      %v242 = vld [vmem:[%s1 + $0x68] sm:$0xf]
      %v243 = vld [vmem:[%s1 + $0x6c] sm:$0xf]
      %v244 = vld [vmem:[%s1 + $0x70] sm:$0xf]
      %v245 = vld [vmem:[%s1 + $0x74] sm:$0xf]
      %v246 = vld [vmem:[%s1 + $0x78] sm:$0xf]
      %v247 = vld [vmem:[%s1 + $0x7c] sm:$0xf]
      %v248 = vld [vmem:[%s1 + $0x80] sm:$0xf]
      %v249 = vld [vmem:[%s1 + $0x84] sm:$0xf]
      %v250 = vld [vmem:[%s1 + $0x88] sm:$0xf]
      %v251 = vld [vmem:[%s1 + $0x8c] sm:$0xf]
      %v252 = vld [vmem:[%s1 + $0x90] sm:$0xf]
      %v253 = vld [vmem:[%s1 + $0x94] sm:$0xf]
      %v254 = vld [vmem:[%s1 + $0x98] sm:$0xf]
      %v255 = vld [vmem:[%s1 + $0x9c] sm:$0xf]
      %v256 = vld [vmem:[%s1 + $0xa0] sm:$0xf]
      %v257 = vld [vmem:[%s1 + $0xa4] sm:$0xf]
      %v258 = vld [vmem:[%s1 + $0xa8] sm:$0xf]
      %v259 = vld [vmem:[%s1 + $0xac] sm:$0xf]
      %v260 = vld [vmem:[%s1 + $0xb0] sm:$0xf]
      %v261 = vld [vmem:[%s1 + $0xb4] sm:$0xf]
      %v262 = vld [vmem:[%s1 + $0xb8] sm:$0xf]
      %v263 = vld [vmem:[%s1 + $0xbc] sm:$0xf]
      %v264 = vld [vmem:[%s1 + $0xc0] sm:$0xf]
      %v265 = vld [vmem:[%s1 + $0xc4] sm:$0xf]
      %v266 = vld [vmem:[%s1 + $0xc8] sm:$0xf]
      %v267 = vld [vmem:[%s1 + $0xcc] sm:$0xf]
      %v268 = vld [vmem:[%s1 + $0xd0] sm:$0xf]
      %v269 = vld [vmem:[%s1 + $0xd4] sm:$0xf]
      %v270 = vld [vmem:[%s1 + $0xd8] sm:$0xf]
      %v271 = vld [vmem:[%s1 + $0xdc] sm:$0xf]
      %v272 = vld [vmem:[%s1 + $0xe0] sm:$0xf]
      %v273 = vld [vmem:[%s1 + $0xe4] sm:$0xf]
      %v274 = vld [vmem:[%s1 + $0xe8] sm:$0xf]
      %v275 = vld [vmem:[%s1 + $0xec] sm:$0xf]
      %v276 = vld [vmem:[%s1 + $0xf0] sm:$0xf]
      %v277 = vld [vmem:[%s1 + $0xf4] sm:$0xf]
      %v278 = vld [vmem:[%s1 + $0xf8] sm:$0xf]
      %v279 = vld [vmem:[%s1 + $0xfc] sm:$0xf]
      %v280 = vld [vmem:[%s1 + $0x100] sm:$0xf]
      %v281 = vld [vmem:[%s1 + $0x104] sm:$0xf]
      %v282 = vld [vmem:[%s1 + $0x108] sm:$0xf]
      %v283 = vld [vmem:[%s1 + $0x10c] sm:$0xf]
      %v284 = vld [vmem:[%s1 + $0x110] sm:$0xf]
      %v285 = vld [vmem:[%s1 + $0x114] sm:$0xf]
      %v286 = vld [vmem:[%s1 + $0x118] sm:$0xf]
      %v287 = vld [vmem:[%s1 + $0x11c] sm:$0xf]
      %v288 = vld [vmem:[%s1 + $0x120] sm:$0xf]
      %v289 = vld [vmem:[%s1 + $0x124] sm:$0xf]
      %v290 = vld [vmem:[%s1 + $0x128] sm:$0xf]
      %v291 = vld [vmem:[%s1 + $0x12c] sm:$0xf]
      %v292 = vld [vmem:[%s1 + $0x130] sm:$0xf]
      %v293 = vld [vmem:[%s1 + $0x134] sm:$0xf]
      %v294 = vld [vmem:[%s1 + $0x138] sm:$0xf]
      %v295 = vld [vmem:[%s1 + $0x13c] sm:$0xf]
      %v296 = vld [vmem:[%s1 + $0x140] sm:$0xf]
      %v297 = vld [vmem:[%s1 + $0x144] sm:$0xf]
      %v298 = vld [vmem:[%s1 + $0x148] sm:$0xf]
      %v299 = vld [vmem:[%s1 + $0x14c] sm:$0xf]
      %v300 = vld [vmem:[%s1 + $0x150] sm:$0xf]
      %v301 = vld [vmem:[%s1 + $0x154] sm:$0xf]
      %v302 = vld [vmem:[%s1 + $0x158] sm:$0xf]
      %v303 = vld [vmem:[%s1 + $0x15c] sm:$0xf]
      %v304 = vld [vmem:[%s1 + $0x160] sm:$0xf]
      %v305 = vld [vmem:[%s1 + $0x164] sm:$0xf]
      %v306 = vld [vmem:[%s1 + $0x168] sm:$0xf]
      %v307 = vld [vmem:[%s1 + $0x16c] sm:$0xf]
      %v308 = vld [vmem:[%s1 + $0x170] sm:$0xf]
      %v309 = vld [vmem:[%s1 + $0x174] sm:$0xf]
      %v310 = vld [vmem:[%s1 + $0x178] sm:$0xf]
      %v311 = vld [vmem:[%s1 + $0x17c] sm:$0xf]
      %v312 = vld [vmem:[%s1 + $0x180] sm:$0xf]
      %v313 = vld [vmem:[%s1 + $0x184] sm:$0xf]
      %v314 = vld [vmem:[%s1 + $0x188] sm:$0xf]
      %v315 = vld [vmem:[%s1 + $0x18c] sm:$0xf]
      %v316 = vld [vmem:[%s1 + $0x190] sm:$0xf]
      %v317 = vld [vmem:[%s1 + $0x194] sm:$0xf]
      %v318 = vld [vmem:[%s1 + $0x198] sm:$0xf]
      %v319 = vld [vmem:[%s1 + $0x19c] sm:$0xf]
      %v320 = vld [vmem:[%s1 + $0x1a0] sm:$0xf]
      %v321 = vld [vmem:[%s1 + $0x1a4] sm:$0xf]
      %v322 = vld [vmem:[%s1 + $0x1a8] sm:$0xf]
      %v323 = vld [vmem:[%s1 + $0x1ac] sm:$0xf]
      %v324 = vld [vmem:[%s1 + $0x1b0] sm:$0xf]
      %v325 = vld [vmem:[%s1 + $0x1b4] sm:$0xf]
      %v326 = vld [vmem:[%s1 + $0x1b8] sm:$0xf]
      %v327 = vld [vmem:[%s1 + $0x1bc] sm:$0xf]
      %v328 = vld [vmem:[%s1 + $0x1c0] sm:$0xf]
      %v329 = vld [vmem:[%s1 + $0x1c4] sm:$0xf]
      %v330 = vld [vmem:[%s1 + $0x1c8] sm:$0xf]
      %v331 = vld [vmem:[%s1 + $0x1cc] sm:$0xf]
      %v332 = vld [vmem:[%s1 + $0x1d0] sm:$0xf]
      %v333 = vld [vmem:[%s1 + $0x1d4] sm:$0xf]
      %v334 = vld [vmem:[%s1 + $0x1d8] sm:$0xf]
      %v335 = vld [vmem:[%s1 + $0x1dc] sm:$0xf]
      %v336 = vld [vmem:[%s1 + $0x1e0] sm:$0xf]
      %v337 = vld [vmem:[%s1 + $0x1e4] sm:$0xf]
      %v338 = vld [vmem:[%s1 + $0x1e8] sm:$0xf]
      %v339 = vld [vmem:[%s1 + $0x1ec] sm:$0xf]
      %v340 = vld [vmem:[%s1 + $0x1f0] sm:$0xf]
      %v341 = vld [vmem:[%s1 + $0x1f4] sm:$0xf]
      %v342 = vld [vmem:[%s1 + $0x1f8] sm:$0xf]
      %v343 = vld [vmem:[%s1 + $0x1fc] sm:$0xf]
      loop: start=0, step=1, limit=46
      $region29: #{_lambda_.2} parent=27 // loop_pre_header
        _
      $region30: #{_lambda_.2} parent=27 // loop_header
        %s345 = sphi 0, %s349
        %p346 = scmp.ge.s32.totalorder %s345, 46
        %v350 = vphi 0.0, %v1190
        %v351 = vphi 0.0, %v1209
      $region31: #{_lambda_.2} parent=27 // loop_header_branch
        %348 = sbr.rel (%p346) target = $region35
      $region32: #{_lambda_.2} parent=27 // loop_body
        %s352 = smul.u32 %s345, 12
        %s353 = smul.addr %s352, 4
        %s354 = scalar_lea.vmem %s203, %s353
        %v355 = vld [vmem:[%s354] sm:$0xff]
        %v356 = vld [vmem:[%s354 + $0x8] sm:$0xff]
        %v357 = vld [vmem:[%s354 + $0x10] sm:$0xff]
        %v358 = vld [vmem:[%s354 + $0x18] sm:$0xff]
        %v359 = vld [vmem:[%s354 + $0x20] sm:$0xff]
        %v360 = vld [vmem:[%s354 + $0x28] sm:$0xff]
        %v361 = vld [vmem:[%s354 + $0x30] sm:$0xff]
        %v362 = vld [vmem:[%s354 + $0x38] sm:$0xff]
        %v363 = vld [vmem:[%s354 + $0x40] sm:$0xff]
        %v364 = vld [vmem:[%s354 + $0x48] sm:$0xff]
        %v365 = vld [vmem:[%s354 + $0x50] sm:$0xff]
        %v366 = vld [vmem:[%s354 + $0x58] sm:$0xff]
        %v373 = vunpack.c.l.b16 %v355
        %v374 = vunpack.c.h.b16 %v355
        %v375 = vunpack.c.l.b16 %v356
        %v376 = vunpack.c.h.b16 %v356
        %v377 = vunpack.c.l.b16 %v357
        %v378 = vunpack.c.h.b16 %v357
        %v379 = vunpack.c.l.b16 %v358
        %v380 = vunpack.c.h.b16 %v358
        %v381 = vunpack.c.l.b16 %v359
        %v382 = vunpack.c.h.b16 %v359
        %v383 = vunpack.c.l.b16 %v360
        %v384 = vunpack.c.h.b16 %v360
        %v385 = vpack.c.b16 %v375, %v373
        %v386 = vpack.c.b16 %v376, %v374
        %v387 = vpack.c.b16 %v379, %v377
        %v388 = vpack.c.b16 %v380, %v378
        %v389 = vpack.c.b16 %v383, %v381
        %v390 = vpack.c.b16 %v384, %v382
        %vm397 = vsmask.f32 7424
        %v399 = vshrl.u32 %v385, 16
        %v401 = vshll.u32 %v385, 16
        %v403 = vrot.slane %v401, 1
        %v404 = vor.u32 %v399, %v403
        %v406 = vshll.u32 %v387, 16
        %v408 = vrot.slane %v406, 1
        %v409 = vsel %vm397, %v404, %v408
        %v411 = vshrl.u32 %v386, 16
        %v413 = vshll.u32 %v386, 16
        %v415 = vrot.slane %v413, 1
        %v416 = vor.u32 %v411, %v415
        %v418 = vshll.u32 %v388, 16
        %v420 = vrot.slane %v418, 1
        %v421 = vsel %vm397, %v416, %v420
        %v422 = vshrl.u32 %v387, 16
        %v424 = vor.u32 %v422, %v408
        %v426 = vshll.u32 %v389, 16
        %v428 = vrot.slane %v426, 1
        %v429 = vsel %vm397, %v424, %v428
        %v430 = vshrl.u32 %v388, 16
        %v432 = vor.u32 %v430, %v420
        %v434 = vshll.u32 %v390, 16
        %v436 = vrot.slane %v434, 1
        %v437 = vsel %vm397, %v432, %v436
        %v438 = vshrl.u32 %v389, 16
        %v440 = vor.u32 %v438, %v428
        %v441 = vshrl.u32 %v390, 16
        %v443 = vor.u32 %v441, %v436
        %v456 = vunpack.c.l.b16 %v361
        %v457 = vunpack.c.h.b16 %v361
        %v458 = vunpack.c.l.b16 %v362
        %v459 = vunpack.c.h.b16 %v362
        %v460 = vunpack.c.l.b16 %v363
        %v461 = vunpack.c.h.b16 %v363
        %v462 = vunpack.c.l.b16 %v364
        %v463 = vunpack.c.h.b16 %v364
        %v464 = vunpack.c.l.b16 %v365
        %v465 = vunpack.c.h.b16 %v365
        %v466 = vunpack.c.l.b16 %v366
        %v467 = vunpack.c.h.b16 %v366
        %v468 = vpack.c.b16 %v458, %v456
        %v469 = vpack.c.b16 %v459, %v457
        %v470 = vpack.c.b16 %v462, %v460
        %v471 = vpack.c.b16 %v463, %v461
        %v472 = vpack.c.b16 %v466, %v464
        %v473 = vpack.c.b16 %v467, %v465
        %v481 = vshrl.u32 %v468, 16
        %v483 = vshll.u32 %v468, 16
        %v485 = vrot.slane %v483, 1
        %v486 = vor.u32 %v481, %v485
        %v488 = vshll.u32 %v470, 16
        %v490 = vrot.slane %v488, 1
        %v491 = vsel %vm397, %v486, %v490
        %v493 = vshrl.u32 %v469, 16
        %v495 = vshll.u32 %v469, 16
        %v497 = vrot.slane %v495, 1
        %v498 = vor.u32 %v493, %v497
        %v500 = vshll.u32 %v471, 16
        %v502 = vrot.slane %v500, 1
        %v503 = vsel %vm397, %v498, %v502
        %v504 = vshrl.u32 %v470, 16
        %v506 = vor.u32 %v504, %v490
        %v508 = vshll.u32 %v472, 16
        %v510 = vrot.slane %v508, 1
        %v511 = vsel %vm397, %v506, %v510
        %v512 = vshrl.u32 %v471, 16
        %v514 = vor.u32 %v512, %v502
        %v516 = vshll.u32 %v473, 16
        %v518 = vrot.slane %v516, 1
        %v519 = vsel %vm397, %v514, %v518
        %v520 = vshrl.u32 %v472, 16
        %v522 = vor.u32 %v520, %v510
        %v523 = vshrl.u32 %v473, 16
        %v525 = vor.u32 %v523, %v518
        %v660 = vunpack.c.l.b16 %v216
        %v661 = vunpack.c.l.b16 %v217
        %v662 = vunpack.c.l.b16 %v218
        %v663 = vunpack.c.l.b16 %v219
        %v664 = vunpack.c.l.b16 %v220
        %v665 = vunpack.c.l.b16 %v221
        %v666 = vunpack.c.l.b16 %v222
        %v667 = vunpack.c.l.b16 %v223
        %v668 = vunpack.c.l.b16 %v224
        %v669 = vunpack.c.l.b16 %v225
        %v670 = vunpack.c.l.b16 %v226
        %v671 = vunpack.c.l.b16 %v227
        %v672 = vunpack.c.l.b16 %v228
        %v673 = vunpack.c.l.b16 %v229
        %v674 = vunpack.c.l.b16 %v230
        %v675 = vunpack.c.l.b16 %v231
        %v676 = vunpack.c.l.b16 %v232
        %v677 = vunpack.c.l.b16 %v233
        %v678 = vunpack.c.l.b16 %v234
        %v679 = vunpack.c.l.b16 %v235
        %v680 = vunpack.c.l.b16 %v236
        %v681 = vunpack.c.l.b16 %v237
        %v682 = vunpack.c.l.b16 %v238
        %v683 = vunpack.c.l.b16 %v239
        %v684 = vunpack.c.l.b16 %v240
        %v685 = vunpack.c.l.b16 %v241
        %v686 = vunpack.c.l.b16 %v242
        %v687 = vunpack.c.l.b16 %v243
        %v688 = vunpack.c.l.b16 %v244
        %v689 = vunpack.c.l.b16 %v245
        %v690 = vunpack.c.l.b16 %v246
        %v691 = vunpack.c.l.b16 %v247
        %v692 = vunpack.c.l.b16 %v248
        %v693 = vunpack.c.l.b16 %v249
        %v694 = vunpack.c.l.b16 %v250
        %v695 = vunpack.c.l.b16 %v251
        %v696 = vunpack.c.l.b16 %v252
        %v697 = vunpack.c.l.b16 %v253
        %v698 = vunpack.c.l.b16 %v254
        %v699 = vunpack.c.l.b16 %v255
        %v700 = vunpack.c.l.b16 %v256
        %v701 = vunpack.c.l.b16 %v257
        %v702 = vunpack.c.l.b16 %v258
        %v703 = vunpack.c.l.b16 %v259
        %v704 = vunpack.c.l.b16 %v260
        %v705 = vunpack.c.l.b16 %v261
        %v706 = vunpack.c.l.b16 %v262
        %v707 = vunpack.c.l.b16 %v263
        %v708 = vunpack.c.l.b16 %v264
        %v709 = vunpack.c.l.b16 %v265
        %v710 = vunpack.c.l.b16 %v266
        %v711 = vunpack.c.l.b16 %v267
        %v712 = vunpack.c.l.b16 %v268
        %v713 = vunpack.c.l.b16 %v269
        %v714 = vunpack.c.l.b16 %v270
        %v715 = vunpack.c.l.b16 %v271
        %v716 = vunpack.c.l.b16 %v272
        %v717 = vunpack.c.l.b16 %v273
        %v718 = vunpack.c.l.b16 %v274
        %v719 = vunpack.c.l.b16 %v275
        %v720 = vunpack.c.l.b16 %v276
        %v721 = vunpack.c.l.b16 %v277
        %v722 = vunpack.c.l.b16 %v278
        %v723 = vunpack.c.l.b16 %v279
        %v724 = vunpack.c.l.b16 %v280
        %v725 = vunpack.c.l.b16 %v281
        %v726 = vunpack.c.l.b16 %v282
        %v727 = vunpack.c.l.b16 %v283
        %v728 = vunpack.c.l.b16 %v284
        %v729 = vunpack.c.l.b16 %v285
        %v730 = vunpack.c.l.b16 %v286
        %v731 = vunpack.c.l.b16 %v287
        %v732 = vunpack.c.l.b16 %v288
        %v733 = vunpack.c.l.b16 %v289
        %v734 = vunpack.c.l.b16 %v290
        %v735 = vunpack.c.l.b16 %v291
        %v736 = vunpack.c.l.b16 %v292
        %v737 = vunpack.c.l.b16 %v293
        %v738 = vunpack.c.l.b16 %v294
        %v739 = vunpack.c.l.b16 %v295
        %v740 = vunpack.c.l.b16 %v296
        %v741 = vunpack.c.l.b16 %v297
        %v742 = vunpack.c.l.b16 %v298
        %v743 = vunpack.c.l.b16 %v299
        %v744 = vunpack.c.l.b16 %v300
        %v745 = vunpack.c.l.b16 %v301
        %v746 = vunpack.c.l.b16 %v302
        %v747 = vunpack.c.l.b16 %v303
        %v748 = vunpack.c.l.b16 %v304
        %v749 = vunpack.c.l.b16 %v305
        %v750 = vunpack.c.l.b16 %v306
        %v751 = vunpack.c.l.b16 %v307
        %v752 = vunpack.c.l.b16 %v308
        %v753 = vunpack.c.l.b16 %v309
        %v754 = vunpack.c.l.b16 %v310
        %v755 = vunpack.c.l.b16 %v311
        %v756 = vunpack.c.l.b16 %v312
        %v757 = vunpack.c.l.b16 %v313
        %v758 = vunpack.c.l.b16 %v314
        %v759 = vunpack.c.l.b16 %v315
        %v760 = vunpack.c.l.b16 %v316
        %v761 = vunpack.c.l.b16 %v317
        %v762 = vunpack.c.l.b16 %v318
        %v763 = vunpack.c.l.b16 %v319
        %v764 = vunpack.c.l.b16 %v320
        %v765 = vunpack.c.l.b16 %v321
        %v766 = vunpack.c.l.b16 %v322
        %v767 = vunpack.c.l.b16 %v323
        %v768 = vunpack.c.l.b16 %v324
        %v769 = vunpack.c.l.b16 %v325
        %v770 = vunpack.c.l.b16 %v326
        %v771 = vunpack.c.l.b16 %v327
        %v772 = vunpack.c.l.b16 %v328
        %v773 = vunpack.c.l.b16 %v329
        %v774 = vunpack.c.l.b16 %v330
        %v775 = vunpack.c.l.b16 %v331
        %v776 = vunpack.c.l.b16 %v332
        %v777 = vunpack.c.l.b16 %v333
        %v778 = vunpack.c.l.b16 %v334
        %v779 = vunpack.c.l.b16 %v335
        %v780 = vunpack.c.l.b16 %v336
        %v781 = vunpack.c.l.b16 %v337
        %v782 = vunpack.c.l.b16 %v338
        %v783 = vunpack.c.l.b16 %v339
        %v784 = vunpack.c.l.b16 %v340
        %v785 = vunpack.c.l.b16 %v341
        %v786 = vunpack.c.l.b16 %v342
        %v787 = vunpack.c.l.b16 %v343
        %v788 = vpack.c.b16 %v661, %v660
        %v789 = vpack.c.b16 %v663, %v662
        %v790 = vpack.c.b16 %v665, %v664
        %v791 = vpack.c.b16 %v667, %v666
        %v792 = vpack.c.b16 %v669, %v668
        %v793 = vpack.c.b16 %v671, %v670
        %v794 = vpack.c.b16 %v673, %v672
        %v795 = vpack.c.b16 %v675, %v674
        %v796 = vpack.c.b16 %v677, %v676
        %v797 = vpack.c.b16 %v679, %v678
        %v798 = vpack.c.b16 %v681, %v680
        %v799 = vpack.c.b16 %v683, %v682
        %v800 = vpack.c.b16 %v685, %v684
        %v801 = vpack.c.b16 %v687, %v686
        %v802 = vpack.c.b16 %v689, %v688
        %v803 = vpack.c.b16 %v691, %v690
        %v804 = vpack.c.b16 %v693, %v692
        %v805 = vpack.c.b16 %v695, %v694
        %v806 = vpack.c.b16 %v697, %v696
        %v807 = vpack.c.b16 %v699, %v698
        %v808 = vpack.c.b16 %v701, %v700
        %v809 = vpack.c.b16 %v703, %v702
        %v810 = vpack.c.b16 %v705, %v704
        %v811 = vpack.c.b16 %v707, %v706
        %v812 = vpack.c.b16 %v709, %v708
        %v813 = vpack.c.b16 %v711, %v710
        %v814 = vpack.c.b16 %v713, %v712
        %v815 = vpack.c.b16 %v715, %v714
        %v816 = vpack.c.b16 %v717, %v716
        %v817 = vpack.c.b16 %v719, %v718
        %v818 = vpack.c.b16 %v721, %v720
        %v819 = vpack.c.b16 %v723, %v722
        %v820 = vpack.c.b16 %v725, %v724
        %v821 = vpack.c.b16 %v727, %v726
        %v822 = vpack.c.b16 %v729, %v728
        %v823 = vpack.c.b16 %v731, %v730
        %v824 = vpack.c.b16 %v733, %v732
        %v825 = vpack.c.b16 %v735, %v734
        %v826 = vpack.c.b16 %v737, %v736
        %v827 = vpack.c.b16 %v739, %v738
        %v828 = vpack.c.b16 %v741, %v740
        %v829 = vpack.c.b16 %v743, %v742
        %v830 = vpack.c.b16 %v745, %v744
        %v831 = vpack.c.b16 %v747, %v746
        %v832 = vpack.c.b16 %v749, %v748
        %v833 = vpack.c.b16 %v751, %v750
        %v834 = vpack.c.b16 %v753, %v752
        %v835 = vpack.c.b16 %v755, %v754
        %v836 = vpack.c.b16 %v757, %v756
        %v837 = vpack.c.b16 %v759, %v758
        %v838 = vpack.c.b16 %v761, %v760
        %v839 = vpack.c.b16 %v763, %v762
        %v840 = vpack.c.b16 %v765, %v764
        %v841 = vpack.c.b16 %v767, %v766
        %v842 = vpack.c.b16 %v769, %v768
        %v843 = vpack.c.b16 %v771, %v770
        %v844 = vpack.c.b16 %v773, %v772
        %v845 = vpack.c.b16 %v775, %v774
        %v846 = vpack.c.b16 %v777, %v776
        %v847 = vpack.c.b16 %v779, %v778
        %v848 = vpack.c.b16 %v781, %v780
        %v849 = vpack.c.b16 %v783, %v782
        %v850 = vpack.c.b16 %v785, %v784
        %v851 = vpack.c.b16 %v787, %v786
        %916 = vmatprep.subr.bf16.mxu0 0
        %917 = vmatpush1.bf16.msra.mxu0 %v788
        %918 = vmatprep.subr.bf16.mxu0 0
        %919 = vmatpush1.bf16.msra.mxu0 %v789
        %920 = vmatprep.subr.bf16.mxu0 0
        %921 = vmatpush1.bf16.msra.mxu0 %v790
        %922 = vmatprep.subr.bf16.mxu0 0
        %923 = vmatpush1.bf16.msra.mxu0 %v791
        %924 = vmatprep.subr.bf16.mxu0 0
        %925 = vmatpush1.bf16.msra.mxu0 %v792
        %926 = vmatprep.subr.bf16.mxu0 0
        %927 = vmatpush1.bf16.msra.mxu0 %v793
        %928 = vmatprep.subr.bf16.mxu0 0
        %929 = vmatpush1.bf16.msra.mxu0 %v794
        %930 = vmatprep.subr.bf16.mxu0 0
        %931 = vmatpush1.bf16.msra.mxu0 %v795
        %932 = vmatprep.subr.bf16.mxu0 0
        %933 = vmatpush1.bf16.msra.mxu0 %v796
        %934 = vmatprep.subr.bf16.mxu0 0
        %935 = vmatpush1.bf16.msra.mxu0 %v797
        %936 = vmatprep.subr.bf16.mxu0 0
        %937 = vmatpush1.bf16.msra.mxu0 %v798
        %938 = vmatprep.subr.bf16.mxu0 0
        %939 = vmatpush1.bf16.msra.mxu0 %v799
        %940 = vmatprep.subr.bf16.mxu0 0
        %941 = vmatpush1.bf16.msra.mxu0 %v800
        %942 = vmatprep.subr.bf16.mxu0 0
        %943 = vmatpush1.bf16.msra.mxu0 %v801
        %944 = vmatprep.subr.bf16.mxu0 0
        %945 = vmatpush1.bf16.msra.mxu0 %v802
        %946 = vmatprep.subr.bf16.mxu0 0
        %947 = vmatpush1.bf16.msra.mxu0 %v803
        %948 = vmatprep.mubr.bf16.mxu0 %v386
        %949 = vmatmul.mubr.bf16.gmra.mrb[0].mxu0 %v385
        %v950 = vpop.f32.mrb[0].mxu0
        %v951 = vadd.f32 0.0, %v950
        %v952 = vpop.f32.mrb[0].mxu0
        %v953 = vpop.f32.mrb[0].mxu0
        %v954 = vadd.f32 0.0, %v953
        %v955 = vpop.f32.mrb[0].mxu0
        %956 = vmatprep.mubr.bf16.mxu0 %v388
        %957 = vmatmul.mubr.bf16.gmra.mrb[0].mxu0 %v387
        %v958 = vpop.f32.mrb[0].mxu0
        %v959 = vadd.f32 0.0, %v958
        %v960 = vpop.f32.mrb[0].mxu0
        %v961 = vpop.f32.mrb[0].mxu0
        %v962 = vadd.f32 0.0, %v961
        %v963 = vpop.f32.mrb[0].mxu0
        %964 = vmatprep.mubr.bf16.mxu0 %v390
        %965 = vmatmul.mubr.bf16.gmra.mrb[0].mxu0 %v389
        %v966 = vpop.f32.mrb[0].mxu0
        %v967 = vadd.f32 0.0, %v966
        %v968 = vpop.f32.mrb[0].mxu0
        %v969 = vpop.f32.mrb[0].mxu0
        %v970 = vadd.f32 0.0, %v969
        %v971 = vpop.f32.mrb[0].mxu0
        %972 = vdwg.mxu0
        %973 = vmatprep.subr.bf16.mxu0 0
        %974 = vmatpush1.bf16.msra.mxu0 %v804
        %975 = vmatprep.subr.bf16.mxu0 0
        %976 = vmatpush1.bf16.msra.mxu0 %v805
        %977 = vmatprep.subr.bf16.mxu0 0
        %978 = vmatpush1.bf16.msra.mxu0 %v806
        %979 = vmatprep.subr.bf16.mxu0 0
        %980 = vmatpush1.bf16.msra.mxu0 %v807
        %981 = vmatprep.subr.bf16.mxu0 0
        %982 = vmatpush1.bf16.msra.mxu0 %v808
        %983 = vmatprep.subr.bf16.mxu0 0
        %984 = vmatpush1.bf16.msra.mxu0 %v809
        %985 = vmatprep.subr.bf16.mxu0 0
        %986 = vmatpush1.bf16.msra.mxu0 %v810
        %987 = vmatprep.subr.bf16.mxu0 0
        %988 = vmatpush1.bf16.msra.mxu0 %v811
        %989 = vmatprep.subr.bf16.mxu0 0
        %990 = vmatpush1.bf16.msra.mxu0 %v812
        %991 = vmatprep.subr.bf16.mxu0 0
        %992 = vmatpush1.bf16.msra.mxu0 %v813
        %993 = vmatprep.subr.bf16.mxu0 0
        %994 = vmatpush1.bf16.msra.mxu0 %v814
        %995 = vmatprep.subr.bf16.mxu0 0
        %996 = vmatpush1.bf16.msra.mxu0 %v815
        %997 = vmatprep.subr.bf16.mxu0 0
        %998 = vmatpush1.bf16.msra.mxu0 %v816
        %999 = vmatprep.subr.bf16.mxu0 0
        %1000 = vmatpush1.bf16.msra.mxu0 %v817
        %1001 = vmatprep.subr.bf16.mxu0 0
        %1002 = vmatpush1.bf16.msra.mxu0 %v818
        %1003 = vmatprep.subr.bf16.mxu0 0
        %1004 = vmatpush1.bf16.msra.mxu0 %v819
        %1005 = vmatprep.mubr.bf16.mxu0 %v421
        %1006 = vmatmul.mubr.bf16.gmra.mrb[0].mxu0 %v409
        %v1007 = vpop.f32.mrb[0].mxu0
        %v1008 = vadd.f32 %v951, %v1007
        %v1009 = vpop.f32.mrb[0].mxu0
        %v1010 = vpop.f32.mrb[0].mxu0
        %v1011 = vadd.f32 %v954, %v1010
        %v1012 = vpop.f32.mrb[0].mxu0
        %1013 = vmatprep.mubr.bf16.mxu0 %v437
        %1014 = vmatmul.mubr.bf16.gmra.mrb[0].mxu0 %v429
        %v1015 = vpop.f32.mrb[0].mxu0
        %v1016 = vadd.f32 %v959, %v1015
        %v1017 = vpop.f32.mrb[0].mxu0
        %v1018 = vpop.f32.mrb[0].mxu0
        %v1019 = vadd.f32 %v962, %v1018
        %v1020 = vpop.f32.mrb[0].mxu0
        %1021 = vmatprep.mubr.bf16.mxu0 %v443
        %1022 = vmatmul.mubr.bf16.gmra.mrb[0].mxu0 %v440
        %v1023 = vpop.f32.mrb[0].mxu0
        %v1024 = vadd.f32 %v967, %v1023
        %v1025 = vpop.f32.mrb[0].mxu0
        %v1026 = vpop.f32.mrb[0].mxu0
        %v1027 = vadd.f32 %v970, %v1026
        %v1028 = vpop.f32.mrb[0].mxu0
        %1029 = vdwg.mxu0
        %1030 = vmatprep.subr.bf16.mxu0 0
        %1031 = vmatpush1.bf16.msra.mxu0 %v820
        %1032 = vmatprep.subr.bf16.mxu0 0
        %1033 = vmatpush1.bf16.msra.mxu0 %v821
        %1034 = vmatprep.subr.bf16.mxu0 0
        %1035 = vmatpush1.bf16.msra.mxu0 %v822
        %1036 = vmatprep.subr.bf16.mxu0 0
        %1037 = vmatpush1.bf16.msra.mxu0 %v823
        %1038 = vmatprep.subr.bf16.mxu0 0
        %1039 = vmatpush1.bf16.msra.mxu0 %v824
        %1040 = vmatprep.subr.bf16.mxu0 0
        %1041 = vmatpush1.bf16.msra.mxu0 %v825
        %1042 = vmatprep.subr.bf16.mxu0 0
        %1043 = vmatpush1.bf16.msra.mxu0 %v826
        %1044 = vmatprep.subr.bf16.mxu0 0
        %1045 = vmatpush1.bf16.msra.mxu0 %v827
        %1046 = vmatprep.subr.bf16.mxu0 0
        %1047 = vmatpush1.bf16.msra.mxu0 %v828
        %1048 = vmatprep.subr.bf16.mxu0 0
        %1049 = vmatpush1.bf16.msra.mxu0 %v829
        %1050 = vmatprep.subr.bf16.mxu0 0
        %1051 = vmatpush1.bf16.msra.mxu0 %v830
        %1052 = vmatprep.subr.bf16.mxu0 0
        %1053 = vmatpush1.bf16.msra.mxu0 %v831
        %1054 = vmatprep.subr.bf16.mxu0 0
        %1055 = vmatpush1.bf16.msra.mxu0 %v832
        %1056 = vmatprep.subr.bf16.mxu0 0
        %1057 = vmatpush1.bf16.msra.mxu0 %v833
        %1058 = vmatprep.subr.bf16.mxu0 0
        %1059 = vmatpush1.bf16.msra.mxu0 %v834
        %1060 = vmatprep.subr.bf16.mxu0 0
        %1061 = vmatpush1.bf16.msra.mxu0 %v835
        %1062 = vmatprep.mubr.bf16.mxu0 %v469
        %1063 = vmatmul.mubr.bf16.gmra.mrb[0].mxu0 %v468
        %v1064 = vpop.f32.mrb[0].mxu0
        %v1065 = vadd.f32 %v1008, %v1064
        %v1066 = vpop.f32.mrb[0].mxu0
        %v1067 = vpop.f32.mrb[0].mxu0
        %v1068 = vadd.f32 %v1011, %v1067
        %v1069 = vpop.f32.mrb[0].mxu0
        %1070 = vmatprep.mubr.bf16.mxu0 %v471
        %1071 = vmatmul.mubr.bf16.gmra.mrb[0].mxu0 %v470
        %v1072 = vpop.f32.mrb[0].mxu0
        %v1073 = vadd.f32 %v1016, %v1072
        %v1074 = vpop.f32.mrb[0].mxu0
        %v1075 = vpop.f32.mrb[0].mxu0
        %v1076 = vadd.f32 %v1019, %v1075
        %v1077 = vpop.f32.mrb[0].mxu0
        %1078 = vmatprep.mubr.bf16.mxu0 %v473
        %1079 = vmatmul.mubr.bf16.gmra.mrb[0].mxu0 %v472
        %v1080 = vpop.f32.mrb[0].mxu0
        %v1081 = vadd.f32 %v1024, %v1080
        %v1082 = vpop.f32.mrb[0].mxu0
        %v1083 = vpop.f32.mrb[0].mxu0
        %v1084 = vadd.f32 %v1027, %v1083
        %v1085 = vpop.f32.mrb[0].mxu0
        %1086 = vdwg.mxu0
        %1087 = vmatprep.subr.bf16.mxu0 0
        %1088 = vmatpush1.bf16.msra.mxu0 %v836
        %1089 = vmatprep.subr.bf16.mxu0 0
        %1090 = vmatpush1.bf16.msra.mxu0 %v837
        %1091 = vmatprep.subr.bf16.mxu0 0
        %1092 = vmatpush1.bf16.msra.mxu0 %v838
        %1093 = vmatprep.subr.bf16.mxu0 0
        %1094 = vmatpush1.bf16.msra.mxu0 %v839
        %1095 = vmatprep.subr.bf16.mxu0 0
        %1096 = vmatpush1.bf16.msra.mxu0 %v840
        %1097 = vmatprep.subr.bf16.mxu0 0
        %1098 = vmatpush1.bf16.msra.mxu0 %v841
        %1099 = vmatprep.subr.bf16.mxu0 0
        %1100 = vmatpush1.bf16.msra.mxu0 %v842
        %1101 = vmatprep.subr.bf16.mxu0 0
        %1102 = vmatpush1.bf16.msra.mxu0 %v843
        %1103 = vmatprep.subr.bf16.mxu0 0
        %1104 = vmatpush1.bf16.msra.mxu0 %v844
        %1105 = vmatprep.subr.bf16.mxu0 0
        %1106 = vmatpush1.bf16.msra.mxu0 %v845
        %1107 = vmatprep.subr.bf16.mxu0 0
        %1108 = vmatpush1.bf16.msra.mxu0 %v846
        %1109 = vmatprep.subr.bf16.mxu0 0
        %1110 = vmatpush1.bf16.msra.mxu0 %v847
        %1111 = vmatprep.subr.bf16.mxu0 0
        %1112 = vmatpush1.bf16.msra.mxu0 %v848
        %1113 = vmatprep.subr.bf16.mxu0 0
        %1114 = vmatpush1.bf16.msra.mxu0 %v849
        %1115 = vmatprep.subr.bf16.mxu0 0
        %1116 = vmatpush1.bf16.msra.mxu0 %v850
        %1117 = vmatprep.subr.bf16.mxu0 0
        %1118 = vmatpush1.bf16.msra.mxu0 %v851
        %1119 = vmatprep.mubr.bf16.mxu0 %v503
        %1120 = vmatmul.mubr.bf16.gmra.mrb[0].mxu0 %v491
        %v1121 = vpop.f32.mrb[0].mxu0
        %v1122 = vadd.f32 %v1065, %v1121
        %v1123 = vpop.f32.mrb[0].mxu0
        %v1124 = vpop.f32.mrb[0].mxu0
        %v1125 = vadd.f32 %v1068, %v1124
        %v1126 = vpop.f32.mrb[0].mxu0
        %1127 = vmatprep.mubr.bf16.mxu0 %v519
        %1128 = vmatmul.mubr.bf16.gmra.mrb[0].mxu0 %v511
        %v1129 = vpop.f32.mrb[0].mxu0
        %v1130 = vadd.f32 %v1073, %v1129
        %v1131 = vpop.f32.mrb[0].mxu0
        %v1132 = vpop.f32.mrb[0].mxu0
        %v1133 = vadd.f32 %v1076, %v1132
        %v1134 = vpop.f32.mrb[0].mxu0
        %1135 = vmatprep.mubr.bf16.mxu0 %v525
        %1136 = vmatmul.mubr.bf16.gmra.mrb[0].mxu0 %v522
        %v1137 = vpop.f32.mrb[0].mxu0
        %v1138 = vadd.f32 %v1081, %v1137
        %v1139 = vpop.f32.mrb[0].mxu0
        %v1140 = vpop.f32.mrb[0].mxu0
        %v1141 = vadd.f32 %v1084, %v1140
        %v1142 = vpop.f32.mrb[0].mxu0
        %1143 = vdwg.mxu0
        %v1144 = vpack.c.bf16 %v1125, %v1122
        %v1145 = vpack.c.bf16 %v1133, %v1130
        %v1146 = vpack.c.bf16 %v1141, %v1138
        %v1150 = vunpack.c.l.b16 %v1144
        %v1151 = vunpack.c.h.b16 %v1144
        %v1152 = vunpack.c.l.b16 %v1145
        %v1153 = vunpack.c.h.b16 %v1145
        %v1154 = vunpack.c.l.b16 %v1146
        %v1155 = vunpack.c.h.b16 %v1146
        %v1156 = vpack.c.b16 %v1150, %v1150
        %v1157 = vpack.c.b16 %v1151, %v1151
        %v1158 = vpack.c.b16 %v1152, %v1152
        %v1159 = vpack.c.b16 %v1153, %v1153
        %v1160 = vpack.c.b16 %v1154, %v1154
        %v1161 = vpack.c.b16 %v1155, %v1155
        %s1168 = smul.u32 %s345, 6
        %s1169 = smul.addr %s1168, 4
        %s1170 = scalar_lea.vmem %s208, %s1169
        %1171 = vst [vmem:[%s1170] sm:$0xf] %v1156
        %1172 = vst [vmem:[%s1170 + $0x4] sm:$0xf] %v1157
        %1173 = vst [vmem:[%s1170 + $0x8] sm:$0xf] %v1158
        %1174 = vst [vmem:[%s1170 + $0xc] sm:$0xf] %v1159
        %1175 = vst [vmem:[%s1170 + $0x10] sm:$0xf] %v1160
        %1176 = vst [vmem:[%s1170 + $0x14] sm:$0x7] %v1161
        %v1177 = vadd.f32 %v1122, %v1125
        %v1178 = vadd.f32 %v1177, %v1130
        %v1179 = vadd.f32 %v1178, %v1133
        %v1180 = vadd.f32 %v1179, %v1138
        %vm1181 = vcmask 1045504
        %v1182 = vsel %vm1181, %v1141, 0.0
        %v1183 = vadd.f32 %v1180, %v1182
        %v1184 = vrot.slane %v1183, 4
        %v1185 = vadd.f32 %v1183, %v1184
        %v1186 = vrot.slane %v1185, 2
        %v1187 = vadd.f32 %v1185, %v1186
        %v1188 = vrot.slane %v1187, 1
        %v1189 = vadd.f32 %v1187, %v1188
        %v1190 = vadd.f32 %v350, %v1189
        %v1191 = vmul.f32 %v1122, %v1122
        %v1192 = vmul.f32 %v1125, %v1125
        %v1193 = vmul.f32 %v1130, %v1130
        %v1194 = vmul.f32 %v1133, %v1133
        %v1195 = vmul.f32 %v1138, %v1138
        %v1196 = vmul.f32 %v1141, %v1141
        %v1197 = vadd.f32 %v1191, %v1192
        %v1198 = vadd.f32 %v1197, %v1193
        %v1199 = vadd.f32 %v1198, %v1194
        %v1200 = vadd.f32 %v1199, %v1195
        %v1201 = vsel %vm1181, %v1196, 0.0
        %v1202 = vadd.f32 %v1200, %v1201
        %v1203 = vrot.slane %v1202, 4
        %v1204 = vadd.f32 %v1202, %v1203
        %v1205 = vrot.slane %v1204, 2
        %v1206 = vadd.f32 %v1204, %v1205
        %v1207 = vrot.slane %v1206, 1
        %v1208 = vadd.f32 %v1206, %v1207
        %v1209 = vadd.f32 %v351, %v1208
      $region33: #{_lambda_.2} parent=27 // loop_footer
        %s349 = sadd.s32 1, %s345
      $region34: #{_lambda_.2} parent=27 // loop_footer_branch
        %344 = sbr.rel target = $region30
      $region35: #{_lambda_.2} parent=27 // loop_exit
        _
      %1210 = vst [vmem:[%s211] sm:$0x1] %v350
      %1211 = vst [vmem:[%s214] sm:$0x1] %v351
      %p1212 = scmp.lt.s32.totalorder %s16, 1
      %s1213 = scalar_select %p1212, %s16, 1
      %s1214 = smul.addr %s1213, 276
      %s1215 = smul.addr %s1214, 4
      %s1216 = scalar_lea.vmem %s2, %s1215
      %p1217 = scmp.lt.s32.totalorder %s16, 1
      %s1218 = scalar_select %p1217, %s16, 1
      %s1219 = scalar_lea.vmem %s3, %s1218
      %p1220 = scmp.lt.s32.totalorder %s16, 1
      %s1221 = scalar_select %p1220, %s16, 1
      %s1222 = scalar_lea.vmem %s4, %s1221
      // Predicated region
      $region36: #{_lambda_.2} parent=27 // pred_check
        %p1223 = pneg %p81
      $region37: #{_lambda_.2} parent=27 // pred_check_branch
        %1225 = sbr.rel (%p1223) target = $region39
      $region38: #{_lambda_.2} parent=27 // pred_region
        _
      $region39: #{_lambda_.2} parent=27 // pred_fallthru
        _
      // Predicated region
      $region40: #{_lambda_.2} parent=27 // pred_check
        %p1226 = pneg %p107
      $region41: #{_lambda_.2} parent=27 // pred_check_branch
        %1228 = sbr.rel (%p1226) target = $region43
      $region42: #{_lambda_.2} parent=27 // pred_region
        _
      $region43: #{_lambda_.2} parent=27 // pred_fallthru
        _
      // Predicated region
      $region44: #{_lambda_.2} parent=27 // pred_check
        %p1229 = pneg %p133
      $region45: #{_lambda_.2} parent=27 // pred_check_branch
        %1231 = sbr.rel (%p1229) target = $region47
      $region46: #{_lambda_.2} parent=27 // pred_region
        _
      $region47: #{_lambda_.2} parent=27 // pred_fallthru
        _
    $region28: #{_lambda_.2} parent=5 // pred_fallthru
      _
    %p1232 = scmp.le.s32.totalorder 2, %s11
    // Predicated region
    $region48: #{_lambda_.2} parent=5 // pred_check
      %p1233 = pneg %p1232
    $region49: #{_lambda_.2} parent=5 // pred_check_branch
      %1235 = sbr.rel (%p1233) target = $region51
    $region50: #{_lambda_.2} parent=5 // pred_region
      %s1236 = ssub.s32 %s11, 2
      // Predicated region
      $region52: #{_lambda_.2} parent=50 // pred_check
        %p1237 = pneg %p87
      $region53: #{_lambda_.2} parent=50 // pred_check_branch
        %1239 = sbr.rel (%p1237) target = $region55
      $region54: #{_lambda_.2} parent=50 // pred_region
        %p1240 = scmp.lt.s32.totalorder %s17, 1
        %s1241 = scalar_select %p1240, %s17, 1
        %s1242 = smul.addr %s1241, 276
        %s1243 = smul.addr %s1242, 4
        %s1244 = scalar_lea.vmem %s2, %s1243
      $region55: #{_lambda_.2} parent=50 // pred_fallthru
        _
      // Predicated region
      $region56: #{_lambda_.2} parent=50 // pred_check
        %p1245 = pneg %p113
      $region57: #{_lambda_.2} parent=50 // pred_check_branch
        %1247 = sbr.rel (%p1245) target = $region59
      $region58: #{_lambda_.2} parent=50 // pred_region
        %p1248 = scmp.lt.s32.totalorder %s17, 1
        %s1249 = scalar_select %p1248, %s17, 1
        %s1250 = scalar_lea.vmem %s3, %s1249
      $region59: #{_lambda_.2} parent=50 // pred_fallthru
        _
      // Predicated region
      $region60: #{_lambda_.2} parent=50 // pred_check
        %p1251 = pneg %p139
      $region61: #{_lambda_.2} parent=50 // pred_check_branch
        %1253 = sbr.rel (%p1251) target = $region63
      $region62: #{_lambda_.2} parent=50 // pred_region
        %p1254 = scmp.lt.s32.totalorder %s17, 1
        %s1255 = scalar_select %p1254, %s17, 1
        %s1256 = scalar_lea.vmem %s4, %s1255
      $region63: #{_lambda_.2} parent=50 // pred_fallthru
        _
    $region51: #{_lambda_.2} parent=5 // pred_fallthru
      _
  $region6: #{_lambda_.2} parent=0 // loop_footer
    %s15 = sadd.s32 1, %s11
  $region7: #{_lambda_.2} parent=0 // loop_footer_branch
    %10 = sbr.rel target = $region3
  $region8: #{_lambda_.2} parent=0 // loop_exit
    _

// kernel: _lambda_.3
$region0: #{_lambda_.3}
  #allocation0 [shape = 'u32[]', space=smem, size = 0x4, offset = 0x4, fixed_abs, tag = 'smem constant byte address 0x4 - core index']
  #allocation1 [shape = 'u32[144,128]{1,0:T(1,128)}', space=vmem, size = 0x12000, scoped, tag = 'internal scratch']
  %s0 = inlined_call_operand.vmem [shape: bf16[2,23,23,512], index: 0, kind: input, shape index: {}]
  %s1 = inlined_call_operand.vmem [shape: bf16[2048,256], index: 1, kind: input, shape index: {}]
  %s2 = inlined_call_operand.vmem [shape: bf16[2,22,22,256], index: 2, kind: output, shape index: {0}]
  %s3 = inlined_call_operand.vmem [shape: f32[2,1,256], index: 3, kind: output, shape index: {1}]
  %s4 = inlined_call_operand.vmem [shape: f32[2,1,256], index: 4, kind: output, shape index: {2}]
  %5 = xla_tuple %s2, %s3, %s4
  %s6 = sld [smem:[#allocation0]]
  $region64: #{_lambda_.3} parent=0
    _
  %s8 = ssub.s32 1, %s6
  %s9 = scalar_select 0, %s8, %s6
  loop: start=0, step=1, limit=4
  $region2: #{_lambda_.3} parent=0 // loop_pre_header
    _
  $region3: #{_lambda_.3} parent=0 // loop_header
    %s11 = sphi 0, %s15
    %p12 = scmp.ge.s32.totalorder %s11, 4
    %s21 = sphi 0, %s23
    %s24 = sphi 0, %s21
    %s25 = sphi 0, %s24
    %s41 = sphi 0, %s25
    %s45 = sphi 0, %s45
    %s47 = sphi 0, %s45
    %s48 = sphi 0, %s47
    %s62 = sphi 0, %s48
    %s68 = sphi 0, %s70
    %s71 = sphi 0, %s68
    %s72 = sphi 0, %s71
    %s88 = sphi 0, %s72
    %s94 = sphi 0, %s96
    %s97 = sphi 0, %s94
    %s98 = sphi 0, %s97
    %s114 = sphi 0, %s98
    %s120 = sphi 0, %s122
    %s123 = sphi 0, %s120
    %s124 = sphi 0, %s123
    %s140 = sphi 0, %s124
  $region4: #{_lambda_.3} parent=0 // loop_header_branch
    %14 = sbr.rel (%p12) target = $region8
  $region5: #{_lambda_.3} parent=0 // loop_body
    %s16 = ssub.s32 %s11, 1
    %s17 = ssub.s32 %s11, 2
    %s18 = sadd.s32 %s11, 1
    %s19 = ssub.s32 %s11, %s18
    %p20 = scmp.eq.s32.totalorder %s19, 0
    %s22 = sadd.s32 %s21, 1
    %s23 = scalar_select %p20, %s21, %s22
    %p26 = pneg %p20
    %p27 = scmp.eq.s32.totalorder %s11, 1
    %p28 = por %p26, %p27
    %p29 = scmp.ne.s32.totalorder %s21, %s24
    %p30 = scmp.eq.s32.totalorder %s11, 0
    %p31 = por %p29, %p30
    %p32 = scmp.ne.s32.totalorder %s21, %s24
    %p33 = scmp.eq.s32.totalorder %s16, 1
    %p34 = por %p32, %p33
    %p35 = scmp.ne.s32.totalorder %s24, %s25
    %p36 = scmp.eq.s32.totalorder %s16, 0
    %p37 = por %p35, %p36
    %p38 = scmp.ne.s32.totalorder %s24, %s25
    %p39 = scmp.eq.s32.totalorder %s17, 1
    %p40 = por %p38, %p39
    %p42 = scmp.ne.s32.totalorder %s25, %s41
    %p43 = scmp.eq.s32.totalorder %s17, 0
    %p44 = por %p42, %p43
    %s46 = sadd.s32 %s45, 1
    %p49 = scmp.eq.s32.totalorder %s11, 1
    %p50 = scmp.ne.s32.totalorder %s45, %s47
    %p51 = scmp.eq.s32.totalorder %s11, 0
    %p52 = por %p50, %p51
    %p53 = scmp.ne.s32.totalorder %s45, %s47
    %p54 = scmp.eq.s32.totalorder %s16, 1
    %p55 = por %p53, %p54
    %p56 = scmp.ne.s32.totalorder %s47, %s48
    %p57 = scmp.eq.s32.totalorder %s16, 0
    %p58 = por %p56, %p57
    %p59 = scmp.ne.s32.totalorder %s47, %s48
    %p60 = scmp.eq.s32.totalorder %s17, 1
    %p61 = por %p59, %p60
    %p63 = scmp.ne.s32.totalorder %s48, %s62
    %p64 = scmp.eq.s32.totalorder %s17, 0
    %p65 = por %p63, %p64
    %s66 = ssub.s32 %s11, %s18
    %p67 = scmp.eq.s32.totalorder %s66, 0
    %s69 = sadd.s32 %s68, 1
    %s70 = scalar_select %p67, %s68, %s69
    %p73 = pneg %p67
    %p74 = scmp.eq.s32.totalorder %s11, 1
    %p75 = por %p73, %p74
    %p76 = scmp.ne.s32.totalorder %s68, %s71
    %p77 = scmp.eq.s32.totalorder %s11, 0
    %p78 = por %p76, %p77
    %p79 = scmp.ne.s32.totalorder %s68, %s71
    %p80 = scmp.eq.s32.totalorder %s16, 1
    %p81 = por %p79, %p80
    %p82 = scmp.ne.s32.totalorder %s71, %s72
    %p83 = scmp.eq.s32.totalorder %s16, 0
    %p84 = por %p82, %p83
    %p85 = scmp.ne.s32.totalorder %s71, %s72
    %p86 = scmp.eq.s32.totalorder %s17, 1
    %p87 = por %p85, %p86
    %p89 = scmp.ne.s32.totalorder %s72, %s88
    %p90 = scmp.eq.s32.totalorder %s17, 0
    %p91 = por %p89, %p90
    %s92 = ssub.s32 %s11, %s18
    %p93 = scmp.eq.s32.totalorder %s92, 0
    %s95 = sadd.s32 %s94, 1
    %s96 = scalar_select %p93, %s94, %s95
    %p99 = pneg %p93
    %p100 = scmp.eq.s32.totalorder %s11, 1
    %p101 = por %p99, %p100
    %p102 = scmp.ne.s32.totalorder %s94, %s97
    %p103 = scmp.eq.s32.totalorder %s11, 0
    %p104 = por %p102, %p103
    %p105 = scmp.ne.s32.totalorder %s94, %s97
    %p106 = scmp.eq.s32.totalorder %s16, 1
    %p107 = por %p105, %p106
    %p108 = scmp.ne.s32.totalorder %s97, %s98
    %p109 = scmp.eq.s32.totalorder %s16, 0
    %p110 = por %p108, %p109
    %p111 = scmp.ne.s32.totalorder %s97, %s98
    %p112 = scmp.eq.s32.totalorder %s17, 1
    %p113 = por %p111, %p112
    %p115 = scmp.ne.s32.totalorder %s98, %s114
    %p116 = scmp.eq.s32.totalorder %s17, 0
    %p117 = por %p115, %p116
    %s118 = ssub.s32 %s11, %s18
    %p119 = scmp.eq.s32.totalorder %s118, 0
    %s121 = sadd.s32 %s120, 1
    %s122 = scalar_select %p119, %s120, %s121
    %p125 = pneg %p119
    %p126 = scmp.eq.s32.totalorder %s11, 1
    %p127 = por %p125, %p126
    %p128 = scmp.ne.s32.totalorder %s120, %s123
    %p129 = scmp.eq.s32.totalorder %s11, 0
    %p130 = por %p128, %p129
    %p131 = scmp.ne.s32.totalorder %s120, %s123
    %p132 = scmp.eq.s32.totalorder %s16, 1
    %p133 = por %p131, %p132
    %p134 = scmp.ne.s32.totalorder %s123, %s124
    %p135 = scmp.eq.s32.totalorder %s16, 0
    %p136 = por %p134, %p135
    %p137 = scmp.ne.s32.totalorder %s123, %s124
    %p138 = scmp.eq.s32.totalorder %s17, 1
    %p139 = por %p137, %p138
    %p141 = scmp.ne.s32.totalorder %s124, %s140
    %p142 = scmp.eq.s32.totalorder %s17, 0
    %p143 = por %p141, %p142
    %p144 = scmp.le.s32.totalorder 1, %s11
    %p145 = scmp.lt.s32.totalorder %s11, 3
    %p146 = pnand %p144, %p145
    %p147 = pneg %p146
    // Predicated region
    $region9: #{_lambda_.3} parent=5 // pred_check
      _
    $region10: #{_lambda_.3} parent=5 // pred_check_branch
      %149 = sbr.rel (%p146) target = $region12
    $region11: #{_lambda_.3} parent=5 // pred_region
      %s150 = ssub.s32 %s11, 1
      // Predicated region
      $region13: #{_lambda_.3} parent=11 // pred_check
        %p151 = pneg %p58
      $region14: #{_lambda_.3} parent=11 // pred_check_branch
        %153 = sbr.rel (%p151) target = $region16
      $region15: #{_lambda_.3} parent=11 // pred_region
        _
      $region16: #{_lambda_.3} parent=11 // pred_fallthru
        _
    $region12: #{_lambda_.3} parent=5 // pred_fallthru
      _
    %p154 = scmp.lt.s32.totalorder %s11, 2
    // Predicated region
    $region17: #{_lambda_.3} parent=5 // pred_check
      %p155 = pneg %p154
    $region18: #{_lambda_.3} parent=5 // pred_check_branch
      %157 = sbr.rel (%p155) target = $region20
    $region19: #{_lambda_.3} parent=5 // pred_region
      // Predicated region
      $region21: #{_lambda_.3} parent=19 // pred_check
        %p158 = pneg %p31
      $region22: #{_lambda_.3} parent=19 // pred_check_branch
        %160 = sbr.rel (%p158) target = $region24
      $region23: #{_lambda_.3} parent=19 // pred_region
        %p161 = scmp.lt.s32.totalorder %s11, 1
        %s162 = scalar_select %p161, %s11, 1
        %s163 = smul.addr %s162, 276
        %s164 = smul.addr %s163, 4
        %s165 = scalar_lea.vmem %s0, %s164
      $region24: #{_lambda_.3} parent=19 // pred_fallthru
        _
    $region20: #{_lambda_.3} parent=5 // pred_fallthru
      _
    %p166 = scmp.le.s32.totalorder 1, %s11
    %p167 = scmp.lt.s32.totalorder %s11, 3
    %p168 = pnand %p166, %p167
    %p169 = pneg %p168
    // Predicated region
    $region25: #{_lambda_.3} parent=5 // pred_check
      _
    $region26: #{_lambda_.3} parent=5 // pred_check_branch
      %171 = sbr.rel (%p168) target = $region28
    $region27: #{_lambda_.3} parent=5 // pred_region
      %s172 = ssub.s32 %s11, 1
      %p173 = scmp.lt.s32.totalorder %s16, 1
      %s174 = scalar_select %p173, %s16, 1
      %s175 = smul.addr %s174, 276
      %s176 = smul.addr %s175, 4
      %s177 = scalar_lea.vmem %s0, %s176
      %p178 = pneg %p37
      %p179 = pneg %p34
      %p180 = pneg %p58
      %p181 = pneg %p55
      %p182 = pneg %p84
      %p183 = pneg %p81
      %p184 = scmp.lt.s32.totalorder %s16, 1
      %s185 = scalar_select %p184, %s16, 1
      %s186 = smul.addr %s185, 132
      %s187 = smul.addr %s186, 4
      %s188 = scalar_lea.vmem %s2, %s187
      %p189 = pneg %p110
      %p190 = pneg %p107
      %p191 = scmp.lt.s32.totalorder %s16, 1
      %s192 = scalar_select %p191, %s16, 1
      %s193 = smul.addr %s192, 2
      %s194 = scalar_lea.vmem %s3, %s193
      %p195 = pneg %p136
      %p196 = pneg %p133
      %p197 = scmp.lt.s32.totalorder %s16, 1
      %s198 = scalar_select %p197, %s16, 1
      %s199 = smul.addr %s198, 2
      %s200 = scalar_lea.vmem %s4, %s199
      %p201 = scmp.lt.s32.totalorder %s16, 1
      %s202 = scalar_select %p201, %s16, 1
      %s203 = smul.addr %s202, 276
      %s204 = smul.addr %s203, 4
      %s205 = scalar_lea.vmem %s0, %s204
      %p206 = scmp.lt.s32.totalorder %s16, 1
      %s207 = scalar_select %p206, %s16, 1
      %s208 = smul.addr %s207, 132
      %s209 = smul.addr %s208, 4
      %s210 = scalar_lea.vmem %s2, %s209
      %p211 = scmp.lt.s32.totalorder %s16, 1
      %s212 = scalar_select %p211, %s16, 1
      %s213 = smul.addr %s212, 2
      %s214 = scalar_lea.vmem %s3, %s213
      %p215 = scmp.lt.s32.totalorder %s16, 1
      %s216 = scalar_select %p215, %s16, 1
      %s217 = smul.addr %s216, 2
      %s218 = scalar_lea.vmem %s4, %s217
      %v219 = vld [vmem:[%s1] sm:$0xff]
      %v220 = vld [vmem:[%s1 + $0x8] sm:$0xff]
      %v221 = vld [vmem:[%s1 + $0x10] sm:$0xff]
      %v222 = vld [vmem:[%s1 + $0x18] sm:$0xff]
      %v223 = vld [vmem:[%s1 + $0x20] sm:$0xff]
      %v224 = vld [vmem:[%s1 + $0x28] sm:$0xff]
      %v225 = vld [vmem:[%s1 + $0x30] sm:$0xff]
      %v226 = vld [vmem:[%s1 + $0x38] sm:$0xff]
      %v227 = vld [vmem:[%s1 + $0x40] sm:$0xff]
      %v228 = vld [vmem:[%s1 + $0x48] sm:$0xff]
      %v229 = vld [vmem:[%s1 + $0x50] sm:$0xff]
      %v230 = vld [vmem:[%s1 + $0x58] sm:$0xff]
      %v231 = vld [vmem:[%s1 + $0x60] sm:$0xff]
      %v232 = vld [vmem:[%s1 + $0x68] sm:$0xff]
      %v233 = vld [vmem:[%s1 + $0x70] sm:$0xff]
      %v234 = vld [vmem:[%s1 + $0x78] sm:$0xff]
      %v235 = vld [vmem:[%s1 + $0x80] sm:$0xff]
      %v236 = vld [vmem:[%s1 + $0x88] sm:$0xff]
      %v237 = vld [vmem:[%s1 + $0x90] sm:$0xff]
      %v238 = vld [vmem:[%s1 + $0x98] sm:$0xff]
      %v239 = vld [vmem:[%s1 + $0xa0] sm:$0xff]
      %v240 = vld [vmem:[%s1 + $0xa8] sm:$0xff]
      %v241 = vld [vmem:[%s1 + $0xb0] sm:$0xff]
      %v242 = vld [vmem:[%s1 + $0xb8] sm:$0xff]
      %v243 = vld [vmem:[%s1 + $0xc0] sm:$0xff]
      %v244 = vld [vmem:[%s1 + $0xc8] sm:$0xff]
      %v245 = vld [vmem:[%s1 + $0xd0] sm:$0xff]
      %v246 = vld [vmem:[%s1 + $0xd8] sm:$0xff]
      %v247 = vld [vmem:[%s1 + $0xe0] sm:$0xff]
      %v248 = vld [vmem:[%s1 + $0xe8] sm:$0xff]
      %v249 = vld [vmem:[%s1 + $0xf0] sm:$0xff]
      %v250 = vld [vmem:[%s1 + $0xf8] sm:$0xff]
      %v251 = vld [vmem:[%s1 + $0x100] sm:$0xff]
      %v252 = vld [vmem:[%s1 + $0x108] sm:$0xff]
      %v253 = vld [vmem:[%s1 + $0x110] sm:$0xff]
      %v254 = vld [vmem:[%s1 + $0x118] sm:$0xff]
      %v255 = vld [vmem:[%s1 + $0x120] sm:$0xff]
      %v256 = vld [vmem:[%s1 + $0x128] sm:$0xff]
      %v257 = vld [vmem:[%s1 + $0x130] sm:$0xff]
      %v258 = vld [vmem:[%s1 + $0x138] sm:$0xff]
      %v259 = vld [vmem:[%s1 + $0x140] sm:$0xff]
      %v260 = vld [vmem:[%s1 + $0x148] sm:$0xff]
      %v261 = vld [vmem:[%s1 + $0x150] sm:$0xff]
      %v262 = vld [vmem:[%s1 + $0x158] sm:$0xff]
      %v263 = vld [vmem:[%s1 + $0x160] sm:$0xff]
      %v264 = vld [vmem:[%s1 + $0x168] sm:$0xff]
      %v265 = vld [vmem:[%s1 + $0x170] sm:$0xff]
      %v266 = vld [vmem:[%s1 + $0x178] sm:$0xff]
      %v267 = vld [vmem:[%s1 + $0x180] sm:$0xff]
      %v268 = vld [vmem:[%s1 + $0x188] sm:$0xff]
      %v269 = vld [vmem:[%s1 + $0x190] sm:$0xff]
      %v270 = vld [vmem:[%s1 + $0x198] sm:$0xff]
      %v271 = vld [vmem:[%s1 + $0x1a0] sm:$0xff]
      %v272 = vld [vmem:[%s1 + $0x1a8] sm:$0xff]
      %v273 = vld [vmem:[%s1 + $0x1b0] sm:$0xff]
      %v274 = vld [vmem:[%s1 + $0x1b8] sm:$0xff]
      %v275 = vld [vmem:[%s1 + $0x1c0] sm:$0xff]
      %v276 = vld [vmem:[%s1 + $0x1c8] sm:$0xff]
      %v277 = vld [vmem:[%s1 + $0x1d0] sm:$0xff]
      %v278 = vld [vmem:[%s1 + $0x1d8] sm:$0xff]
      %v279 = vld [vmem:[%s1 + $0x1e0] sm:$0xff]
      %v280 = vld [vmem:[%s1 + $0x1e8] sm:$0xff]
      %v281 = vld [vmem:[%s1 + $0x1f0] sm:$0xff]
      %v282 = vld [vmem:[%s1 + $0x1f8] sm:$0xff]
      %v283 = vld [vmem:[%s1 + $0x200] sm:$0xff]
      %v284 = vld [vmem:[%s1 + $0x208] sm:$0xff]
      %v285 = vld [vmem:[%s1 + $0x210] sm:$0xff]
      %v286 = vld [vmem:[%s1 + $0x218] sm:$0xff]
      %v287 = vld [vmem:[%s1 + $0x220] sm:$0xff]
      %v288 = vld [vmem:[%s1 + $0x228] sm:$0xff]
      %v289 = vld [vmem:[%s1 + $0x230] sm:$0xff]
      %v290 = vld [vmem:[%s1 + $0x238] sm:$0xff]
      %v291 = vld [vmem:[%s1 + $0x240] sm:$0xff]
      %v292 = vld [vmem:[%s1 + $0x248] sm:$0xff]
      %v293 = vld [vmem:[%s1 + $0x250] sm:$0xff]
      %v294 = vld [vmem:[%s1 + $0x258] sm:$0xff]
      %v295 = vld [vmem:[%s1 + $0x260] sm:$0xff]
      %v296 = vld [vmem:[%s1 + $0x268] sm:$0xff]
      %v297 = vld [vmem:[%s1 + $0x270] sm:$0xff]
      %v298 = vld [vmem:[%s1 + $0x278] sm:$0xff]
      %v299 = vld [vmem:[%s1 + $0x280] sm:$0xff]
      %v300 = vld [vmem:[%s1 + $0x288] sm:$0xff]
      %v301 = vld [vmem:[%s1 + $0x290] sm:$0xff]
      %v302 = vld [vmem:[%s1 + $0x298] sm:$0xff]
      %v303 = vld [vmem:[%s1 + $0x2a0] sm:$0xff]
      %v304 = vld [vmem:[%s1 + $0x2a8] sm:$0xff]
      %v305 = vld [vmem:[%s1 + $0x2b0] sm:$0xff]
      %v306 = vld [vmem:[%s1 + $0x2b8] sm:$0xff]
      %v307 = vld [vmem:[%s1 + $0x2c0] sm:$0xff]
      %v308 = vld [vmem:[%s1 + $0x2c8] sm:$0xff]
      %v309 = vld [vmem:[%s1 + $0x2d0] sm:$0xff]
      %v310 = vld [vmem:[%s1 + $0x2d8] sm:$0xff]
      %v311 = vld [vmem:[%s1 + $0x2e0] sm:$0xff]
      %v312 = vld [vmem:[%s1 + $0x2e8] sm:$0xff]
      %v313 = vld [vmem:[%s1 + $0x2f0] sm:$0xff]
      %v314 = vld [vmem:[%s1 + $0x2f8] sm:$0xff]
      %v315 = vld [vmem:[%s1 + $0x300] sm:$0xff]
      %v316 = vld [vmem:[%s1 + $0x308] sm:$0xff]
      %v317 = vld [vmem:[%s1 + $0x310] sm:$0xff]
      %v318 = vld [vmem:[%s1 + $0x318] sm:$0xff]
      %v319 = vld [vmem:[%s1 + $0x320] sm:$0xff]
      %v320 = vld [vmem:[%s1 + $0x328] sm:$0xff]
      %v321 = vld [vmem:[%s1 + $0x330] sm:$0xff]
      %v322 = vld [vmem:[%s1 + $0x338] sm:$0xff]
      %v323 = vld [vmem:[%s1 + $0x340] sm:$0xff]
      %v324 = vld [vmem:[%s1 + $0x348] sm:$0xff]
      %v325 = vld [vmem:[%s1 + $0x350] sm:$0xff]
      %v326 = vld [vmem:[%s1 + $0x358] sm:$0xff]
      %v327 = vld [vmem:[%s1 + $0x360] sm:$0xff]
      %v328 = vld [vmem:[%s1 + $0x368] sm:$0xff]
      %v329 = vld [vmem:[%s1 + $0x370] sm:$0xff]
      %v330 = vld [vmem:[%s1 + $0x378] sm:$0xff]
      %v331 = vld [vmem:[%s1 + $0x380] sm:$0xff]
      %v332 = vld [vmem:[%s1 + $0x388] sm:$0xff]
      %v333 = vld [vmem:[%s1 + $0x390] sm:$0xff]
      %v334 = vld [vmem:[%s1 + $0x398] sm:$0xff]
      %v335 = vld [vmem:[%s1 + $0x3a0] sm:$0xff]
      %v336 = vld [vmem:[%s1 + $0x3a8] sm:$0xff]
      %v337 = vld [vmem:[%s1 + $0x3b0] sm:$0xff]
      %v338 = vld [vmem:[%s1 + $0x3b8] sm:$0xff]
      %v339 = vld [vmem:[%s1 + $0x3c0] sm:$0xff]
      %v340 = vld [vmem:[%s1 + $0x3c8] sm:$0xff]
      %v341 = vld [vmem:[%s1 + $0x3d0] sm:$0xff]
      %v342 = vld [vmem:[%s1 + $0x3d8] sm:$0xff]
      %v343 = vld [vmem:[%s1 + $0x3e0] sm:$0xff]
      %v344 = vld [vmem:[%s1 + $0x3e8] sm:$0xff]
      %v345 = vld [vmem:[%s1 + $0x3f0] sm:$0xff]
      %v346 = vld [vmem:[%s1 + $0x3f8] sm:$0xff]
      %v347 = vld [vmem:[%s1 + $0x400] sm:$0xff]
      %v348 = vld [vmem:[%s1 + $0x408] sm:$0xff]
      %v349 = vld [vmem:[%s1 + $0x410] sm:$0xff]
      %v350 = vld [vmem:[%s1 + $0x418] sm:$0xff]
      %v351 = vld [vmem:[%s1 + $0x420] sm:$0xff]
      %v352 = vld [vmem:[%s1 + $0x428] sm:$0xff]
      %v353 = vld [vmem:[%s1 + $0x430] sm:$0xff]
      %v354 = vld [vmem:[%s1 + $0x438] sm:$0xff]
      %v355 = vld [vmem:[%s1 + $0x440] sm:$0xff]
      %v356 = vld [vmem:[%s1 + $0x448] sm:$0xff]
      %v357 = vld [vmem:[%s1 + $0x450] sm:$0xff]
      %v358 = vld [vmem:[%s1 + $0x458] sm:$0xff]
      %v359 = vld [vmem:[%s1 + $0x460] sm:$0xff]
      %v360 = vld [vmem:[%s1 + $0x468] sm:$0xff]
      %v361 = vld [vmem:[%s1 + $0x470] sm:$0xff]
      %v362 = vld [vmem:[%s1 + $0x478] sm:$0xff]
      %v363 = vld [vmem:[%s1 + $0x480] sm:$0xff]
      %v364 = vld [vmem:[%s1 + $0x488] sm:$0xff]
      %v365 = vld [vmem:[%s1 + $0x490] sm:$0xff]
      %v366 = vld [vmem:[%s1 + $0x498] sm:$0xff]
      %v367 = vld [vmem:[%s1 + $0x4a0] sm:$0xff]
      %v368 = vld [vmem:[%s1 + $0x4a8] sm:$0xff]
      %v369 = vld [vmem:[%s1 + $0x4b0] sm:$0xff]
      %v370 = vld [vmem:[%s1 + $0x4b8] sm:$0xff]
      %v371 = vld [vmem:[%s1 + $0x4c0] sm:$0xff]
      %v372 = vld [vmem:[%s1 + $0x4c8] sm:$0xff]
      %v373 = vld [vmem:[%s1 + $0x4d0] sm:$0xff]
      %v374 = vld [vmem:[%s1 + $0x4d8] sm:$0xff]
      %v375 = vld [vmem:[%s1 + $0x4e0] sm:$0xff]
      %v376 = vld [vmem:[%s1 + $0x4e8] sm:$0xff]
      %v377 = vld [vmem:[%s1 + $0x4f0] sm:$0xff]
      %v378 = vld [vmem:[%s1 + $0x4f8] sm:$0xff]
      %v379 = vld [vmem:[%s1 + $0x500] sm:$0xff]
      %v380 = vld [vmem:[%s1 + $0x508] sm:$0xff]
      %v381 = vld [vmem:[%s1 + $0x510] sm:$0xff]
      %v382 = vld [vmem:[%s1 + $0x518] sm:$0xff]
      %v383 = vld [vmem:[%s1 + $0x520] sm:$0xff]
      %v384 = vld [vmem:[%s1 + $0x528] sm:$0xff]
      %v385 = vld [vmem:[%s1 + $0x530] sm:$0xff]
      %v386 = vld [vmem:[%s1 + $0x538] sm:$0xff]
      %v387 = vld [vmem:[%s1 + $0x540] sm:$0xff]
      %v388 = vld [vmem:[%s1 + $0x548] sm:$0xff]
      %v389 = vld [vmem:[%s1 + $0x550] sm:$0xff]
      %v390 = vld [vmem:[%s1 + $0x558] sm:$0xff]
      %v391 = vld [vmem:[%s1 + $0x560] sm:$0xff]
      %v392 = vld [vmem:[%s1 + $0x568] sm:$0xff]
      %v393 = vld [vmem:[%s1 + $0x570] sm:$0xff]
      %v394 = vld [vmem:[%s1 + $0x578] sm:$0xff]
      %v395 = vld [vmem:[%s1 + $0x580] sm:$0xff]
      %v396 = vld [vmem:[%s1 + $0x588] sm:$0xff]
      %v397 = vld [vmem:[%s1 + $0x590] sm:$0xff]
      %v398 = vld [vmem:[%s1 + $0x598] sm:$0xff]
      %v399 = vld [vmem:[%s1 + $0x5a0] sm:$0xff]
      %v400 = vld [vmem:[%s1 + $0x5a8] sm:$0xff]
      %v401 = vld [vmem:[%s1 + $0x5b0] sm:$0xff]
      %v402 = vld [vmem:[%s1 + $0x5b8] sm:$0xff]
      %v403 = vld [vmem:[%s1 + $0x5c0] sm:$0xff]
      %v404 = vld [vmem:[%s1 + $0x5c8] sm:$0xff]
      %v405 = vld [vmem:[%s1 + $0x5d0] sm:$0xff]
      %v406 = vld [vmem:[%s1 + $0x5d8] sm:$0xff]
      %v407 = vld [vmem:[%s1 + $0x5e0] sm:$0xff]
      %v408 = vld [vmem:[%s1 + $0x5e8] sm:$0xff]
      %v409 = vld [vmem:[%s1 + $0x5f0] sm:$0xff]
      %v410 = vld [vmem:[%s1 + $0x5f8] sm:$0xff]
      %v411 = vld [vmem:[%s1 + $0x600] sm:$0xff]
      %v412 = vld [vmem:[%s1 + $0x608] sm:$0xff]
      %v413 = vld [vmem:[%s1 + $0x610] sm:$0xff]
      %v414 = vld [vmem:[%s1 + $0x618] sm:$0xff]
      %v415 = vld [vmem:[%s1 + $0x620] sm:$0xff]
      %v416 = vld [vmem:[%s1 + $0x628] sm:$0xff]
      %v417 = vld [vmem:[%s1 + $0x630] sm:$0xff]
      %v418 = vld [vmem:[%s1 + $0x638] sm:$0xff]
      %v419 = vld [vmem:[%s1 + $0x640] sm:$0xff]
      %v420 = vld [vmem:[%s1 + $0x648] sm:$0xff]
      %v421 = vld [vmem:[%s1 + $0x650] sm:$0xff]
      %v422 = vld [vmem:[%s1 + $0x658] sm:$0xff]
      %v423 = vld [vmem:[%s1 + $0x660] sm:$0xff]
      %v424 = vld [vmem:[%s1 + $0x668] sm:$0xff]
      %v425 = vld [vmem:[%s1 + $0x670] sm:$0xff]
      %v426 = vld [vmem:[%s1 + $0x678] sm:$0xff]
      %v427 = vld [vmem:[%s1 + $0x680] sm:$0xff]
      %v428 = vld [vmem:[%s1 + $0x688] sm:$0xff]
      %v429 = vld [vmem:[%s1 + $0x690] sm:$0xff]
      %v430 = vld [vmem:[%s1 + $0x698] sm:$0xff]
      %v431 = vld [vmem:[%s1 + $0x6a0] sm:$0xff]
      %v432 = vld [vmem:[%s1 + $0x6a8] sm:$0xff]
      %v433 = vld [vmem:[%s1 + $0x6b0] sm:$0xff]
      %v434 = vld [vmem:[%s1 + $0x6b8] sm:$0xff]
      %v435 = vld [vmem:[%s1 + $0x6c0] sm:$0xff]
      %v436 = vld [vmem:[%s1 + $0x6c8] sm:$0xff]
      %v437 = vld [vmem:[%s1 + $0x6d0] sm:$0xff]
      %v438 = vld [vmem:[%s1 + $0x6d8] sm:$0xff]
      %v439 = vld [vmem:[%s1 + $0x6e0] sm:$0xff]
      %v440 = vld [vmem:[%s1 + $0x6e8] sm:$0xff]
      %v441 = vld [vmem:[%s1 + $0x6f0] sm:$0xff]
      %v442 = vld [vmem:[%s1 + $0x6f8] sm:$0xff]
      %v443 = vld [vmem:[%s1 + $0x700] sm:$0xff]
      %v444 = vld [vmem:[%s1 + $0x708] sm:$0xff]
      %v445 = vld [vmem:[%s1 + $0x710] sm:$0xff]
      %v446 = vld [vmem:[%s1 + $0x718] sm:$0xff]
      %v447 = vld [vmem:[%s1 + $0x720] sm:$0xff]
      %v448 = vld [vmem:[%s1 + $0x728] sm:$0xff]
      %v449 = vld [vmem:[%s1 + $0x730] sm:$0xff]
      %v450 = vld [vmem:[%s1 + $0x738] sm:$0xff]
      %v451 = vld [vmem:[%s1 + $0x740] sm:$0xff]
      %v452 = vld [vmem:[%s1 + $0x748] sm:$0xff]
      %v453 = vld [vmem:[%s1 + $0x750] sm:$0xff]
      %v454 = vld [vmem:[%s1 + $0x758] sm:$0xff]
      %v455 = vld [vmem:[%s1 + $0x760] sm:$0xff]
      %v456 = vld [vmem:[%s1 + $0x768] sm:$0xff]
      %v457 = vld [vmem:[%s1 + $0x770] sm:$0xff]
      %v458 = vld [vmem:[%s1 + $0x778] sm:$0xff]
      %v459 = vld [vmem:[%s1 + $0x780] sm:$0xff]
      %v460 = vld [vmem:[%s1 + $0x788] sm:$0xff]
      %v461 = vld [vmem:[%s1 + $0x790] sm:$0xff]
      %v462 = vld [vmem:[%s1 + $0x798] sm:$0xff]
      %v463 = vld [vmem:[%s1 + $0x7a0] sm:$0xff]
      %v464 = vld [vmem:[%s1 + $0x7a8] sm:$0xff]
      %v465 = vld [vmem:[%s1 + $0x7b0] sm:$0xff]
      %v466 = vld [vmem:[%s1 + $0x7b8] sm:$0xff]
      %v467 = vld [vmem:[%s1 + $0x7c0] sm:$0xff]
      %v468 = vld [vmem:[%s1 + $0x7c8] sm:$0xff]
      %v469 = vld [vmem:[%s1 + $0x7d0] sm:$0xff]
      %v470 = vld [vmem:[%s1 + $0x7d8] sm:$0xff]
      %v471 = vld [vmem:[%s1 + $0x7e0] sm:$0xff]
      %v472 = vld [vmem:[%s1 + $0x7e8] sm:$0xff]
      %v473 = vld [vmem:[%s1 + $0x7f0] sm:$0xff]
      %v474 = vld [vmem:[%s1 + $0x7f8] sm:$0xff]
      loop: start=0, step=1, limit=22
      $region29: #{_lambda_.3} parent=27 // loop_pre_header
        _
      $region30: #{_lambda_.3} parent=27 // loop_header
        %s476 = sphi 0, %s480
        %p477 = scmp.ge.s32.totalorder %s476, 22
        %v481 = vphi 0.0, %v2438
        %v482 = vphi 0.0, %v2439
        %v483 = vphi 0.0, %v2464
        %v484 = vphi 0.0, %v2465
      $region31: #{_lambda_.3} parent=27 // loop_header_branch
        %479 = sbr.rel (%p477) target = $region35
      $region32: #{_lambda_.3} parent=27 // loop_body
        %s485 = smul.u32 %s476, 12
        %s486 = smul.addr %s485, 4
        %s487 = scalar_lea.vmem %s205, %s486
        %v488 = vld [vmem:[%s487] sm:$0xff]
        %v489 = vld [vmem:[%s487 + $0x8] sm:$0xff]
        %v490 = vld [vmem:[%s487 + $0x10] sm:$0xff]
        %v491 = vld [vmem:[%s487 + $0x18] sm:$0xff]
        %v492 = vld [vmem:[%s487 + $0x20] sm:$0xff]
        %v493 = vld [vmem:[%s487 + $0x28] sm:$0xff]
        %v494 = vld [vmem:[%s487 + $0x30] sm:$0xff]
        %v495 = vld [vmem:[%s487 + $0x38] sm:$0xff]
        %v496 = vld [vmem:[%s487 + $0x40] sm:$0xff]
        %v497 = vld [vmem:[%s487 + $0x48] sm:$0xff]
        %v498 = vld [vmem:[%s487 + $0x50] sm:$0xff]
        %v499 = vld [vmem:[%s487 + $0x58] sm:$0xff]
        %v506 = vunpack.c.l.b16 %v488
        %v507 = vunpack.c.h.b16 %v488
        %v508 = vunpack.c.l.b16 %v489
        %v509 = vunpack.c.h.b16 %v489
        %v510 = vunpack.c.l.b16 %v490
        %v511 = vunpack.c.h.b16 %v490
        %v512 = vunpack.c.l.b16 %v491
        %v513 = vunpack.c.h.b16 %v491
        %v514 = vunpack.c.l.b16 %v492
        %v515 = vunpack.c.h.b16 %v492
        %v516 = vunpack.c.l.b16 %v493
        %v517 = vunpack.c.h.b16 %v493
        %v518 = vpack.c.b16 %v510, %v506
        %v519 = vpack.c.b16 %v511, %v507
        %v520 = vpack.c.b16 %v512, %v508
        %v521 = vpack.c.b16 %v513, %v509
        %v522 = vpack.c.b16 %v514, %v514
        %v523 = vpack.c.b16 %v515, %v515
        %v524 = vpack.c.b16 %v516, %v516
        %v525 = vpack.c.b16 %v517, %v517
        %vm534 = vsmask.f32 7424
        %v536 = vshrl.u32 %v518, 16
        %v538 = vshll.u32 %v518, 16
        %v540 = vrot.slane %v538, 1
        %v541 = vor.u32 %v536, %v540
        %v543 = vshll.u32 %v522, 16
        %v545 = vrot.slane %v543, 1
        %v546 = vsel %vm534, %v541, %v545
        %v548 = vshrl.u32 %v519, 16
        %v550 = vshll.u32 %v519, 16
        %v552 = vrot.slane %v550, 1
        %v553 = vor.u32 %v548, %v552
        %v555 = vshll.u32 %v523, 16
        %v557 = vrot.slane %v555, 1
        %v558 = vsel %vm534, %v553, %v557
        %v560 = vshrl.u32 %v520, 16
        %v562 = vshll.u32 %v520, 16
        %v564 = vrot.slane %v562, 1
        %v565 = vor.u32 %v560, %v564
        %v567 = vshll.u32 %v524, 16
        %v569 = vrot.slane %v567, 1
        %v570 = vsel %vm534, %v565, %v569
        %v572 = vshrl.u32 %v521, 16
        %v574 = vshll.u32 %v521, 16
        %v576 = vrot.slane %v574, 1
        %v577 = vor.u32 %v572, %v576
        %v579 = vshll.u32 %v525, 16
        %v581 = vrot.slane %v579, 1
        %v582 = vsel %vm534, %v577, %v581
        %v583 = vshrl.u32 %v522, 16
        %v585 = vor.u32 %v583, %v545
        %v586 = vshrl.u32 %v523, 16
        %v588 = vor.u32 %v586, %v557
        %v589 = vshrl.u32 %v524, 16
        %v591 = vor.u32 %v589, %v569
        %v592 = vshrl.u32 %v525, 16
        %v594 = vor.u32 %v592, %v581
        %v609 = vunpack.c.l.b16 %v494
        %v610 = vunpack.c.h.b16 %v494
        %v611 = vunpack.c.l.b16 %v495
        %v612 = vunpack.c.h.b16 %v495
        %v613 = vunpack.c.l.b16 %v496
        %v614 = vunpack.c.h.b16 %v496
        %v615 = vunpack.c.l.b16 %v497
        %v616 = vunpack.c.h.b16 %v497
        %v617 = vunpack.c.l.b16 %v498
        %v618 = vunpack.c.h.b16 %v498
        %v619 = vunpack.c.l.b16 %v499
        %v620 = vunpack.c.h.b16 %v499
        %v621 = vpack.c.b16 %v613, %v609
        %v622 = vpack.c.b16 %v614, %v610
        %v623 = vpack.c.b16 %v615, %v611
        %v624 = vpack.c.b16 %v616, %v612
        %v625 = vpack.c.b16 %v617, %v617
        %v626 = vpack.c.b16 %v618, %v618
        %v627 = vpack.c.b16 %v619, %v619
        %v628 = vpack.c.b16 %v620, %v620
        %v638 = vshrl.u32 %v621, 16
        %v640 = vshll.u32 %v621, 16
        %v642 = vrot.slane %v640, 1
        %v643 = vor.u32 %v638, %v642
        %v645 = vshll.u32 %v625, 16
        %v647 = vrot.slane %v645, 1
        %v648 = vsel %vm534, %v643, %v647
        %v650 = vshrl.u32 %v622, 16
        %v652 = vshll.u32 %v622, 16
        %v654 = vrot.slane %v652, 1
        %v655 = vor.u32 %v650, %v654
        %v657 = vshll.u32 %v626, 16
        %v659 = vrot.slane %v657, 1
        %v660 = vsel %vm534, %v655, %v659
        %v662 = vshrl.u32 %v623, 16
        %v664 = vshll.u32 %v623, 16
        %v666 = vrot.slane %v664, 1
        %v667 = vor.u32 %v662, %v666
        %v669 = vshll.u32 %v627, 16
        %v671 = vrot.slane %v669, 1
        %v672 = vsel %vm534, %v667, %v671
        %v674 = vshrl.u32 %v624, 16
        %v676 = vshll.u32 %v624, 16
        %v678 = vrot.slane %v676, 1
        %v679 = vor.u32 %v674, %v678
        %v681 = vshll.u32 %v628, 16
        %v683 = vrot.slane %v681, 1
        %v684 = vsel %vm534, %v679, %v683
        %v685 = vshrl.u32 %v625, 16
        %v687 = vor.u32 %v685, %v647
        %v688 = vshrl.u32 %v626, 16
        %v690 = vor.u32 %v688, %v659
        %v691 = vshrl.u32 %v627, 16
        %v693 = vor.u32 %v691, %v671
        %v694 = vshrl.u32 %v628, 16
        %v696 = vor.u32 %v694, %v683
        %v961 = vunpack.c.l.b16 %v219
        %v962 = vunpack.c.h.b16 %v219
        %v963 = vunpack.c.l.b16 %v220
        %v964 = vunpack.c.h.b16 %v220
        %v965 = vunpack.c.l.b16 %v221
        %v966 = vunpack.c.h.b16 %v221
        %v967 = vunpack.c.l.b16 %v222
        %v968 = vunpack.c.h.b16 %v222
        %v969 = vunpack.c.l.b16 %v223
        %v970 = vunpack.c.h.b16 %v223
        %v971 = vunpack.c.l.b16 %v224
        %v972 = vunpack.c.h.b16 %v224
        %v973 = vunpack.c.l.b16 %v225
        %v974 = vunpack.c.h.b16 %v225
        %v975 = vunpack.c.l.b16 %v226
        %v976 = vunpack.c.h.b16 %v226
        %v977 = vunpack.c.l.b16 %v227
        %v978 = vunpack.c.h.b16 %v227
        %v979 = vunpack.c.l.b16 %v228
        %v980 = vunpack.c.h.b16 %v228
        %v981 = vunpack.c.l.b16 %v229
        %v982 = vunpack.c.h.b16 %v229
        %v983 = vunpack.c.l.b16 %v230
        %v984 = vunpack.c.h.b16 %v230
        %v985 = vunpack.c.l.b16 %v231
        %v986 = vunpack.c.h.b16 %v231
        %v987 = vunpack.c.l.b16 %v232
        %v988 = vunpack.c.h.b16 %v232
        %v989 = vunpack.c.l.b16 %v233
        %v990 = vunpack.c.h.b16 %v233
        %v991 = vunpack.c.l.b16 %v234
        %v992 = vunpack.c.h.b16 %v234
        %v993 = vunpack.c.l.b16 %v235
        %v994 = vunpack.c.h.b16 %v235
        %v995 = vunpack.c.l.b16 %v236
        %v996 = vunpack.c.h.b16 %v236
        %v997 = vunpack.c.l.b16 %v237
        %v998 = vunpack.c.h.b16 %v237
        %v999 = vunpack.c.l.b16 %v238
        %v1000 = vunpack.c.h.b16 %v238
        %v1001 = vunpack.c.l.b16 %v239
        %v1002 = vunpack.c.h.b16 %v239
        %v1003 = vunpack.c.l.b16 %v240
        %v1004 = vunpack.c.h.b16 %v240
        %v1005 = vunpack.c.l.b16 %v241
        %v1006 = vunpack.c.h.b16 %v241
        %v1007 = vunpack.c.l.b16 %v242
        %v1008 = vunpack.c.h.b16 %v242
        %v1009 = vunpack.c.l.b16 %v243
        %v1010 = vunpack.c.h.b16 %v243
        %v1011 = vunpack.c.l.b16 %v244
        %v1012 = vunpack.c.h.b16 %v244
        %v1013 = vunpack.c.l.b16 %v245
        %v1014 = vunpack.c.h.b16 %v245
        %v1015 = vunpack.c.l.b16 %v246
        %v1016 = vunpack.c.h.b16 %v246
        %v1017 = vunpack.c.l.b16 %v247
        %v1018 = vunpack.c.h.b16 %v247
        %v1019 = vunpack.c.l.b16 %v248
        %v1020 = vunpack.c.h.b16 %v248
        %v1021 = vunpack.c.l.b16 %v249
        %v1022 = vunpack.c.h.b16 %v249
        %v1023 = vunpack.c.l.b16 %v250
        %v1024 = vunpack.c.h.b16 %v250
        %v1025 = vunpack.c.l.b16 %v251
        %v1026 = vunpack.c.h.b16 %v251
        %v1027 = vunpack.c.l.b16 %v252
        %v1028 = vunpack.c.h.b16 %v252
        %v1029 = vunpack.c.l.b16 %v253
        %v1030 = vunpack.c.h.b16 %v253
        %v1031 = vunpack.c.l.b16 %v254
        %v1032 = vunpack.c.h.b16 %v254
        %v1033 = vunpack.c.l.b16 %v255
        %v1034 = vunpack.c.h.b16 %v255
        %v1035 = vunpack.c.l.b16 %v256
        %v1036 = vunpack.c.h.b16 %v256
        %v1037 = vunpack.c.l.b16 %v257
        %v1038 = vunpack.c.h.b16 %v257
        %v1039 = vunpack.c.l.b16 %v258
        %v1040 = vunpack.c.h.b16 %v258
        %v1041 = vunpack.c.l.b16 %v259
        %v1042 = vunpack.c.h.b16 %v259
        %v1043 = vunpack.c.l.b16 %v260
        %v1044 = vunpack.c.h.b16 %v260
        %v1045 = vunpack.c.l.b16 %v261
        %v1046 = vunpack.c.h.b16 %v261
        %v1047 = vunpack.c.l.b16 %v262
        %v1048 = vunpack.c.h.b16 %v262
        %v1049 = vunpack.c.l.b16 %v263
        %v1050 = vunpack.c.h.b16 %v263
        %v1051 = vunpack.c.l.b16 %v264
        %v1052 = vunpack.c.h.b16 %v264
        %v1053 = vunpack.c.l.b16 %v265
        %v1054 = vunpack.c.h.b16 %v265
        %v1055 = vunpack.c.l.b16 %v266
        %v1056 = vunpack.c.h.b16 %v266
        %v1057 = vunpack.c.l.b16 %v267
        %v1058 = vunpack.c.h.b16 %v267
        %v1059 = vunpack.c.l.b16 %v268
        %v1060 = vunpack.c.h.b16 %v268
        %v1061 = vunpack.c.l.b16 %v269
        %v1062 = vunpack.c.h.b16 %v269
        %v1063 = vunpack.c.l.b16 %v270
        %v1064 = vunpack.c.h.b16 %v270
        %v1065 = vunpack.c.l.b16 %v271
        %v1066 = vunpack.c.h.b16 %v271
        %v1067 = vunpack.c.l.b16 %v272
        %v1068 = vunpack.c.h.b16 %v272
        %v1069 = vunpack.c.l.b16 %v273
        %v1070 = vunpack.c.h.b16 %v273
        %v1071 = vunpack.c.l.b16 %v274
        %v1072 = vunpack.c.h.b16 %v274
        %v1073 = vunpack.c.l.b16 %v275
        %v1074 = vunpack.c.h.b16 %v275
        %v1075 = vunpack.c.l.b16 %v276
        %v1076 = vunpack.c.h.b16 %v276
        %v1077 = vunpack.c.l.b16 %v277
        %v1078 = vunpack.c.h.b16 %v277
        %v1079 = vunpack.c.l.b16 %v278
        %v1080 = vunpack.c.h.b16 %v278
        %v1081 = vunpack.c.l.b16 %v279
        %v1082 = vunpack.c.h.b16 %v279
        %v1083 = vunpack.c.l.b16 %v280
        %v1084 = vunpack.c.h.b16 %v280
        %v1085 = vunpack.c.l.b16 %v281
        %v1086 = vunpack.c.h.b16 %v281
        %v1087 = vunpack.c.l.b16 %v282
        %v1088 = vunpack.c.h.b16 %v282
        %v1089 = vunpack.c.l.b16 %v283
        %v1090 = vunpack.c.h.b16 %v283
        %v1091 = vunpack.c.l.b16 %v284
        %v1092 = vunpack.c.h.b16 %v284
        %v1093 = vunpack.c.l.b16 %v285
        %v1094 = vunpack.c.h.b16 %v285
        %v1095 = vunpack.c.l.b16 %v286
        %v1096 = vunpack.c.h.b16 %v286
        %v1097 = vunpack.c.l.b16 %v287
        %v1098 = vunpack.c.h.b16 %v287
        %v1099 = vunpack.c.l.b16 %v288
        %v1100 = vunpack.c.h.b16 %v288
        %v1101 = vunpack.c.l.b16 %v289
        %v1102 = vunpack.c.h.b16 %v289
        %v1103 = vunpack.c.l.b16 %v290
        %v1104 = vunpack.c.h.b16 %v290
        %v1105 = vunpack.c.l.b16 %v291
        %v1106 = vunpack.c.h.b16 %v291
        %v1107 = vunpack.c.l.b16 %v292
        %v1108 = vunpack.c.h.b16 %v292
        %v1109 = vunpack.c.l.b16 %v293
        %v1110 = vunpack.c.h.b16 %v293
        %v1111 = vunpack.c.l.b16 %v294
        %v1112 = vunpack.c.h.b16 %v294
        %v1113 = vunpack.c.l.b16 %v295
        %v1114 = vunpack.c.h.b16 %v295
        %v1115 = vunpack.c.l.b16 %v296
        %v1116 = vunpack.c.h.b16 %v296
        %v1117 = vunpack.c.l.b16 %v297
        %v1118 = vunpack.c.h.b16 %v297
        %v1119 = vunpack.c.l.b16 %v298
        %v1120 = vunpack.c.h.b16 %v298
        %v1121 = vunpack.c.l.b16 %v299
        %v1122 = vunpack.c.h.b16 %v299
        %v1123 = vunpack.c.l.b16 %v300
        %v1124 = vunpack.c.h.b16 %v300
        %v1125 = vunpack.c.l.b16 %v301
        %v1126 = vunpack.c.h.b16 %v301
        %v1127 = vunpack.c.l.b16 %v302
        %v1128 = vunpack.c.h.b16 %v302
        %v1129 = vunpack.c.l.b16 %v303
        %v1130 = vunpack.c.h.b16 %v303
        %v1131 = vunpack.c.l.b16 %v304
        %v1132 = vunpack.c.h.b16 %v304
        %v1133 = vunpack.c.l.b16 %v305
        %v1134 = vunpack.c.h.b16 %v305
        %v1135 = vunpack.c.l.b16 %v306
        %v1136 = vunpack.c.h.b16 %v306
        %v1137 = vunpack.c.l.b16 %v307
        %v1138 = vunpack.c.h.b16 %v307
        %v1139 = vunpack.c.l.b16 %v308
        %v1140 = vunpack.c.h.b16 %v308
        %v1141 = vunpack.c.l.b16 %v309
        %v1142 = vunpack.c.h.b16 %v309
        %v1143 = vunpack.c.l.b16 %v310
        %v1144 = vunpack.c.h.b16 %v310
        %v1145 = vunpack.c.l.b16 %v311
        %v1146 = vunpack.c.h.b16 %v311
        %v1147 = vunpack.c.l.b16 %v312
        %v1148 = vunpack.c.h.b16 %v312
        %v1149 = vunpack.c.l.b16 %v313
        %v1150 = vunpack.c.h.b16 %v313
        %v1151 = vunpack.c.l.b16 %v314
        %v1152 = vunpack.c.h.b16 %v314
        %v1153 = vunpack.c.l.b16 %v315
        %v1154 = vunpack.c.h.b16 %v315
        %v1155 = vunpack.c.l.b16 %v316
        %v1156 = vunpack.c.h.b16 %v316
        %v1157 = vunpack.c.l.b16 %v317
        %v1158 = vunpack.c.h.b16 %v317
        %v1159 = vunpack.c.l.b16 %v318
        %v1160 = vunpack.c.h.b16 %v318
        %v1161 = vunpack.c.l.b16 %v319
        %v1162 = vunpack.c.h.b16 %v319
        %v1163 = vunpack.c.l.b16 %v320
        %v1164 = vunpack.c.h.b16 %v320
        %v1165 = vunpack.c.l.b16 %v321
        %v1166 = vunpack.c.h.b16 %v321
        %v1167 = vunpack.c.l.b16 %v322
        %v1168 = vunpack.c.h.b16 %v322
        %v1169 = vunpack.c.l.b16 %v323
        %v1170 = vunpack.c.h.b16 %v323
        %v1171 = vunpack.c.l.b16 %v324
        %v1172 = vunpack.c.h.b16 %v324
        %v1173 = vunpack.c.l.b16 %v325
        %v1174 = vunpack.c.h.b16 %v325
        %v1175 = vunpack.c.l.b16 %v326
        %v1176 = vunpack.c.h.b16 %v326
        %v1177 = vunpack.c.l.b16 %v327
        %v1178 = vunpack.c.h.b16 %v327
        %v1179 = vunpack.c.l.b16 %v328
        %v1180 = vunpack.c.h.b16 %v328
        %v1181 = vunpack.c.l.b16 %v329
        %v1182 = vunpack.c.h.b16 %v329
        %v1183 = vunpack.c.l.b16 %v330
        %v1184 = vunpack.c.h.b16 %v330
        %v1185 = vunpack.c.l.b16 %v331
        %v1186 = vunpack.c.h.b16 %v331
        %v1187 = vunpack.c.l.b16 %v332
        %v1188 = vunpack.c.h.b16 %v332
        %v1189 = vunpack.c.l.b16 %v333
        %v1190 = vunpack.c.h.b16 %v333
        %v1191 = vunpack.c.l.b16 %v334
        %v1192 = vunpack.c.h.b16 %v334
        %v1193 = vunpack.c.l.b16 %v335
        %v1194 = vunpack.c.h.b16 %v335
        %v1195 = vunpack.c.l.b16 %v336
        %v1196 = vunpack.c.h.b16 %v336
        %v1197 = vunpack.c.l.b16 %v337
        %v1198 = vunpack.c.h.b16 %v337
        %v1199 = vunpack.c.l.b16 %v338
        %v1200 = vunpack.c.h.b16 %v338
        %v1201 = vunpack.c.l.b16 %v339
        %v1202 = vunpack.c.h.b16 %v339
        %v1203 = vunpack.c.l.b16 %v340
        %v1204 = vunpack.c.h.b16 %v340
        %v1205 = vunpack.c.l.b16 %v341
        %v1206 = vunpack.c.h.b16 %v341
        %v1207 = vunpack.c.l.b16 %v342
        %v1208 = vunpack.c.h.b16 %v342
        %v1209 = vunpack.c.l.b16 %v343
        %v1210 = vunpack.c.h.b16 %v343
        %v1211 = vunpack.c.l.b16 %v344
        %v1212 = vunpack.c.h.b16 %v344
        %v1213 = vunpack.c.l.b16 %v345
        %v1214 = vunpack.c.h.b16 %v345
        %v1215 = vunpack.c.l.b16 %v346
        %v1216 = vunpack.c.h.b16 %v346
        %v1217 = vunpack.c.l.b16 %v347
        %v1218 = vunpack.c.h.b16 %v347
        %v1219 = vunpack.c.l.b16 %v348
        %v1220 = vunpack.c.h.b16 %v348
        %v1221 = vunpack.c.l.b16 %v349
        %v1222 = vunpack.c.h.b16 %v349
        %v1223 = vunpack.c.l.b16 %v350
        %v1224 = vunpack.c.h.b16 %v350
        %v1225 = vunpack.c.l.b16 %v351
        %v1226 = vunpack.c.h.b16 %v351
        %v1227 = vunpack.c.l.b16 %v352
        %v1228 = vunpack.c.h.b16 %v352
        %v1229 = vunpack.c.l.b16 %v353
        %v1230 = vunpack.c.h.b16 %v353
        %v1231 = vunpack.c.l.b16 %v354
        %v1232 = vunpack.c.h.b16 %v354
        %v1233 = vunpack.c.l.b16 %v355
        %v1234 = vunpack.c.h.b16 %v355
        %v1235 = vunpack.c.l.b16 %v356
        %v1236 = vunpack.c.h.b16 %v356
        %v1237 = vunpack.c.l.b16 %v357
        %v1238 = vunpack.c.h.b16 %v357
        %v1239 = vunpack.c.l.b16 %v358
        %v1240 = vunpack.c.h.b16 %v358
        %v1241 = vunpack.c.l.b16 %v359
        %v1242 = vunpack.c.h.b16 %v359
        %v1243 = vunpack.c.l.b16 %v360
        %v1244 = vunpack.c.h.b16 %v360
        %v1245 = vunpack.c.l.b16 %v361
        %v1246 = vunpack.c.h.b16 %v361
        %v1247 = vunpack.c.l.b16 %v362
        %v1248 = vunpack.c.h.b16 %v362
        %v1249 = vunpack.c.l.b16 %v363
        %v1250 = vunpack.c.h.b16 %v363
        %v1251 = vunpack.c.l.b16 %v364
        %v1252 = vunpack.c.h.b16 %v364
        %v1253 = vunpack.c.l.b16 %v365
        %v1254 = vunpack.c.h.b16 %v365
        %v1255 = vunpack.c.l.b16 %v366
        %v1256 = vunpack.c.h.b16 %v366
        %v1257 = vunpack.c.l.b16 %v367
        %v1258 = vunpack.c.h.b16 %v367
        %v1259 = vunpack.c.l.b16 %v368
        %v1260 = vunpack.c.h.b16 %v368
        %v1261 = vunpack.c.l.b16 %v369
        %v1262 = vunpack.c.h.b16 %v369
        %v1263 = vunpack.c.l.b16 %v370
        %v1264 = vunpack.c.h.b16 %v370
        %v1265 = vunpack.c.l.b16 %v371
        %v1266 = vunpack.c.h.b16 %v371
        %v1267 = vunpack.c.l.b16 %v372
        %v1268 = vunpack.c.h.b16 %v372
        %v1269 = vunpack.c.l.b16 %v373
        %v1270 = vunpack.c.h.b16 %v373
        %v1271 = vunpack.c.l.b16 %v374
        %v1272 = vunpack.c.h.b16 %v374
        %v1273 = vunpack.c.l.b16 %v375
        %v1274 = vunpack.c.h.b16 %v375
        %v1275 = vunpack.c.l.b16 %v376
        %v1276 = vunpack.c.h.b16 %v376
        %v1277 = vunpack.c.l.b16 %v377
        %v1278 = vunpack.c.h.b16 %v377
        %v1279 = vunpack.c.l.b16 %v378
        %v1280 = vunpack.c.h.b16 %v378
        %v1281 = vunpack.c.l.b16 %v379
        %v1282 = vunpack.c.h.b16 %v379
        %v1283 = vunpack.c.l.b16 %v380
        %v1284 = vunpack.c.h.b16 %v380
        %v1285 = vunpack.c.l.b16 %v381
        %v1286 = vunpack.c.h.b16 %v381
        %v1287 = vunpack.c.l.b16 %v382
        %v1288 = vunpack.c.h.b16 %v382
        %v1289 = vunpack.c.l.b16 %v383
        %v1290 = vunpack.c.h.b16 %v383
        %v1291 = vunpack.c.l.b16 %v384
        %v1292 = vunpack.c.h.b16 %v384
        %v1293 = vunpack.c.l.b16 %v385
        %v1294 = vunpack.c.h.b16 %v385
        %v1295 = vunpack.c.l.b16 %v386
        %v1296 = vunpack.c.h.b16 %v386
        %v1297 = vunpack.c.l.b16 %v387
        %v1298 = vunpack.c.h.b16 %v387
        %v1299 = vunpack.c.l.b16 %v388
        %v1300 = vunpack.c.h.b16 %v388
        %v1301 = vunpack.c.l.b16 %v389
        %v1302 = vunpack.c.h.b16 %v389
        %v1303 = vunpack.c.l.b16 %v390
        %v1304 = vunpack.c.h.b16 %v390
        %v1305 = vunpack.c.l.b16 %v391
        %v1306 = vunpack.c.h.b16 %v391
        %v1307 = vunpack.c.l.b16 %v392
        %v1308 = vunpack.c.h.b16 %v392
        %v1309 = vunpack.c.l.b16 %v393
        %v1310 = vunpack.c.h.b16 %v393
        %v1311 = vunpack.c.l.b16 %v394
        %v1312 = vunpack.c.h.b16 %v394
        %v1313 = vunpack.c.l.b16 %v395
        %v1314 = vunpack.c.h.b16 %v395
        %v1315 = vunpack.c.l.b16 %v396
        %v1316 = vunpack.c.h.b16 %v396
        %v1317 = vunpack.c.l.b16 %v397
        %v1318 = vunpack.c.h.b16 %v397
        %v1319 = vunpack.c.l.b16 %v398
        %v1320 = vunpack.c.h.b16 %v398
        %v1321 = vunpack.c.l.b16 %v399
        %v1322 = vunpack.c.h.b16 %v399
        %v1323 = vunpack.c.l.b16 %v400
        %v1324 = vunpack.c.h.b16 %v400
        %v1325 = vunpack.c.l.b16 %v401
        %v1326 = vunpack.c.h.b16 %v401
        %v1327 = vunpack.c.l.b16 %v402
        %v1328 = vunpack.c.h.b16 %v402
        %v1329 = vunpack.c.l.b16 %v403
        %v1330 = vunpack.c.h.b16 %v403
        %v1331 = vunpack.c.l.b16 %v404
        %v1332 = vunpack.c.h.b16 %v404
        %v1333 = vunpack.c.l.b16 %v405
        %v1334 = vunpack.c.h.b16 %v405
        %v1335 = vunpack.c.l.b16 %v406
        %v1336 = vunpack.c.h.b16 %v406
        %v1337 = vunpack.c.l.b16 %v407
        %v1338 = vunpack.c.h.b16 %v407
        %v1339 = vunpack.c.l.b16 %v408
        %v1340 = vunpack.c.h.b16 %v408
        %v1341 = vunpack.c.l.b16 %v409
        %v1342 = vunpack.c.h.b16 %v409
        %v1343 = vunpack.c.l.b16 %v410
        %v1344 = vunpack.c.h.b16 %v410
        %v1345 = vunpack.c.l.b16 %v411
        %v1346 = vunpack.c.h.b16 %v411
        %v1347 = vunpack.c.l.b16 %v412
        %v1348 = vunpack.c.h.b16 %v412
        %v1349 = vunpack.c.l.b16 %v413
        %v1350 = vunpack.c.h.b16 %v413
        %v1351 = vunpack.c.l.b16 %v414
        %v1352 = vunpack.c.h.b16 %v414
        %v1353 = vunpack.c.l.b16 %v415
        %v1354 = vunpack.c.h.b16 %v415
        %v1355 = vunpack.c.l.b16 %v416
        %v1356 = vunpack.c.h.b16 %v416
        %v1357 = vunpack.c.l.b16 %v417
        %v1358 = vunpack.c.h.b16 %v417
        %v1359 = vunpack.c.l.b16 %v418
        %v1360 = vunpack.c.h.b16 %v418
        %v1361 = vunpack.c.l.b16 %v419
        %v1362 = vunpack.c.h.b16 %v419
        %v1363 = vunpack.c.l.b16 %v420
        %v1364 = vunpack.c.h.b16 %v420
        %v1365 = vunpack.c.l.b16 %v421
        %v1366 = vunpack.c.h.b16 %v421
        %v1367 = vunpack.c.l.b16 %v422
        %v1368 = vunpack.c.h.b16 %v422
        %v1369 = vunpack.c.l.b16 %v423
        %v1370 = vunpack.c.h.b16 %v423
        %v1371 = vunpack.c.l.b16 %v424
        %v1372 = vunpack.c.h.b16 %v424
        %v1373 = vunpack.c.l.b16 %v425
        %v1374 = vunpack.c.h.b16 %v425
        %v1375 = vunpack.c.l.b16 %v426
        %v1376 = vunpack.c.h.b16 %v426
        %v1377 = vunpack.c.l.b16 %v427
        %v1378 = vunpack.c.h.b16 %v427
        %v1379 = vunpack.c.l.b16 %v428
        %v1380 = vunpack.c.h.b16 %v428
        %v1381 = vunpack.c.l.b16 %v429
        %v1382 = vunpack.c.h.b16 %v429
        %v1383 = vunpack.c.l.b16 %v430
        %v1384 = vunpack.c.h.b16 %v430
        %v1385 = vunpack.c.l.b16 %v431
        %v1386 = vunpack.c.h.b16 %v431
        %v1387 = vunpack.c.l.b16 %v432
        %v1388 = vunpack.c.h.b16 %v432
        %v1389 = vunpack.c.l.b16 %v433
        %v1390 = vunpack.c.h.b16 %v433
        %v1391 = vunpack.c.l.b16 %v434
        %v1392 = vunpack.c.h.b16 %v434
        %v1393 = vunpack.c.l.b16 %v435
        %v1394 = vunpack.c.h.b16 %v435
        %v1395 = vunpack.c.l.b16 %v436
        %v1396 = vunpack.c.h.b16 %v436
        %v1397 = vunpack.c.l.b16 %v437
        %v1398 = vunpack.c.h.b16 %v437
        %v1399 = vunpack.c.l.b16 %v438
        %v1400 = vunpack.c.h.b16 %v438
        %v1401 = vunpack.c.l.b16 %v439
        %v1402 = vunpack.c.h.b16 %v439
        %v1403 = vunpack.c.l.b16 %v440
        %v1404 = vunpack.c.h.b16 %v440
        %v1405 = vunpack.c.l.b16 %v441
        %v1406 = vunpack.c.h.b16 %v441
        %v1407 = vunpack.c.l.b16 %v442
        %v1408 = vunpack.c.h.b16 %v442
        %v1409 = vunpack.c.l.b16 %v443
        %v1410 = vunpack.c.h.b16 %v443
        %v1411 = vunpack.c.l.b16 %v444
        %v1412 = vunpack.c.h.b16 %v444
        %v1413 = vunpack.c.l.b16 %v445
        %v1414 = vunpack.c.h.b16 %v445
        %v1415 = vunpack.c.l.b16 %v446
        %v1416 = vunpack.c.h.b16 %v446
        %v1417 = vunpack.c.l.b16 %v447
        %v1418 = vunpack.c.h.b16 %v447
        %v1419 = vunpack.c.l.b16 %v448
        %v1420 = vunpack.c.h.b16 %v448
        %v1421 = vunpack.c.l.b16 %v449
        %v1422 = vunpack.c.h.b16 %v449
        %v1423 = vunpack.c.l.b16 %v450
        %v1424 = vunpack.c.h.b16 %v450
        %v1425 = vunpack.c.l.b16 %v451
        %v1426 = vunpack.c.h.b16 %v451
        %v1427 = vunpack.c.l.b16 %v452
        %v1428 = vunpack.c.h.b16 %v452
        %v1429 = vunpack.c.l.b16 %v453
        %v1430 = vunpack.c.h.b16 %v453
        %v1431 = vunpack.c.l.b16 %v454
        %v1432 = vunpack.c.h.b16 %v454
        %v1433 = vunpack.c.l.b16 %v455
        %v1434 = vunpack.c.h.b16 %v455
        %v1435 = vunpack.c.l.b16 %v456
        %v1436 = vunpack.c.h.b16 %v456
        %v1437 = vunpack.c.l.b16 %v457
        %v1438 = vunpack.c.h.b16 %v457
        %v1439 = vunpack.c.l.b16 %v458
        %v1440 = vunpack.c.h.b16 %v458
        %v1441 = vunpack.c.l.b16 %v459
        %v1442 = vunpack.c.h.b16 %v459
        %v1443 = vunpack.c.l.b16 %v460
        %v1444 = vunpack.c.h.b16 %v460
        %v1445 = vunpack.c.l.b16 %v461
        %v1446 = vunpack.c.h.b16 %v461
        %v1447 = vunpack.c.l.b16 %v462
        %v1448 = vunpack.c.h.b16 %v462
        %v1449 = vunpack.c.l.b16 %v463
        %v1450 = vunpack.c.h.b16 %v463
        %v1451 = vunpack.c.l.b16 %v464
        %v1452 = vunpack.c.h.b16 %v464
        %v1453 = vunpack.c.l.b16 %v465
        %v1454 = vunpack.c.h.b16 %v465
        %v1455 = vunpack.c.l.b16 %v466
        %v1456 = vunpack.c.h.b16 %v466
        %v1457 = vunpack.c.l.b16 %v467
        %v1458 = vunpack.c.h.b16 %v467
        %v1459 = vunpack.c.l.b16 %v468
        %v1460 = vunpack.c.h.b16 %v468
        %v1461 = vunpack.c.l.b16 %v469
        %v1462 = vunpack.c.h.b16 %v469
        %v1463 = vunpack.c.l.b16 %v470
        %v1464 = vunpack.c.h.b16 %v470
        %v1465 = vunpack.c.l.b16 %v471
        %v1466 = vunpack.c.h.b16 %v471
        %v1467 = vunpack.c.l.b16 %v472
        %v1468 = vunpack.c.h.b16 %v472
        %v1469 = vunpack.c.l.b16 %v473
        %v1470 = vunpack.c.h.b16 %v473
        %v1471 = vunpack.c.l.b16 %v474
        %v1472 = vunpack.c.h.b16 %v474
        %v1473 = vpack.c.b16 %v963, %v961
        %v1474 = vpack.c.b16 %v964, %v962
        %v1475 = vpack.c.b16 %v967, %v965
        %v1476 = vpack.c.b16 %v968, %v966
        %v1477 = vpack.c.b16 %v971, %v969
        %v1478 = vpack.c.b16 %v972, %v970
        %v1479 = vpack.c.b16 %v975, %v973
        %v1480 = vpack.c.b16 %v976, %v974
        %v1481 = vpack.c.b16 %v979, %v977
        %v1482 = vpack.c.b16 %v980, %v978
        %v1483 = vpack.c.b16 %v983, %v981
        %v1484 = vpack.c.b16 %v984, %v982
        %v1485 = vpack.c.b16 %v987, %v985
        %v1486 = vpack.c.b16 %v988, %v986
        %v1487 = vpack.c.b16 %v991, %v989
        %v1488 = vpack.c.b16 %v992, %v990
        %v1489 = vpack.c.b16 %v995, %v993
        %v1490 = vpack.c.b16 %v996, %v994
        %v1491 = vpack.c.b16 %v999, %v997
        %v1492 = vpack.c.b16 %v1000, %v998
        %v1493 = vpack.c.b16 %v1003, %v1001
        %v1494 = vpack.c.b16 %v1004, %v1002
        %v1495 = vpack.c.b16 %v1007, %v1005
        %v1496 = vpack.c.b16 %v1008, %v1006
        %v1497 = vpack.c.b16 %v1011, %v1009
        %v1498 = vpack.c.b16 %v1012, %v1010
        %v1499 = vpack.c.b16 %v1015, %v1013
        %v1500 = vpack.c.b16 %v1016, %v1014
        %v1501 = vpack.c.b16 %v1019, %v1017
        %v1502 = vpack.c.b16 %v1020, %v1018
        %v1503 = vpack.c.b16 %v1023, %v1021
        %v1504 = vpack.c.b16 %v1024, %v1022
        %v1505 = vpack.c.b16 %v1027, %v1025
        %v1506 = vpack.c.b16 %v1028, %v1026
        %v1507 = vpack.c.b16 %v1031, %v1029
        %v1508 = vpack.c.b16 %v1032, %v1030
        %v1509 = vpack.c.b16 %v1035, %v1033
        %v1510 = vpack.c.b16 %v1036, %v1034
        %v1511 = vpack.c.b16 %v1039, %v1037
        %v1512 = vpack.c.b16 %v1040, %v1038
        %v1513 = vpack.c.b16 %v1043, %v1041
        %v1514 = vpack.c.b16 %v1044, %v1042
        %v1515 = vpack.c.b16 %v1047, %v1045
        %v1516 = vpack.c.b16 %v1048, %v1046
        %v1517 = vpack.c.b16 %v1051, %v1049
        %v1518 = vpack.c.b16 %v1052, %v1050
        %v1519 = vpack.c.b16 %v1055, %v1053
        %v1520 = vpack.c.b16 %v1056, %v1054
        %v1521 = vpack.c.b16 %v1059, %v1057
        %v1522 = vpack.c.b16 %v1060, %v1058
        %v1523 = vpack.c.b16 %v1063, %v1061
        %v1524 = vpack.c.b16 %v1064, %v1062
        %v1525 = vpack.c.b16 %v1067, %v1065
        %v1526 = vpack.c.b16 %v1068, %v1066
        %v1527 = vpack.c.b16 %v1071, %v1069
        %v1528 = vpack.c.b16 %v1072, %v1070
        %v1529 = vpack.c.b16 %v1075, %v1073
        %v1530 = vpack.c.b16 %v1076, %v1074
        %v1531 = vpack.c.b16 %v1079, %v1077
        %v1532 = vpack.c.b16 %v1080, %v1078
        %v1533 = vpack.c.b16 %v1083, %v1081
        %v1534 = vpack.c.b16 %v1084, %v1082
        %v1535 = vpack.c.b16 %v1087, %v1085
        %v1536 = vpack.c.b16 %v1088, %v1086
        %v1537 = vpack.c.b16 %v1091, %v1089
        %v1538 = vpack.c.b16 %v1092, %v1090
        %v1539 = vpack.c.b16 %v1095, %v1093
        %v1540 = vpack.c.b16 %v1096, %v1094
        %v1541 = vpack.c.b16 %v1099, %v1097
        %v1542 = vpack.c.b16 %v1100, %v1098
        %v1543 = vpack.c.b16 %v1103, %v1101
        %v1544 = vpack.c.b16 %v1104, %v1102
        %v1545 = vpack.c.b16 %v1107, %v1105
        %v1546 = vpack.c.b16 %v1108, %v1106
        %v1547 = vpack.c.b16 %v1111, %v1109
        %v1548 = vpack.c.b16 %v1112, %v1110
        %v1549 = vpack.c.b16 %v1115, %v1113
        %v1550 = vpack.c.b16 %v1116, %v1114
        %v1551 = vpack.c.b16 %v1119, %v1117
        %v1552 = vpack.c.b16 %v1120, %v1118
        %v1553 = vpack.c.b16 %v1123, %v1121
        %v1554 = vpack.c.b16 %v1124, %v1122
        %v1555 = vpack.c.b16 %v1127, %v1125
        %v1556 = vpack.c.b16 %v1128, %v1126
        %v1557 = vpack.c.b16 %v1131, %v1129
        %v1558 = vpack.c.b16 %v1132, %v1130
        %v1559 = vpack.c.b16 %v1135, %v1133
        %v1560 = vpack.c.b16 %v1136, %v1134
        %v1561 = vpack.c.b16 %v1139, %v1137
        %v1562 = vpack.c.b16 %v1140, %v1138
        %v1563 = vpack.c.b16 %v1143, %v1141
        %v1564 = vpack.c.b16 %v1144, %v1142
        %v1565 = vpack.c.b16 %v1147, %v1145
        %v1566 = vpack.c.b16 %v1148, %v1146
        %v1567 = vpack.c.b16 %v1151, %v1149
        %v1568 = vpack.c.b16 %v1152, %v1150
        %v1569 = vpack.c.b16 %v1155, %v1153
        %v1570 = vpack.c.b16 %v1156, %v1154
        %v1571 = vpack.c.b16 %v1159, %v1157
        %v1572 = vpack.c.b16 %v1160, %v1158
        %v1573 = vpack.c.b16 %v1163, %v1161
        %v1574 = vpack.c.b16 %v1164, %v1162
        %v1575 = vpack.c.b16 %v1167, %v1165
        %v1576 = vpack.c.b16 %v1168, %v1166
        %v1577 = vpack.c.b16 %v1171, %v1169
        %v1578 = vpack.c.b16 %v1172, %v1170
        %v1579 = vpack.c.b16 %v1175, %v1173
        %v1580 = vpack.c.b16 %v1176, %v1174
        %v1581 = vpack.c.b16 %v1179, %v1177
        %v1582 = vpack.c.b16 %v1180, %v1178
        %v1583 = vpack.c.b16 %v1183, %v1181
        %v1584 = vpack.c.b16 %v1184, %v1182
        %v1585 = vpack.c.b16 %v1187, %v1185
        %v1586 = vpack.c.b16 %v1188, %v1186
        %v1587 = vpack.c.b16 %v1191, %v1189
        %v1588 = vpack.c.b16 %v1192, %v1190
        %v1589 = vpack.c.b16 %v1195, %v1193
        %v1590 = vpack.c.b16 %v1196, %v1194
        %v1591 = vpack.c.b16 %v1199, %v1197
        %v1592 = vpack.c.b16 %v1200, %v1198
        %v1593 = vpack.c.b16 %v1203, %v1201
        %v1594 = vpack.c.b16 %v1204, %v1202
        %v1595 = vpack.c.b16 %v1207, %v1205
        %v1596 = vpack.c.b16 %v1208, %v1206
        %v1597 = vpack.c.b16 %v1211, %v1209
        %v1598 = vpack.c.b16 %v1212, %v1210
        %v1599 = vpack.c.b16 %v1215, %v1213
        %v1600 = vpack.c.b16 %v1216, %v1214
        %v1601 = vpack.c.b16 %v1219, %v1217
        %v1602 = vpack.c.b16 %v1220, %v1218
        %v1603 = vpack.c.b16 %v1223, %v1221
        %v1604 = vpack.c.b16 %v1224, %v1222
        %v1605 = vpack.c.b16 %v1227, %v1225
        %v1606 = vpack.c.b16 %v1228, %v1226
        %v1607 = vpack.c.b16 %v1231, %v1229
        %v1608 = vpack.c.b16 %v1232, %v1230
        %v1609 = vpack.c.b16 %v1235, %v1233
        %v1610 = vpack.c.b16 %v1236, %v1234
        %v1611 = vpack.c.b16 %v1239, %v1237
        %v1612 = vpack.c.b16 %v1240, %v1238
        %v1613 = vpack.c.b16 %v1243, %v1241
        %v1614 = vpack.c.b16 %v1244, %v1242
        %v1615 = vpack.c.b16 %v1247, %v1245
        %v1616 = vpack.c.b16 %v1248, %v1246
        %v1617 = vpack.c.b16 %v1251, %v1249
        %v1618 = vpack.c.b16 %v1252, %v1250
        %v1619 = vpack.c.b16 %v1255, %v1253
        %v1620 = vpack.c.b16 %v1256, %v1254
        %v1621 = vpack.c.b16 %v1259, %v1257
        %v1622 = vpack.c.b16 %v1260, %v1258
        %v1623 = vpack.c.b16 %v1263, %v1261
        %v1624 = vpack.c.b16 %v1264, %v1262
        %v1625 = vpack.c.b16 %v1267, %v1265
        %v1626 = vpack.c.b16 %v1268, %v1266
        %v1627 = vpack.c.b16 %v1271, %v1269
        %v1628 = vpack.c.b16 %v1272, %v1270
        %v1629 = vpack.c.b16 %v1275, %v1273
        %v1630 = vpack.c.b16 %v1276, %v1274
        %v1631 = vpack.c.b16 %v1279, %v1277
        %v1632 = vpack.c.b16 %v1280, %v1278
        %v1633 = vpack.c.b16 %v1283, %v1281
        %v1634 = vpack.c.b16 %v1284, %v1282
        %v1635 = vpack.c.b16 %v1287, %v1285
        %v1636 = vpack.c.b16 %v1288, %v1286
        %v1637 = vpack.c.b16 %v1291, %v1289
        %v1638 = vpack.c.b16 %v1292, %v1290
        %v1639 = vpack.c.b16 %v1295, %v1293
        %v1640 = vpack.c.b16 %v1296, %v1294
        %v1641 = vpack.c.b16 %v1299, %v1297
        %v1642 = vpack.c.b16 %v1300, %v1298
        %v1643 = vpack.c.b16 %v1303, %v1301
        %v1644 = vpack.c.b16 %v1304, %v1302
        %v1645 = vpack.c.b16 %v1307, %v1305
        %v1646 = vpack.c.b16 %v1308, %v1306
        %v1647 = vpack.c.b16 %v1311, %v1309
        %v1648 = vpack.c.b16 %v1312, %v1310
        %v1649 = vpack.c.b16 %v1315, %v1313
        %v1650 = vpack.c.b16 %v1316, %v1314
        %v1651 = vpack.c.b16 %v1319, %v1317
        %v1652 = vpack.c.b16 %v1320, %v1318
        %v1653 = vpack.c.b16 %v1323, %v1321
        %v1654 = vpack.c.b16 %v1324, %v1322
        %v1655 = vpack.c.b16 %v1327, %v1325
        %v1656 = vpack.c.b16 %v1328, %v1326
        %v1657 = vpack.c.b16 %v1331, %v1329
        %v1658 = vpack.c.b16 %v1332, %v1330
        %v1659 = vpack.c.b16 %v1335, %v1333
        %v1660 = vpack.c.b16 %v1336, %v1334
        %v1661 = vpack.c.b16 %v1339, %v1337
        %v1662 = vpack.c.b16 %v1340, %v1338
        %v1663 = vpack.c.b16 %v1343, %v1341
        %v1664 = vpack.c.b16 %v1344, %v1342
        %v1665 = vpack.c.b16 %v1347, %v1345
        %v1666 = vpack.c.b16 %v1348, %v1346
        %v1667 = vpack.c.b16 %v1351, %v1349
        %v1668 = vpack.c.b16 %v1352, %v1350
        %v1669 = vpack.c.b16 %v1355, %v1353
        %v1670 = vpack.c.b16 %v1356, %v1354
        %v1671 = vpack.c.b16 %v1359, %v1357
        %v1672 = vpack.c.b16 %v1360, %v1358
        %v1673 = vpack.c.b16 %v1363, %v1361
        %v1674 = vpack.c.b16 %v1364, %v1362
        %v1675 = vpack.c.b16 %v1367, %v1365
        %v1676 = vpack.c.b16 %v1368, %v1366
        %v1677 = vpack.c.b16 %v1371, %v1369
        %v1678 = vpack.c.b16 %v1372, %v1370
        %v1679 = vpack.c.b16 %v1375, %v1373
        %v1680 = vpack.c.b16 %v1376, %v1374
        %v1681 = vpack.c.b16 %v1379, %v1377
        %v1682 = vpack.c.b16 %v1380, %v1378
        %v1683 = vpack.c.b16 %v1383, %v1381
        %v1684 = vpack.c.b16 %v1384, %v1382
        %v1685 = vpack.c.b16 %v1387, %v1385
        %v1686 = vpack.c.b16 %v1388, %v1386
        %v1687 = vpack.c.b16 %v1391, %v1389
        %v1688 = vpack.c.b16 %v1392, %v1390
        %v1689 = vpack.c.b16 %v1395, %v1393
        %v1690 = vpack.c.b16 %v1396, %v1394
        %v1691 = vpack.c.b16 %v1399, %v1397
        %v1692 = vpack.c.b16 %v1400, %v1398
        %v1693 = vpack.c.b16 %v1403, %v1401
        %v1694 = vpack.c.b16 %v1404, %v1402
        %v1695 = vpack.c.b16 %v1407, %v1405
        %v1696 = vpack.c.b16 %v1408, %v1406
        %v1697 = vpack.c.b16 %v1411, %v1409
        %v1698 = vpack.c.b16 %v1412, %v1410
        %v1699 = vpack.c.b16 %v1415, %v1413
        %v1700 = vpack.c.b16 %v1416, %v1414
        %v1701 = vpack.c.b16 %v1419, %v1417
        %v1702 = vpack.c.b16 %v1420, %v1418
        %v1703 = vpack.c.b16 %v1423, %v1421
        %v1704 = vpack.c.b16 %v1424, %v1422
        %v1705 = vpack.c.b16 %v1427, %v1425
        %v1706 = vpack.c.b16 %v1428, %v1426
        %v1707 = vpack.c.b16 %v1431, %v1429
        %v1708 = vpack.c.b16 %v1432, %v1430
        %v1709 = vpack.c.b16 %v1435, %v1433
        %v1710 = vpack.c.b16 %v1436, %v1434
        %v1711 = vpack.c.b16 %v1439, %v1437
        %v1712 = vpack.c.b16 %v1440, %v1438
        %v1713 = vpack.c.b16 %v1443, %v1441
        %v1714 = vpack.c.b16 %v1444, %v1442
        %v1715 = vpack.c.b16 %v1447, %v1445
        %v1716 = vpack.c.b16 %v1448, %v1446
        %v1717 = vpack.c.b16 %v1451, %v1449
        %v1718 = vpack.c.b16 %v1452, %v1450
        %v1719 = vpack.c.b16 %v1455, %v1453
        %v1720 = vpack.c.b16 %v1456, %v1454
        %v1721 = vpack.c.b16 %v1459, %v1457
        %v1722 = vpack.c.b16 %v1460, %v1458
        %v1723 = vpack.c.b16 %v1463, %v1461
        %v1724 = vpack.c.b16 %v1464, %v1462
        %v1725 = vpack.c.b16 %v1467, %v1465
        %v1726 = vpack.c.b16 %v1468, %v1466
        %v1727 = vpack.c.b16 %v1471, %v1469
        %v1728 = vpack.c.b16 %v1472, %v1470
        %1985 = vmatprep.subr.bf16.mxu0 %v1474
        %1986 = vmatpush1.bf16.msra.mxu0 %v1473
        %1987 = vmatprep.subr.bf16.mxu0 %v1476
        %1988 = vmatpush1.bf16.msra.mxu0 %v1475
        %1989 = vmatprep.subr.bf16.mxu0 %v1478
        %1990 = vmatpush1.bf16.msra.mxu0 %v1477
        %1991 = vmatprep.subr.bf16.mxu0 %v1480
        %1992 = vmatpush1.bf16.msra.mxu0 %v1479
        %1993 = vmatprep.subr.bf16.mxu0 %v1482
        %1994 = vmatpush1.bf16.msra.mxu0 %v1481
        %1995 = vmatprep.subr.bf16.mxu0 %v1484
        %1996 = vmatpush1.bf16.msra.mxu0 %v1483
        %1997 = vmatprep.subr.bf16.mxu0 %v1486
        %1998 = vmatpush1.bf16.msra.mxu0 %v1485
        %1999 = vmatprep.subr.bf16.mxu0 %v1488
        %2000 = vmatpush1.bf16.msra.mxu0 %v1487
        %2001 = vmatprep.subr.bf16.mxu0 %v1490
        %2002 = vmatpush1.bf16.msra.mxu0 %v1489
        %2003 = vmatprep.subr.bf16.mxu0 %v1492
        %2004 = vmatpush1.bf16.msra.mxu0 %v1491
        %2005 = vmatprep.subr.bf16.mxu0 %v1494
        %2006 = vmatpush1.bf16.msra.mxu0 %v1493
        %2007 = vmatprep.subr.bf16.mxu0 %v1496
        %2008 = vmatpush1.bf16.msra.mxu0 %v1495
        %2009 = vmatprep.subr.bf16.mxu0 %v1498
        %2010 = vmatpush1.bf16.msra.mxu0 %v1497
        %2011 = vmatprep.subr.bf16.mxu0 %v1500
        %2012 = vmatpush1.bf16.msra.mxu0 %v1499
        %2013 = vmatprep.subr.bf16.mxu0 %v1502
        %2014 = vmatpush1.bf16.msra.mxu0 %v1501
        %2015 = vmatprep.subr.bf16.mxu0 %v1504
        %2016 = vmatpush1.bf16.msra.mxu0 %v1503
        %2017 = vmatprep.mubr.bf16.mxu0 %v519
        %2018 = vmatmul.mubr.bf16.gmra.mrb[0].mxu0 %v518
        %v2019 = vpop.f32.mrb[0].mxu0
        %v2020 = vadd.f32 0.0, %v2019
        %v2021 = vpop.f32.mrb[0].mxu0
        %v2022 = vadd.f32 0.0, %v2021
        %v2023 = vpop.f32.mrb[0].mxu0
        %v2024 = vadd.f32 0.0, %v2023
        %v2025 = vpop.f32.mrb[0].mxu0
        %v2026 = vadd.f32 0.0, %v2025
        %2027 = vmatprep.mubr.bf16.mxu0 %v523
        %2028 = vmatmul.mubr.bf16.gmra.mrb[0].mxu0 %v522
        %v2029 = vpop.f32.mrb[0].mxu0
        %v2030 = vadd.f32 0.0, %v2029
        %v2031 = vpop.f32.mrb[0].mxu0
        %v2032 = vadd.f32 0.0, %v2031
        %v2033 = vpop.f32.mrb[0].mxu0
        %v2034 = vpop.f32.mrb[0].mxu0
        %2035 = vdwg.mxu0
        %2036 = vmatprep.subr.bf16.mxu0 %v1506
        %2037 = vmatpush1.bf16.msra.mxu0 %v1505
        %2038 = vmatprep.subr.bf16.mxu0 %v1508
        %2039 = vmatpush1.bf16.msra.mxu0 %v1507
        %2040 = vmatprep.subr.bf16.mxu0 %v1510
        %2041 = vmatpush1.bf16.msra.mxu0 %v1509
        %2042 = vmatprep.subr.bf16.mxu0 %v1512
        %2043 = vmatpush1.bf16.msra.mxu0 %v1511
        %2044 = vmatprep.subr.bf16.mxu0 %v1514
        %2045 = vmatpush1.bf16.msra.mxu0 %v1513
        %2046 = vmatprep.subr.bf16.mxu0 %v1516
        %2047 = vmatpush1.bf16.msra.mxu0 %v1515
        %2048 = vmatprep.subr.bf16.mxu0 %v1518
        %2049 = vmatpush1.bf16.msra.mxu0 %v1517
        %2050 = vmatprep.subr.bf16.mxu0 %v1520
        %2051 = vmatpush1.bf16.msra.mxu0 %v1519
        %2052 = vmatprep.subr.bf16.mxu0 %v1522
        %2053 = vmatpush1.bf16.msra.mxu0 %v1521
        %2054 = vmatprep.subr.bf16.mxu0 %v1524
        %2055 = vmatpush1.bf16.msra.mxu0 %v1523
        %2056 = vmatprep.subr.bf16.mxu0 %v1526
        %2057 = vmatpush1.bf16.msra.mxu0 %v1525
        %2058 = vmatprep.subr.bf16.mxu0 %v1528
        %2059 = vmatpush1.bf16.msra.mxu0 %v1527
        %2060 = vmatprep.subr.bf16.mxu0 %v1530
        %2061 = vmatpush1.bf16.msra.mxu0 %v1529
        %2062 = vmatprep.subr.bf16.mxu0 %v1532
        %2063 = vmatpush1.bf16.msra.mxu0 %v1531
        %2064 = vmatprep.subr.bf16.mxu0 %v1534
        %2065 = vmatpush1.bf16.msra.mxu0 %v1533
        %2066 = vmatprep.subr.bf16.mxu0 %v1536
        %2067 = vmatpush1.bf16.msra.mxu0 %v1535
        %2068 = vmatprep.mubr.bf16.mxu0 %v521
        %2069 = vmatmul.mubr.bf16.gmra.mrb[0].mxu0 %v520
        %v2070 = vpop.f32.mrb[0].mxu0
        %v2071 = vadd.f32 %v2020, %v2070
        %v2072 = vpop.f32.mrb[0].mxu0
        %v2073 = vadd.f32 %v2022, %v2072
        %v2074 = vpop.f32.mrb[0].mxu0
        %v2075 = vadd.f32 %v2024, %v2074
        %v2076 = vpop.f32.mrb[0].mxu0
        %v2077 = vadd.f32 %v2026, %v2076
        %2078 = vmatprep.mubr.bf16.mxu0 %v525
        %2079 = vmatmul.mubr.bf16.gmra.mrb[0].mxu0 %v524
        %v2080 = vpop.f32.mrb[0].mxu0
        %v2081 = vadd.f32 %v2030, %v2080
        %v2082 = vpop.f32.mrb[0].mxu0
        %v2083 = vadd.f32 %v2032, %v2082
        %v2084 = vpop.f32.mrb[0].mxu0
        %v2085 = vpop.f32.mrb[0].mxu0
        %2086 = vdwg.mxu0
        %2087 = vmatprep.subr.bf16.mxu0 %v1538
        %2088 = vmatpush1.bf16.msra.mxu0 %v1537
        %2089 = vmatprep.subr.bf16.mxu0 %v1540
        %2090 = vmatpush1.bf16.msra.mxu0 %v1539
        %2091 = vmatprep.subr.bf16.mxu0 %v1542
        %2092 = vmatpush1.bf16.msra.mxu0 %v1541
        %2093 = vmatprep.subr.bf16.mxu0 %v1544
        %2094 = vmatpush1.bf16.msra.mxu0 %v1543
        %2095 = vmatprep.subr.bf16.mxu0 %v1546
        %2096 = vmatpush1.bf16.msra.mxu0 %v1545
        %2097 = vmatprep.subr.bf16.mxu0 %v1548
        %2098 = vmatpush1.bf16.msra.mxu0 %v1547
        %2099 = vmatprep.subr.bf16.mxu0 %v1550
        %2100 = vmatpush1.bf16.msra.mxu0 %v1549
        %2101 = vmatprep.subr.bf16.mxu0 %v1552
        %2102 = vmatpush1.bf16.msra.mxu0 %v1551
        %2103 = vmatprep.subr.bf16.mxu0 %v1554
        %2104 = vmatpush1.bf16.msra.mxu0 %v1553
        %2105 = vmatprep.subr.bf16.mxu0 %v1556
        %2106 = vmatpush1.bf16.msra.mxu0 %v1555
        %2107 = vmatprep.subr.bf16.mxu0 %v1558
        %2108 = vmatpush1.bf16.msra.mxu0 %v1557
        %2109 = vmatprep.subr.bf16.mxu0 %v1560
        %2110 = vmatpush1.bf16.msra.mxu0 %v1559
        %2111 = vmatprep.subr.bf16.mxu0 %v1562
        %2112 = vmatpush1.bf16.msra.mxu0 %v1561
        %2113 = vmatprep.subr.bf16.mxu0 %v1564
        %2114 = vmatpush1.bf16.msra.mxu0 %v1563
        %2115 = vmatprep.subr.bf16.mxu0 %v1566
        %2116 = vmatpush1.bf16.msra.mxu0 %v1565
        %2117 = vmatprep.subr.bf16.mxu0 %v1568
        %2118 = vmatpush1.bf16.msra.mxu0 %v1567
        %2119 = vmatprep.mubr.bf16.mxu0 %v558
        %2120 = vmatmul.mubr.bf16.gmra.mrb[0].mxu0 %v546
        %v2121 = vpop.f32.mrb[0].mxu0
        %v2122 = vadd.f32 %v2071, %v2121
        %v2123 = vpop.f32.mrb[0].mxu0
        %v2124 = vadd.f32 %v2073, %v2123
        %v2125 = vpop.f32.mrb[0].mxu0
        %v2126 = vadd.f32 %v2075, %v2125
        %v2127 = vpop.f32.mrb[0].mxu0
        %v2128 = vadd.f32 %v2077, %v2127
        %2129 = vmatprep.mubr.bf16.mxu0 %v588
        %2130 = vmatmul.mubr.bf16.gmra.mrb[0].mxu0 %v585
        %v2131 = vpop.f32.mrb[0].mxu0
        %v2132 = vadd.f32 %v2081, %v2131
        %v2133 = vpop.f32.mrb[0].mxu0
        %v2134 = vadd.f32 %v2083, %v2133
        %v2135 = vpop.f32.mrb[0].mxu0
        %v2136 = vpop.f32.mrb[0].mxu0
        %2137 = vdwg.mxu0
        %2138 = vmatprep.subr.bf16.mxu0 %v1570
        %2139 = vmatpush1.bf16.msra.mxu0 %v1569
        %2140 = vmatprep.subr.bf16.mxu0 %v1572
        %2141 = vmatpush1.bf16.msra.mxu0 %v1571
        %2142 = vmatprep.subr.bf16.mxu0 %v1574
        %2143 = vmatpush1.bf16.msra.mxu0 %v1573
        %2144 = vmatprep.subr.bf16.mxu0 %v1576
        %2145 = vmatpush1.bf16.msra.mxu0 %v1575
        %2146 = vmatprep.subr.bf16.mxu0 %v1578
        %2147 = vmatpush1.bf16.msra.mxu0 %v1577
        %2148 = vmatprep.subr.bf16.mxu0 %v1580
        %2149 = vmatpush1.bf16.msra.mxu0 %v1579
        %2150 = vmatprep.subr.bf16.mxu0 %v1582
        %2151 = vmatpush1.bf16.msra.mxu0 %v1581
        %2152 = vmatprep.subr.bf16.mxu0 %v1584
        %2153 = vmatpush1.bf16.msra.mxu0 %v1583
        %2154 = vmatprep.subr.bf16.mxu0 %v1586
        %2155 = vmatpush1.bf16.msra.mxu0 %v1585
        %2156 = vmatprep.subr.bf16.mxu0 %v1588
        %2157 = vmatpush1.bf16.msra.mxu0 %v1587
        %2158 = vmatprep.subr.bf16.mxu0 %v1590
        %2159 = vmatpush1.bf16.msra.mxu0 %v1589
        %2160 = vmatprep.subr.bf16.mxu0 %v1592
        %2161 = vmatpush1.bf16.msra.mxu0 %v1591
        %2162 = vmatprep.subr.bf16.mxu0 %v1594
        %2163 = vmatpush1.bf16.msra.mxu0 %v1593
        %2164 = vmatprep.subr.bf16.mxu0 %v1596
        %2165 = vmatpush1.bf16.msra.mxu0 %v1595
        %2166 = vmatprep.subr.bf16.mxu0 %v1598
        %2167 = vmatpush1.bf16.msra.mxu0 %v1597
        %2168 = vmatprep.subr.bf16.mxu0 %v1600
        %2169 = vmatpush1.bf16.msra.mxu0 %v1599
        %2170 = vmatprep.mubr.bf16.mxu0 %v582
        %2171 = vmatmul.mubr.bf16.gmra.mrb[0].mxu0 %v570
        %v2172 = vpop.f32.mrb[0].mxu0
        %v2173 = vadd.f32 %v2122, %v2172
        %v2174 = vpop.f32.mrb[0].mxu0
        %v2175 = vadd.f32 %v2124, %v2174
        %v2176 = vpop.f32.mrb[0].mxu0
        %v2177 = vadd.f32 %v2126, %v2176
        %v2178 = vpop.f32.mrb[0].mxu0
        %v2179 = vadd.f32 %v2128, %v2178
        %2180 = vmatprep.mubr.bf16.mxu0 %v594
        %2181 = vmatmul.mubr.bf16.gmra.mrb[0].mxu0 %v591
        %v2182 = vpop.f32.mrb[0].mxu0
        %v2183 = vadd.f32 %v2132, %v2182
        %v2184 = vpop.f32.mrb[0].mxu0
        %v2185 = vadd.f32 %v2134, %v2184
        %v2186 = vpop.f32.mrb[0].mxu0
        %v2187 = vpop.f32.mrb[0].mxu0
        %2188 = vdwg.mxu0
        %2189 = vmatprep.subr.bf16.mxu0 %v1602
        %2190 = vmatpush1.bf16.msra.mxu0 %v1601
        %2191 = vmatprep.subr.bf16.mxu0 %v1604
        %2192 = vmatpush1.bf16.msra.mxu0 %v1603
        %2193 = vmatprep.subr.bf16.mxu0 %v1606
        %2194 = vmatpush1.bf16.msra.mxu0 %v1605
        %2195 = vmatprep.subr.bf16.mxu0 %v1608
        %2196 = vmatpush1.bf16.msra.mxu0 %v1607
        %2197 = vmatprep.subr.bf16.mxu0 %v1610
        %2198 = vmatpush1.bf16.msra.mxu0 %v1609
        %2199 = vmatprep.subr.bf16.mxu0 %v1612
        %2200 = vmatpush1.bf16.msra.mxu0 %v1611
        %2201 = vmatprep.subr.bf16.mxu0 %v1614
        %2202 = vmatpush1.bf16.msra.mxu0 %v1613
        %2203 = vmatprep.subr.bf16.mxu0 %v1616
        %2204 = vmatpush1.bf16.msra.mxu0 %v1615
        %2205 = vmatprep.subr.bf16.mxu0 %v1618
        %2206 = vmatpush1.bf16.msra.mxu0 %v1617
        %2207 = vmatprep.subr.bf16.mxu0 %v1620
        %2208 = vmatpush1.bf16.msra.mxu0 %v1619
        %2209 = vmatprep.subr.bf16.mxu0 %v1622
        %2210 = vmatpush1.bf16.msra.mxu0 %v1621
        %2211 = vmatprep.subr.bf16.mxu0 %v1624
        %2212 = vmatpush1.bf16.msra.mxu0 %v1623
        %2213 = vmatprep.subr.bf16.mxu0 %v1626
        %2214 = vmatpush1.bf16.msra.mxu0 %v1625
        %2215 = vmatprep.subr.bf16.mxu0 %v1628
        %2216 = vmatpush1.bf16.msra.mxu0 %v1627
        %2217 = vmatprep.subr.bf16.mxu0 %v1630
        %2218 = vmatpush1.bf16.msra.mxu0 %v1629
        %2219 = vmatprep.subr.bf16.mxu0 %v1632
        %2220 = vmatpush1.bf16.msra.mxu0 %v1631
        %2221 = vmatprep.mubr.bf16.mxu0 %v622
        %2222 = vmatmul.mubr.bf16.gmra.mrb[0].mxu0 %v621
        %v2223 = vpop.f32.mrb[0].mxu0
        %v2224 = vadd.f32 %v2173, %v2223
        %v2225 = vpop.f32.mrb[0].mxu0
        %v2226 = vadd.f32 %v2175, %v2225
        %v2227 = vpop.f32.mrb[0].mxu0
        %v2228 = vadd.f32 %v2177, %v2227
        %v2229 = vpop.f32.mrb[0].mxu0
        %v2230 = vadd.f32 %v2179, %v2229
        %2231 = vmatprep.mubr.bf16.mxu0 %v626
        %2232 = vmatmul.mubr.bf16.gmra.mrb[0].mxu0 %v625
        %v2233 = vpop.f32.mrb[0].mxu0
        %v2234 = vadd.f32 %v2183, %v2233
        %v2235 = vpop.f32.mrb[0].mxu0
        %v2236 = vadd.f32 %v2185, %v2235
        %v2237 = vpop.f32.mrb[0].mxu0
        %v2238 = vpop.f32.mrb[0].mxu0
        %2239 = vdwg.mxu0
        %2240 = vmatprep.subr.bf16.mxu0 %v1634
        %2241 = vmatpush1.bf16.msra.mxu0 %v1633
        %2242 = vmatprep.subr.bf16.mxu0 %v1636
        %2243 = vmatpush1.bf16.msra.mxu0 %v1635
        %2244 = vmatprep.subr.bf16.mxu0 %v1638
        %2245 = vmatpush1.bf16.msra.mxu0 %v1637
        %2246 = vmatprep.subr.bf16.mxu0 %v1640
        %2247 = vmatpush1.bf16.msra.mxu0 %v1639
        %2248 = vmatprep.subr.bf16.mxu0 %v1642
        %2249 = vmatpush1.bf16.msra.mxu0 %v1641
        %2250 = vmatprep.subr.bf16.mxu0 %v1644
        %2251 = vmatpush1.bf16.msra.mxu0 %v1643
        %2252 = vmatprep.subr.bf16.mxu0 %v1646
        %2253 = vmatpush1.bf16.msra.mxu0 %v1645
        %2254 = vmatprep.subr.bf16.mxu0 %v1648
        %2255 = vmatpush1.bf16.msra.mxu0 %v1647
        %2256 = vmatprep.subr.bf16.mxu0 %v1650
        %2257 = vmatpush1.bf16.msra.mxu0 %v1649
        %2258 = vmatprep.subr.bf16.mxu0 %v1652
        %2259 = vmatpush1.bf16.msra.mxu0 %v1651
        %2260 = vmatprep.subr.bf16.mxu0 %v1654
        %2261 = vmatpush1.bf16.msra.mxu0 %v1653
        %2262 = vmatprep.subr.bf16.mxu0 %v1656
        %2263 = vmatpush1.bf16.msra.mxu0 %v1655
        %2264 = vmatprep.subr.bf16.mxu0 %v1658
        %2265 = vmatpush1.bf16.msra.mxu0 %v1657
        %2266 = vmatprep.subr.bf16.mxu0 %v1660
        %2267 = vmatpush1.bf16.msra.mxu0 %v1659
        %2268 = vmatprep.subr.bf16.mxu0 %v1662
        %2269 = vmatpush1.bf16.msra.mxu0 %v1661
        %2270 = vmatprep.subr.bf16.mxu0 %v1664
        %2271 = vmatpush1.bf16.msra.mxu0 %v1663
        %2272 = vmatprep.mubr.bf16.mxu0 %v624
        %2273 = vmatmul.mubr.bf16.gmra.mrb[0].mxu0 %v623
        %v2274 = vpop.f32.mrb[0].mxu0
        %v2275 = vadd.f32 %v2224, %v2274
        %v2276 = vpop.f32.mrb[0].mxu0
        %v2277 = vadd.f32 %v2226, %v2276
        %v2278 = vpop.f32.mrb[0].mxu0
        %v2279 = vadd.f32 %v2228, %v2278
        %v2280 = vpop.f32.mrb[0].mxu0
        %v2281 = vadd.f32 %v2230, %v2280
        %2282 = vmatprep.mubr.bf16.mxu0 %v628
        %2283 = vmatmul.mubr.bf16.gmra.mrb[0].mxu0 %v627
        %v2284 = vpop.f32.mrb[0].mxu0
        %v2285 = vadd.f32 %v2234, %v2284
        %v2286 = vpop.f32.mrb[0].mxu0
        %v2287 = vadd.f32 %v2236, %v2286
        %v2288 = vpop.f32.mrb[0].mxu0
        %v2289 = vpop.f32.mrb[0].mxu0
        %2290 = vdwg.mxu0
        %2291 = vmatprep.subr.bf16.mxu0 %v1666
        %2292 = vmatpush1.bf16.msra.mxu0 %v1665
        %2293 = vmatprep.subr.bf16.mxu0 %v1668
        %2294 = vmatpush1.bf16.msra.mxu0 %v1667
        %2295 = vmatprep.subr.bf16.mxu0 %v1670
        %2296 = vmatpush1.bf16.msra.mxu0 %v1669
        %2297 = vmatprep.subr.bf16.mxu0 %v1672
        %2298 = vmatpush1.bf16.msra.mxu0 %v1671
        %2299 = vmatprep.subr.bf16.mxu0 %v1674
        %2300 = vmatpush1.bf16.msra.mxu0 %v1673
        %2301 = vmatprep.subr.bf16.mxu0 %v1676
        %2302 = vmatpush1.bf16.msra.mxu0 %v1675
        %2303 = vmatprep.subr.bf16.mxu0 %v1678
        %2304 = vmatpush1.bf16.msra.mxu0 %v1677
        %2305 = vmatprep.subr.bf16.mxu0 %v1680
        %2306 = vmatpush1.bf16.msra.mxu0 %v1679
        %2307 = vmatprep.subr.bf16.mxu0 %v1682
        %2308 = vmatpush1.bf16.msra.mxu0 %v1681
        %2309 = vmatprep.subr.bf16.mxu0 %v1684
        %2310 = vmatpush1.bf16.msra.mxu0 %v1683
        %2311 = vmatprep.subr.bf16.mxu0 %v1686
        %2312 = vmatpush1.bf16.msra.mxu0 %v1685
        %2313 = vmatprep.subr.bf16.mxu0 %v1688
        %2314 = vmatpush1.bf16.msra.mxu0 %v1687
        %2315 = vmatprep.subr.bf16.mxu0 %v1690
        %2316 = vmatpush1.bf16.msra.mxu0 %v1689
        %2317 = vmatprep.subr.bf16.mxu0 %v1692
        %2318 = vmatpush1.bf16.msra.mxu0 %v1691
        %2319 = vmatprep.subr.bf16.mxu0 %v1694
        %2320 = vmatpush1.bf16.msra.mxu0 %v1693
        %2321 = vmatprep.subr.bf16.mxu0 %v1696
        %2322 = vmatpush1.bf16.msra.mxu0 %v1695
        %2323 = vmatprep.mubr.bf16.mxu0 %v660
        %2324 = vmatmul.mubr.bf16.gmra.mrb[0].mxu0 %v648
        %v2325 = vpop.f32.mrb[0].mxu0
        %v2326 = vadd.f32 %v2275, %v2325
        %v2327 = vpop.f32.mrb[0].mxu0
        %v2328 = vadd.f32 %v2277, %v2327
        %v2329 = vpop.f32.mrb[0].mxu0
        %v2330 = vadd.f32 %v2279, %v2329
        %v2331 = vpop.f32.mrb[0].mxu0
        %v2332 = vadd.f32 %v2281, %v2331
        %2333 = vmatprep.mubr.bf16.mxu0 %v690
        %2334 = vmatmul.mubr.bf16.gmra.mrb[0].mxu0 %v687
        %v2335 = vpop.f32.mrb[0].mxu0
        %v2336 = vadd.f32 %v2285, %v2335
        %v2337 = vpop.f32.mrb[0].mxu0
        %v2338 = vadd.f32 %v2287, %v2337
        %v2339 = vpop.f32.mrb[0].mxu0
        %v2340 = vpop.f32.mrb[0].mxu0
        %2341 = vdwg.mxu0
        %2342 = vmatprep.subr.bf16.mxu0 %v1698
        %2343 = vmatpush1.bf16.msra.mxu0 %v1697
        %2344 = vmatprep.subr.bf16.mxu0 %v1700
        %2345 = vmatpush1.bf16.msra.mxu0 %v1699
        %2346 = vmatprep.subr.bf16.mxu0 %v1702
        %2347 = vmatpush1.bf16.msra.mxu0 %v1701
        %2348 = vmatprep.subr.bf16.mxu0 %v1704
        %2349 = vmatpush1.bf16.msra.mxu0 %v1703
        %2350 = vmatprep.subr.bf16.mxu0 %v1706
        %2351 = vmatpush1.bf16.msra.mxu0 %v1705
        %2352 = vmatprep.subr.bf16.mxu0 %v1708
        %2353 = vmatpush1.bf16.msra.mxu0 %v1707
        %2354 = vmatprep.subr.bf16.mxu0 %v1710
        %2355 = vmatpush1.bf16.msra.mxu0 %v1709
        %2356 = vmatprep.subr.bf16.mxu0 %v1712
        %2357 = vmatpush1.bf16.msra.mxu0 %v1711
        %2358 = vmatprep.subr.bf16.mxu0 %v1714
        %2359 = vmatpush1.bf16.msra.mxu0 %v1713
        %2360 = vmatprep.subr.bf16.mxu0 %v1716
        %2361 = vmatpush1.bf16.msra.mxu0 %v1715
        %2362 = vmatprep.subr.bf16.mxu0 %v1718
        %2363 = vmatpush1.bf16.msra.mxu0 %v1717
        %2364 = vmatprep.subr.bf16.mxu0 %v1720
        %2365 = vmatpush1.bf16.msra.mxu0 %v1719
        %2366 = vmatprep.subr.bf16.mxu0 %v1722
        %2367 = vmatpush1.bf16.msra.mxu0 %v1721
        %2368 = vmatprep.subr.bf16.mxu0 %v1724
        %2369 = vmatpush1.bf16.msra.mxu0 %v1723
        %2370 = vmatprep.subr.bf16.mxu0 %v1726
        %2371 = vmatpush1.bf16.msra.mxu0 %v1725
        %2372 = vmatprep.subr.bf16.mxu0 %v1728
        %2373 = vmatpush1.bf16.msra.mxu0 %v1727
        %2374 = vmatprep.mubr.bf16.mxu0 %v684
        %2375 = vmatmul.mubr.bf16.gmra.mrb[0].mxu0 %v672
        %v2376 = vpop.f32.mrb[0].mxu0
        %v2377 = vadd.f32 %v2326, %v2376
        %v2378 = vpop.f32.mrb[0].mxu0
        %v2379 = vadd.f32 %v2328, %v2378
        %v2380 = vpop.f32.mrb[0].mxu0
        %v2381 = vadd.f32 %v2330, %v2380
        %v2382 = vpop.f32.mrb[0].mxu0
        %v2383 = vadd.f32 %v2332, %v2382
        %2384 = vmatprep.mubr.bf16.mxu0 %v696
        %2385 = vmatmul.mubr.bf16.gmra.mrb[0].mxu0 %v693
        %v2386 = vpop.f32.mrb[0].mxu0
        %v2387 = vadd.f32 %v2336, %v2386
        %v2388 = vpop.f32.mrb[0].mxu0
        %v2389 = vadd.f32 %v2338, %v2388
        %v2390 = vpop.f32.mrb[0].mxu0
        %v2391 = vpop.f32.mrb[0].mxu0
        %2392 = vdwg.mxu0
        %v2393 = vpack.c.bf16 %v2381, %v2377
        %v2394 = vpack.c.bf16 %v2383, %v2379
        %v2395 = vpack.c.bf16 %v2387, %v2387
        %v2396 = vpack.c.bf16 %v2389, %v2389
        %v2401 = vunpack.c.l.b16 %v2393
        %v2402 = vunpack.c.l.b16 %v2394
        %v2403 = vunpack.c.h.b16 %v2393
        %v2404 = vunpack.c.h.b16 %v2394
        %v2405 = vunpack.c.l.b16 %v2395
        %v2406 = vunpack.c.l.b16 %v2396
        %v2407 = vpack.c.b16 %v2402, %v2401
        %v2408 = vpack.c.b16 %v2404, %v2403
        %v2409 = vpack.c.b16 %v2406, %v2405
        %s2413 = smul.u32 %s476, 6
        %s2414 = smul.addr %s2413, 4
        %s2415 = scalar_lea.vmem %s210, %s2414
        %2416 = vst [vmem:[%s2415] sm:$0xff] %v2407
        %2417 = vst [vmem:[%s2415 + $0x8] sm:$0xff] %v2408
        %2418 = vst [vmem:[%s2415 + $0x10] sm:$0x77] %v2409
        %v2419 = vadd.f32 %v2377, %v2381
        %vm2420 = vcmask 1045504
        %v2421 = vsel %vm2420, %v2387, 0.0
        %v2422 = vadd.f32 %v2419, %v2421
        %v2423 = vrot.slane %v2422, 4
        %v2424 = vadd.f32 %v2422, %v2423
        %v2425 = vrot.slane %v2424, 2
        %v2426 = vadd.f32 %v2424, %v2425
        %v2427 = vrot.slane %v2426, 1
        %v2428 = vadd.f32 %v2426, %v2427
        %v2429 = vadd.f32 %v2379, %v2383
        %v2430 = vsel %vm2420, %v2389, 0.0
        %v2431 = vadd.f32 %v2429, %v2430
        %v2432 = vrot.slane %v2431, 4
        %v2433 = vadd.f32 %v2431, %v2432
        %v2434 = vrot.slane %v2433, 2
        %v2435 = vadd.f32 %v2433, %v2434
        %v2436 = vrot.slane %v2435, 1
        %v2437 = vadd.f32 %v2435, %v2436
        %v2438 = vadd.f32 %v481, %v2428
        %v2439 = vadd.f32 %v482, %v2437
        %v2440 = vmul.f32 %v2377, %v2377
        %v2441 = vmul.f32 %v2379, %v2379
        %v2442 = vmul.f32 %v2381, %v2381
        %v2443 = vmul.f32 %v2383, %v2383
        %v2444 = vmul.f32 %v2387, %v2387
        %v2445 = vmul.f32 %v2389, %v2389
        %v2446 = vadd.f32 %v2440, %v2442
        %v2447 = vsel %vm2420, %v2444, 0.0
        %v2448 = vadd.f32 %v2446, %v2447
        %v2449 = vrot.slane %v2448, 4
        %v2450 = vadd.f32 %v2448, %v2449
        %v2451 = vrot.slane %v2450, 2
        %v2452 = vadd.f32 %v2450, %v2451
        %v2453 = vrot.slane %v2452, 1
        %v2454 = vadd.f32 %v2452, %v2453
        %v2455 = vadd.f32 %v2441, %v2443
        %v2456 = vsel %vm2420, %v2445, 0.0
        %v2457 = vadd.f32 %v2455, %v2456
        %v2458 = vrot.slane %v2457, 4
        %v2459 = vadd.f32 %v2457, %v2458
        %v2460 = vrot.slane %v2459, 2
        %v2461 = vadd.f32 %v2459, %v2460
        %v2462 = vrot.slane %v2461, 1
        %v2463 = vadd.f32 %v2461, %v2462
        %v2464 = vadd.f32 %v483, %v2454
        %v2465 = vadd.f32 %v484, %v2463
      $region33: #{_lambda_.3} parent=27 // loop_footer
        %s480 = sadd.s32 1, %s476
      $region34: #{_lambda_.3} parent=27 // loop_footer_branch
        %475 = sbr.rel target = $region30
      $region35: #{_lambda_.3} parent=27 // loop_exit
        _
      %v2468 = vcombine.low %v481, %v482
      %v2470 = vunpack.c.l.s4 1966171168
      %v2471 = vunpack.c.0.s8 %v2470
      %v2472 = vlaneseq
      %v2473 = vshrl.u32 %v2472, 7
      %v2474 = vsub.s32 %v2471, %v2473
      %v2475 = vrot.slane %v2468, %v2474
      %v2477 = vunpack.c.l.s4 1966171168
      %v2478 = vunpack.c.0.s8 %v2477
      %v2479 = vlaneseq
      %v2480 = vshrl.u32 %v2479, 7
      %v2481 = vsub.s32 %v2478, %v2480
      %v2482 = vrot.slane %v2475, %v2481
      %v2484 = vlaneseq
      %vm2485 = vcmp.ge.s32.totalorder %v2484, 0
      %vm2486 = vcmp.lt.s32.totalorder %v2484, 256
      %vm2487 = vmand %vm2485, %vm2486
      %2488 = vst.msk [vmem:[%s214] sm:$0x3] %vm2487, %v2482
      %v2491 = vcombine.low %v483, %v484
      %v2493 = vunpack.c.l.s4 1966171168
      %v2494 = vunpack.c.0.s8 %v2493
      %v2495 = vlaneseq
      %v2496 = vshrl.u32 %v2495, 7
      %v2497 = vsub.s32 %v2494, %v2496
      %v2498 = vrot.slane %v2491, %v2497
      %v2500 = vunpack.c.l.s4 1966171168
      %v2501 = vunpack.c.0.s8 %v2500
      %v2502 = vlaneseq
      %v2503 = vshrl.u32 %v2502, 7
      %v2504 = vsub.s32 %v2501, %v2503
      %v2505 = vrot.slane %v2498, %v2504
      %2507 = vst.msk [vmem:[%s218] sm:$0x3] %vm2487, %v2505
      %p2508 = scmp.lt.s32.totalorder %s16, 1
      %s2509 = scalar_select %p2508, %s16, 1
      %s2510 = smul.addr %s2509, 132
      %s2511 = smul.addr %s2510, 4
      %s2512 = scalar_lea.vmem %s2, %s2511
      %p2513 = scmp.lt.s32.totalorder %s16, 1
      %s2514 = scalar_select %p2513, %s16, 1
      %s2515 = smul.addr %s2514, 2
      %s2516 = scalar_lea.vmem %s3, %s2515
      %p2517 = scmp.lt.s32.totalorder %s16, 1
      %s2518 = scalar_select %p2517, %s16, 1
      %s2519 = smul.addr %s2518, 2
      %s2520 = scalar_lea.vmem %s4, %s2519
      // Predicated region
      $region36: #{_lambda_.3} parent=27 // pred_check
        %p2521 = pneg %p81
      $region37: #{_lambda_.3} parent=27 // pred_check_branch
        %2523 = sbr.rel (%p2521) target = $region39
      $region38: #{_lambda_.3} parent=27 // pred_region
        _
      $region39: #{_lambda_.3} parent=27 // pred_fallthru
        _
      // Predicated region
      $region40: #{_lambda_.3} parent=27 // pred_check
        %p2524 = pneg %p107
      $region41: #{_lambda_.3} parent=27 // pred_check_branch
        %2526 = sbr.rel (%p2524) target = $region43
      $region42: #{_lambda_.3} parent=27 // pred_region
        _
      $region43: #{_lambda_.3} parent=27 // pred_fallthru
        _
      // Predicated region
      $region44: #{_lambda_.3} parent=27 // pred_check
        %p2527 = pneg %p133
      $region45: #{_lambda_.3} parent=27 // pred_check_branch
        %2529 = sbr.rel (%p2527) target = $region47
      $region46: #{_lambda_.3} parent=27 // pred_region
        _
      $region47: #{_lambda_.3} parent=27 // pred_fallthru
        _
    $region28: #{_lambda_.3} parent=5 // pred_fallthru
      _
    %p2530 = scmp.le.s32.totalorder 2, %s11
    // Predicated region
    $region48: #{_lambda_.3} parent=5 // pred_check
      %p2531 = pneg %p2530
    $region49: #{_lambda_.3} parent=5 // pred_check_branch
      %2533 = sbr.rel (%p2531) target = $region51
    $region50: #{_lambda_.3} parent=5 // pred_region
      %s2534 = ssub.s32 %s11, 2
      // Predicated region
      $region52: #{_lambda_.3} parent=50 // pred_check
        %p2535 = pneg %p87
      $region53: #{_lambda_.3} parent=50 // pred_check_branch
        %2537 = sbr.rel (%p2535) target = $region55
      $region54: #{_lambda_.3} parent=50 // pred_region
        %p2538 = scmp.lt.s32.totalorder %s17, 1
        %s2539 = scalar_select %p2538, %s17, 1
        %s2540 = smul.addr %s2539, 132
        %s2541 = smul.addr %s2540, 4
        %s2542 = scalar_lea.vmem %s2, %s2541
      $region55: #{_lambda_.3} parent=50 // pred_fallthru
        _
      // Predicated region
      $region56: #{_lambda_.3} parent=50 // pred_check
        %p2543 = pneg %p113
      $region57: #{_lambda_.3} parent=50 // pred_check_branch
        %2545 = sbr.rel (%p2543) target = $region59
      $region58: #{_lambda_.3} parent=50 // pred_region
        %p2546 = scmp.lt.s32.totalorder %s17, 1
        %s2547 = scalar_select %p2546, %s17, 1
        %s2548 = smul.addr %s2547, 2
        %s2549 = scalar_lea.vmem %s3, %s2548
      $region59: #{_lambda_.3} parent=50 // pred_fallthru
        _
      // Predicated region
      $region60: #{_lambda_.3} parent=50 // pred_check
        %p2550 = pneg %p139
      $region61: #{_lambda_.3} parent=50 // pred_check_branch
        %2552 = sbr.rel (%p2550) target = $region63
      $region62: #{_lambda_.3} parent=50 // pred_region
        %p2553 = scmp.lt.s32.totalorder %s17, 1
        %s2554 = scalar_select %p2553, %s17, 1
        %s2555 = smul.addr %s2554, 2
        %s2556 = scalar_lea.vmem %s4, %s2555
      $region63: #{_lambda_.3} parent=50 // pred_fallthru
        _
    $region51: #{_lambda_.3} parent=5 // pred_fallthru
      _
  $region6: #{_lambda_.3} parent=0 // loop_footer
    %s15 = sadd.s32 1, %s11
  $region7: #{_lambda_.3} parent=0 // loop_footer_branch
    %10 = sbr.rel target = $region3
  $region8: #{_lambda_.3} parent=0 // loop_exit
    _

</llo_original>
